<compile_context>
chip_gen: v5e
topology: v5e:2x2
jax: 0.10.0
libtpu: 0.0.40
codegen_flags: <defaults>
</compile_context>

<pallas_src>
import jax
import jax.numpy as jnp
import numpy as np
from jax import lax
from jax.experimental import pallas as pl
from jax.experimental.pallas import tpu as pltpu

EPS = 1e-5       # nn.InstanceNorm2d default eps (affine=False, no running stats)
LEFT = 7         # left-halo column; interior starts at sublane-aligned column 8


def _residual_block_kernel(x_ref, w1_ref, b1_ref, w2_ref, b2_ref, o_ref, pad_ref):
    """One image per grid step.

    x_ref   : (1, H, W, C)   f32   activation tile (true channel count C)
    w*_ref  : (3, 3*Cp, Cp)  cdt   conv weights, (dx, cin) folded into the K dim
    b*_ref  : (1, Cp)        f32
    o_ref   : (1, H, W, C)   f32
    pad_ref : (H+2, W+9, Cp) VMEM scratch in the matmul compute dtype; columns
              0..6 unused, 7 = left halo, 8..7+W = interior, 8+W = right halo.
    """
    _, H, W, C = x_ref.shape
    Cp = pad_ref.shape[-1]
    Wpad = pad_ref.shape[1]
    cdt = pad_ref.dtype
    HW = H * W

    # Zero the 1-px halo. Interior tail channels C..Cp never need zeroing because
    # the weights' cin tail is zero-padded. Re-done every step: cheap, and safe
    # under megacore sharding (per-core scratch, global program_id).
    zrow = jnp.zeros((1, Wpad, Cp), cdt)
    pad_ref[pl.ds(0, 1), :, :] = zrow
    pad_ref[pl.ds(H + 1, 1), :, :] = zrow
    zcol = jnp.zeros((H + 2, 1, Cp), cdt)
    pad_ref[:, pl.ds(LEFT, 1), :] = zcol
    pad_ref[:, pl.ds(LEFT + W + 1, 1), :] = zcol

    def conv3x3(w_ref, b_ref):
        # Fold the 3 width taps into the contraction dim (K = 3*Cp); only the +/-1
        # taps are sublane-unaligned. Then 3 MXU matmuls (one per dy) with a 2-D
        # (H*W, 3*Cp) LHS so M fills the MXU even for small W.
        xw = jnp.concatenate(
            [pad_ref[:, pl.ds(LEFT + 0, W), :],     # dx = 0
             pad_ref[:, pl.ds(LEFT + 1, W), :],     # dx = 1 (aligned centre tap)
             pad_ref[:, pl.ds(LEFT + 2, W), :]],    # dx = 2
            axis=-1)                                # (H+2, W, 3*Cp)
        acc = jnp.zeros((HW, Cp), jnp.float32)
        for dy in range(3):
            lhs = xw[dy:dy + H].reshape(HW, 3 * Cp)     # layout-free when W % 8 == 0
            acc = acc + jnp.dot(lhs, w_ref[dy],
                                preferred_element_type=jnp.float32)
        return acc + b_ref[...]                     # (HW, Cp) f32

    def inorm_relu(y):
        # Per-channel stats over the H*W rows; two-pass variance (f32).
        inv_hw = 1.0 / HW
        mean = jnp.sum(y, axis=0, keepdims=True) * inv_hw
        d = y - mean
        var = jnp.sum(d * d, axis=0, keepdims=True) * inv_hw
        return jnp.maximum(d * lax.rsqrt(var + EPS), 0.0)

    def write_interior(v_hwcp):                     # (H, W, Cp) -> pad_ref interior
        pad_ref[pl.ds(1, H), pl.ds(LEFT + 1, W), :] = v_hwcp.astype(cdt)

    # conv1 -> InstanceNorm -> ReLU.  Channel pad to Cp happens here, in VMEM.
    xc = x_ref[0].astype(cdt)                       # (H, W, C)
    if Cp > C:
        xc = jnp.concatenate([xc, jnp.zeros((H, W, Cp - C), cdt)], axis=-1)
    write_interior(xc)
    h = inorm_relu(conv3x3(w1_ref, b1_ref))         # (HW, Cp) f32

    # conv2 -> InstanceNorm -> ReLU.
    write_interior(h.reshape(H, W, Cp))
    h = inorm_relu(conv3x3(w2_ref, b2_ref))

    # Residual add on the C real channels; re-read x here (short live range).
    o_ref[0] = (x_ref[0] + h.reshape(H, W, Cp)[:, :, :C]).astype(o_ref.dtype)


def _round_up(x, m):
    return ((x + m - 1) // m) * m


def _vmem_capacity_bytes():
    try:
        cap = getattr(pltpu.get_tpu_info(), "vmem_capacity_bytes", None)
        if cap:
            return int(cap)
    except Exception:
        pass
    return 64 * 1024 * 1024   # conservative fallback (v7x per-core VMEM)


def residual_block_pallas(x_nhwc, w1, b1, w2, b2, *, compute_dtype=jnp.bfloat16):
    """x_nhwc: (N,H,W,C) f32; w*: (3,3,C,C) HWIO; b*: (C,). Returns (N,H,W,C) f32.

    compute_dtype=bf16 (default): bf16 MXU operands, f32 accumulation and f32
    InstanceNorm statistics (~1e-2 relative error vs the f32 reference).
    """
    N, H, W, C = x_nhwc.shape
    Cp = _round_up(C, 128)                 # lane-dense channel dim (VMEM only)
    Wpad = W + 9                           # sublane-aligned interior at column 8
    cbytes = jnp.dtype(compute_dtype).itemsize

    def prep_w(w):
        w = jnp.pad(w, ((0, 0), (0, 0), (0, Cp - C), (0, Cp - C)))
        return w.reshape(3, 3 * Cp, Cp).astype(compute_dtype)   # fold (dx, cin) -> K

    def prep_b(b):
        return jnp.pad(b, (0, Cp - C)).reshape(1, Cp).astype(jnp.float32)

    x_f32 = x_nhwc.astype(jnp.float32)

    # VMEM budget: double-buffered x/out blocks + weight slabs, halo scratch,
    # width-folded copy, f32 accumulator / norm temporaries.
    hw = H * W
    est = (2 * 2 * hw * C * 4
           + 2 * 2 * (9 * Cp * Cp * cbytes + Cp * 4)
           + (H + 2) * Wpad * Cp * cbytes
           + (H + 2) * W * 3 * Cp * cbytes
           + 6 * hw * Cp * 4)
    vmem_limit = min(max(int(est * 1.25), 32 * 1024 * 1024),
                     int(0.85 * _vmem_capacity_bytes()))

    return pl.pallas_call(
        _residual_block_kernel,
        out_shape=jax.ShapeDtypeStruct((N, H, W, C), jnp.float32),
        grid_spec=pltpu.PrefetchScalarGridSpec(
            num_scalar_prefetch=0,
            grid=(N,),
            in_specs=[
                pl.BlockSpec((1, H, W, C), lambda n: (n, 0, 0, 0)),    # x (unpadded)
                pl.BlockSpec((3, 3 * Cp, Cp), lambda n: (0, 0, 0)),    # w1
                pl.BlockSpec((1, Cp), lambda n: (0, 0)),               # b1
                pl.BlockSpec((3, 3 * Cp, Cp), lambda n: (0, 0, 0)),    # w2
                pl.BlockSpec((1, Cp), lambda n: (0, 0)),               # b2
            ],
            out_specs=pl.BlockSpec((1, H, W, C), lambda n: (n, 0, 0, 0)),
            scratch_shapes=[pltpu.VMEM((H + 2, Wpad, Cp), compute_dtype)],
        ),
        compiler_params=pltpu.CompilerParams(
            dimension_semantics=("parallel",),
            vmem_limit_bytes=vmem_limit),
    )(x_f32, prep_w(w1), prep_b(b1), prep_w(w2), prep_b(b2))


def residual_block_nchw(x_nchw, w1, b1, w2, b2, *, compute_dtype=jnp.bfloat16):
    """Matches ResidualBlock.forward for NCHW input."""
    x_nhwc = jnp.transpose(x_nchw, (0, 2, 3, 1))
    y_nhwc = residual_block_pallas(x_nhwc, w1, b1, w2, b2,
                                   compute_dtype=compute_dtype)
    return jnp.transpose(y_nhwc, (0, 3, 1, 2))


# ---------- pure-JAX reference (for verification) ----------
def _ref_conv3x3(x_nchw, w_hwio, b):
    w_oihw = jnp.transpose(w_hwio, (3, 2, 0, 1))
    y = lax.conv_general_dilated(
        x_nchw, w_oihw, window_strides=(1, 1), padding=((1, 1), (1, 1)),
        dimension_numbers=("NCHW", "OIHW", "NCHW"))
    return y + b[None, :, None, None]


def _ref_inorm_relu(y):
    mean = jnp.mean(y, axis=(2, 3), keepdims=True)
    var = jnp.mean((y - mean) ** 2, axis=(2, 3), keepdims=True)
    return jnp.maximum((y - mean) * lax.rsqrt(var + EPS), 0.0)


def residual_block_ref(x, w1, b1, w2, b2):
    h = _ref_inorm_relu(_ref_conv3x3(x, w1, b1))
    h = _ref_inorm_relu(_ref_conv3x3(h, w2, b2))
    return x + h


if __name__ == "__main__":
    N, C, H, W = 2, 4, 16, 16
    key = jax.random.PRNGKey(0)
    kx, k1, k2, k3, k4 = jax.random.split(key, 5)

    x = jax.random.normal(kx, (N, C, H, W), dtype=jnp.float32)
    # Conv2d(C, C, 3)-shaped params, scaled like PyTorch default init ~1/sqrt(fan_in).
    fan_in = C * 3 * 3
    scale = 1.0 / np.sqrt(fan_in)
    w1 = jax.random.uniform(k1, (3, 3, C, C), jnp.float32, -scale, scale)
    b1 = jax.random.uniform(k2, (C,), jnp.float32, -scale, scale)
    w2 = jax.random.uniform(k3, (3, 3, C, C), jnp.float32, -scale, scale)
    b2 = jax.random.uniform(k4, (C,), jnp.float32, -scale, scale)

    ref = jax.block_until_ready(residual_block_ref(x, w1, b1, w2, b2))

    # f32 matmul operands: tight tolerance.
    out_f32 = jax.block_until_ready(
        residual_block_nchw(x, w1, b1, w2, b2, compute_dtype=jnp.float32))
    np.testing.assert_allclose(np.asarray(out_f32), np.asarray(ref),
                               rtol=1e-3, atol=1e-3)

    # Default bf16 matmul operands (f32 accumulation / norm): loose tolerance.
    out_bf16 = jax.block_until_ready(
        residual_block_nchw(x, w1, b1, w2, b2))
    np.testing.assert_allclose(np.asarray(out_bf16), np.asarray(ref),
                               rtol=1e-1, atol=1e-1)

    print("KERNEL_OK")
</pallas_src>

<mosaic_0001>
module attributes {stable_mosaic.version = 11 : i64} {
  func.func @_residual_block_kernel(%arg0: i32, %arg1: memref<1x16x16x4xf32, #tpu.memory_space<vmem>>, %arg2: memref<3x384x128xf32, #tpu.memory_space<vmem>>, %arg3: memref<1x128xf32, #tpu.memory_space<vmem>>, %arg4: memref<3x384x128xf32, #tpu.memory_space<vmem>>, %arg5: memref<1x128xf32, #tpu.memory_space<vmem>>, %arg6: memref<1x16x16x4xf32, #tpu.memory_space<vmem>>, %arg7: memref<18x25x128xf32, #tpu.memory_space<vmem>>) attributes {dimension_semantics = [#tpu.dimension_semantics<parallel>], iteration_bounds = array<i64: 2>, scalar_prefetch = 0 : i64, scratch_operands = 1 : i64, tpu.core_type = #tpu.core_type<tc>, window_params = [{transform_indices = @transform_0, window_bounds = array<i64: 1, 16, 16, 4>}, {pipeline_mode = #tpu.pipeline_mode<synchronous>, transform_indices = @transform_1, window_bounds = array<i64: 3, 384, 128>}, {pipeline_mode = #tpu.pipeline_mode<synchronous>, transform_indices = @transform_2, window_bounds = array<i64: 1, 128>}, {pipeline_mode = #tpu.pipeline_mode<synchronous>, transform_indices = @transform_3, window_bounds = array<i64: 3, 384, 128>}, {pipeline_mode = #tpu.pipeline_mode<synchronous>, transform_indices = @transform_4, window_bounds = array<i64: 1, 128>}, {transform_indices = @transform_5, window_bounds = array<i64: 1, 16, 16, 4>}]} {
    %cst = arith.constant 0.000000e+00 : f32
    %0 = vector.broadcast %cst : f32 to vector<1x25x128xf32>
    %c0 = arith.constant 0 : index
    %c0_0 = arith.constant 0 : index
    %c0_1 = arith.constant 0 : index
    %1 = vector.load %arg7[%c0, %c0_0, %c0_1] : memref<18x25x128xf32, #tpu.memory_space<vmem>>, vector<1x25x128xf32>
    tpu.vector_store %arg7[%c0, %c0_0, %c0_1], %0 {strides = array<i32>} : memref<18x25x128xf32, #tpu.memory_space<vmem>>, vector<1x25x128xf32>,
    %c17 = arith.constant 17 : index
    %c0_2 = arith.constant 0 : index
    %c0_3 = arith.constant 0 : index
    %2 = vector.load %arg7[%c17, %c0_2, %c0_3] : memref<18x25x128xf32, #tpu.memory_space<vmem>>, vector<1x25x128xf32>
    tpu.vector_store %arg7[%c17, %c0_2, %c0_3], %0 {strides = array<i32>} : memref<18x25x128xf32, #tpu.memory_space<vmem>>, vector<1x25x128xf32>,
    %cst_4 = arith.constant 0.000000e+00 : f32
    %3 = vector.broadcast %cst_4 : f32 to vector<18x1x128xf32>
    %c0_5 = arith.constant 0 : index
    %c7 = arith.constant 7 : index
    %c0_6 = arith.constant 0 : index
    %4 = vector.load %arg7[%c0_5, %c7, %c0_6] : memref<18x25x128xf32, #tpu.memory_space<vmem>>, vector<18x1x128xf32>
    tpu.vector_store %arg7[%c0_5, %c7, %c0_6], %3 {strides = array<i32>} : memref<18x25x128xf32, #tpu.memory_space<vmem>>, vector<18x1x128xf32>,
    %c0_7 = arith.constant 0 : index
    %c24 = arith.constant 24 : index
    %c0_8 = arith.constant 0 : index
    %5 = vector.load %arg7[%c0_7, %c24, %c0_8] : memref<18x25x128xf32, #tpu.memory_space<vmem>>, vector<18x1x128xf32>
    tpu.vector_store %arg7[%c0_7, %c24, %c0_8], %3 {strides = array<i32>} : memref<18x25x128xf32, #tpu.memory_space<vmem>>, vector<18x1x128xf32>,
    %c0_9 = arith.constant 0 : index
    %c0_10 = arith.constant 0 : index
    %c0_11 = arith.constant 0 : index
    %c0_12 = arith.constant 0 : index
    %6 = vector.load %arg1[%c0_9, %c0_10, %c0_11, %c0_12] : memref<1x16x16x4xf32, #tpu.memory_space<vmem>>, vector<1x16x16x4xf32>
    %7 = vector.shape_cast %6 : vector<1x16x16x4xf32> to vector<16x16x4xf32>
    %cst_13 = arith.constant 0.000000e+00 : f32
    %8 = vector.broadcast %cst_13 : f32 to vector<16x16x124xf32>
    %9 = tpu.concatenate %7, %8 in 2 : vector<16x16x4xf32>, vector<16x16x124xf32> -> vector<16x16x128xf32>
    %c1 = arith.constant 1 : index
    %c8 = arith.constant 8 : index
    %c0_14 = arith.constant 0 : index
    %10 = vector.load %arg7[%c1, %c8, %c0_14] : memref<18x25x128xf32, #tpu.memory_space<vmem>>, vector<16x16x128xf32>
    tpu.vector_store %arg7[%c1, %c8, %c0_14], %9 {strides = array<i32>} : memref<18x25x128xf32, #tpu.memory_space<vmem>>, vector<16x16x128xf32>,
    %c0_15 = arith.constant 0 : index
    %c7_16 = arith.constant 7 : index
    %c0_17 = arith.constant 0 : index
    %11 = vector.load %arg7[%c0_15, %c7_16, %c0_17] : memref<18x25x128xf32, #tpu.memory_space<vmem>>, vector<18x16x128xf32>
    %c0_18 = arith.constant 0 : index
    %c8_19 = arith.constant 8 : index
    %c0_20 = arith.constant 0 : index
    %12 = vector.load %arg7[%c0_18, %c8_19, %c0_20] : memref<18x25x128xf32, #tpu.memory_space<vmem>>, vector<18x16x128xf32>
    %c0_21 = arith.constant 0 : index
    %c9 = arith.constant 9 : index
    %c0_22 = arith.constant 0 : index
    %13 = vector.load %arg7[%c0_21, %c9, %c0_22] : memref<18x25x128xf32, #tpu.memory_space<vmem>>, vector<18x16x128xf32>
    %14 = tpu.concatenate %11, %12, %13 in 2 : vector<18x16x128xf32>, vector<18x16x128xf32>, vector<18x16x128xf32> -> vector<18x16x384xf32>
    %cst_23 = arith.constant 0.000000e+00 : f32
    %15 = vector.broadcast %cst_23 : f32 to vector<256x128xf32>
    %16 = vector.extract_strided_slice %14 {offsets = [0, 0, 0], sizes = [16, 16, 384], strides = [1, 1, 1]} : vector<18x16x384xf32> to vector<16x16x384xf32>
    %17 = vector.shape_cast %16 : vector<16x16x384xf32> to vector<256x384xf32>
    %c0_24 = arith.constant 0 : index
    %c0_25 = arith.constant 0 : index
    %c0_26 = arith.constant 0 : index
    %18 = vector.load %arg2[%c0_24, %c0_25, %c0_26] : memref<3x384x128xf32, #tpu.memory_space<vmem>>, vector<1x384x128xf32>
    %19 = vector.shape_cast %18 : vector<1x384x128xf32> to vector<384x128xf32>
    %cst_27 = arith.constant dense<0.000000e+00> : vector<256x128xf32>
    %20 = tpu.matmul %17, %19, %cst_27 {dimension_numbers = #tpu.dot_dimension_numbers<[1], [0], [0], [1], [0, 0, 1, 1], [], []>} : vector<256x384xf32>, vector<384x128xf32>, vector<256x128xf32> -> vector<256x128xf32>
    %21 = arith.addf %15, %20 : vector<256x128xf32>
    %22 = vector.extract_strided_slice %14 {offsets = [1, 0, 0], sizes = [16, 16, 384], strides = [1, 1, 1]} : vector<18x16x384xf32> to vector<16x16x384xf32>
    %23 = vector.shape_cast %22 : vector<16x16x384xf32> to vector<256x384xf32>
    %c1_28 = arith.constant 1 : index
    %c0_29 = arith.constant 0 : index
    %c0_30 = arith.constant 0 : index
    %24 = vector.load %arg2[%c1_28, %c0_29, %c0_30] : memref<3x384x128xf32, #tpu.memory_space<vmem>>, vector<1x384x128xf32>
    %25 = vector.shape_cast %24 : vector<1x384x128xf32> to vector<384x128xf32>
    %cst_31 = arith.constant dense<0.000000e+00> : vector<256x128xf32>
    %26 = tpu.matmul %23, %25, %cst_31 {dimension_numbers = #tpu.dot_dimension_numbers<[1], [0], [0], [1], [0, 0, 1, 1], [], []>} : vector<256x384xf32>, vector<384x128xf32>, vector<256x128xf32> -> vector<256x128xf32>
    %27 = arith.addf %21, %26 : vector<256x128xf32>
    %28 = vector.extract_strided_slice %14 {offsets = [2, 0, 0], sizes = [16, 16, 384], strides = [1, 1, 1]} : vector<18x16x384xf32> to vector<16x16x384xf32>
    %29 = vector.shape_cast %28 : vector<16x16x384xf32> to vector<256x384xf32>
    %c2 = arith.constant 2 : index
    %c0_32 = arith.constant 0 : index
    %c0_33 = arith.constant 0 : index
    %30 = vector.load %arg2[%c2, %c0_32, %c0_33] : memref<3x384x128xf32, #tpu.memory_space<vmem>>, vector<1x384x128xf32>
    %31 = vector.shape_cast %30 : vector<1x384x128xf32> to vector<384x128xf32>
    %cst_34 = arith.constant dense<0.000000e+00> : vector<256x128xf32>
    %32 = tpu.matmul %29, %31, %cst_34 {dimension_numbers = #tpu.dot_dimension_numbers<[1], [0], [0], [1], [0, 0, 1, 1], [], []>} : vector<256x384xf32>, vector<384x128xf32>, vector<256x128xf32> -> vector<256x128xf32>
    %33 = arith.addf %27, %32 : vector<256x128xf32>
    %c0_35 = arith.constant 0 : index
    %c0_36 = arith.constant 0 : index
    %34 = vector.load %arg3[%c0_35, %c0_36] : memref<1x128xf32, #tpu.memory_space<vmem>>, vector<1x128xf32>
    %35 = vector.broadcast %34 : vector<1x128xf32> to vector<256x128xf32>
    %36 = arith.addf %33, %35 : vector<256x128xf32>
    %cst_37 = arith.constant dense<0.000000e+00> : vector<128xf32>
    %37 = vector.multi_reduction <add>, %36, %cst_37 [0] : vector<256x128xf32> to vector<128xf32>
    %38 = vector.shape_cast %37 : vector<128xf32> to vector<1x128xf32>
    %cst_38 = arith.constant 3.906250e-03 : f32
    %39 = vector.broadcast %cst_38 : f32 to vector<1x128xf32>
    %40 = arith.mulf %38, %39 : vector<1x128xf32>
    %41 = vector.broadcast %40 : vector<1x128xf32> to vector<256x128xf32>
    %42 = arith.subf %36, %41 : vector<256x128xf32>
    %43 = arith.mulf %42, %42 : vector<256x128xf32>
    %cst_39 = arith.constant dense<0.000000e+00> : vector<128xf32>
    %44 = vector.multi_reduction <add>, %43, %cst_39 [0] : vector<256x128xf32> to vector<128xf32>
    %45 = vector.shape_cast %44 : vector<128xf32> to vector<1x128xf32>
    %cst_40 = arith.constant 3.906250e-03 : f32
    %46 = vector.broadcast %cst_40 : f32 to vector<1x128xf32>
    %47 = arith.mulf %45, %46 : vector<1x128xf32>
    %cst_41 = arith.constant 9.99999974E-6 : f32
    %48 = vector.broadcast %cst_41 : f32 to vector<1x128xf32>
    %49 = arith.addf %47, %48 : vector<1x128xf32>
    %50 = math.rsqrt %49 : vector<1x128xf32>
    %51 = vector.broadcast %50 : vector<1x128xf32> to vector<256x128xf32>
    %52 = arith.mulf %42, %51 : vector<256x128xf32>
    %cst_42 = arith.constant 0.000000e+00 : f32
    %53 = vector.broadcast %cst_42 : f32 to vector<256x128xf32>
    %54 = arith.maximumf %52, %53 : vector<256x128xf32>
    %55 = vector.shape_cast %54 : vector<256x128xf32> to vector<16x16x128xf32>
    %c1_43 = arith.constant 1 : index
    %c8_44 = arith.constant 8 : index
    %c0_45 = arith.constant 0 : index
    %56 = vector.load %arg7[%c1_43, %c8_44, %c0_45] : memref<18x25x128xf32, #tpu.memory_space<vmem>>, vector<16x16x128xf32>
    tpu.vector_store %arg7[%c1_43, %c8_44, %c0_45], %55 {strides = array<i32>} : memref<18x25x128xf32, #tpu.memory_space<vmem>>, vector<16x16x128xf32>,
    %c0_46 = arith.constant 0 : index
    %c7_47 = arith.constant 7 : index
    %c0_48 = arith.constant 0 : index
    %57 = vector.load %arg7[%c0_46, %c7_47, %c0_48] : memref<18x25x128xf32, #tpu.memory_space<vmem>>, vector<18x16x128xf32>
    %c0_49 = arith.constant 0 : index
    %c8_50 = arith.constant 8 : index
    %c0_51 = arith.constant 0 : index
    %58 = vector.load %arg7[%c0_49, %c8_50, %c0_51] : memref<18x25x128xf32, #tpu.memory_space<vmem>>, vector<18x16x128xf32>
    %c0_52 = arith.constant 0 : index
    %c9_53 = arith.constant 9 : index
    %c0_54 = arith.constant 0 : index
    %59 = vector.load %arg7[%c0_52, %c9_53, %c0_54] : memref<18x25x128xf32, #tpu.memory_space<vmem>>, vector<18x16x128xf32>
    %60 = tpu.concatenate %57, %58, %59 in 2 : vector<18x16x128xf32>, vector<18x16x128xf32>, vector<18x16x128xf32> -> vector<18x16x384xf32>
    %cst_55 = arith.constant 0.000000e+00 : f32
    %61 = vector.broadcast %cst_55 : f32 to vector<256x128xf32>
    %62 = vector.extract_strided_slice %60 {offsets = [0, 0, 0], sizes = [16, 16, 384], strides = [1, 1, 1]} : vector<18x16x384xf32> to vector<16x16x384xf32>
    %63 = vector.shape_cast %62 : vector<16x16x384xf32> to vector<256x384xf32>
    %c0_56 = arith.constant 0 : index
    %c0_57 = arith.constant 0 : index
    %c0_58 = arith.constant 0 : index
    %64 = vector.load %arg4[%c0_56, %c0_57, %c0_58] : memref<3x384x128xf32, #tpu.memory_space<vmem>>, vector<1x384x128xf32>
    %65 = vector.shape_cast %64 : vector<1x384x128xf32> to vector<384x128xf32>
    %cst_59 = arith.constant dense<0.000000e+00> : vector<256x128xf32>
    %66 = tpu.matmul %63, %65, %cst_59 {dimension_numbers = #tpu.dot_dimension_numbers<[1], [0], [0], [1], [0, 0, 1, 1], [], []>} : vector<256x384xf32>, vector<384x128xf32>, vector<256x128xf32> -> vector<256x128xf32>
    %67 = arith.addf %61, %66 : vector<256x128xf32>
    %68 = vector.extract_strided_slice %60 {offsets = [1, 0, 0], sizes = [16, 16, 384], strides = [1, 1, 1]} : vector<18x16x384xf32> to vector<16x16x384xf32>
    %69 = vector.shape_cast %68 : vector<16x16x384xf32> to vector<256x384xf32>
    %c1_60 = arith.constant 1 : index
    %c0_61 = arith.constant 0 : index
    %c0_62 = arith.constant 0 : index
    %70 = vector.load %arg4[%c1_60, %c0_61, %c0_62] : memref<3x384x128xf32, #tpu.memory_space<vmem>>, vector<1x384x128xf32>
    %71 = vector.shape_cast %70 : vector<1x384x128xf32> to vector<384x128xf32>
    %cst_63 = arith.constant dense<0.000000e+00> : vector<256x128xf32>
    %72 = tpu.matmul %69, %71, %cst_63 {dimension_numbers = #tpu.dot_dimension_numbers<[1], [0], [0], [1], [0, 0, 1, 1], [], []>} : vector<256x384xf32>, vector<384x128xf32>, vector<256x128xf32> -> vector<256x128xf32>
    %73 = arith.addf %67, %72 : vector<256x128xf32>
    %74 = vector.extract_strided_slice %60 {offsets = [2, 0, 0], sizes = [16, 16, 384], strides = [1, 1, 1]} : vector<18x16x384xf32> to vector<16x16x384xf32>
    %75 = vector.shape_cast %74 : vector<16x16x384xf32> to vector<256x384xf32>
    %c2_64 = arith.constant 2 : index
    %c0_65 = arith.constant 0 : index
    %c0_66 = arith.constant 0 : index
    %76 = vector.load %arg4[%c2_64, %c0_65, %c0_66] : memref<3x384x128xf32, #tpu.memory_space<vmem>>, vector<1x384x128xf32>
    %77 = vector.shape_cast %76 : vector<1x384x128xf32> to vector<384x128xf32>
    %cst_67 = arith.constant dense<0.000000e+00> : vector<256x128xf32>
    %78 = tpu.matmul %75, %77, %cst_67 {dimension_numbers = #tpu.dot_dimension_numbers<[1], [0], [0], [1], [0, 0, 1, 1], [], []>} : vector<256x384xf32>, vector<384x128xf32>, vector<256x128xf32> -> vector<256x128xf32>
    %79 = arith.addf %73, %78 : vector<256x128xf32>
    %c0_68 = arith.constant 0 : index
    %c0_69 = arith.constant 0 : index
    %80 = vector.load %arg5[%c0_68, %c0_69] : memref<1x128xf32, #tpu.memory_space<vmem>>, vector<1x128xf32>
    %81 = vector.broadcast %80 : vector<1x128xf32> to vector<256x128xf32>
    %82 = arith.addf %79, %81 : vector<256x128xf32>
    %cst_70 = arith.constant dense<0.000000e+00> : vector<128xf32>
    %83 = vector.multi_reduction <add>, %82, %cst_70 [0] : vector<256x128xf32> to vector<128xf32>
    %84 = vector.shape_cast %83 : vector<128xf32> to vector<1x128xf32>
    %cst_71 = arith.constant 3.906250e-03 : f32
    %85 = vector.broadcast %cst_71 : f32 to vector<1x128xf32>
    %86 = arith.mulf %84, %85 : vector<1x128xf32>
    %87 = vector.broadcast %86 : vector<1x128xf32> to vector<256x128xf32>
    %88 = arith.subf %82, %87 : vector<256x128xf32>
    %89 = arith.mulf %88, %88 : vector<256x128xf32>
    %cst_72 = arith.constant dense<0.000000e+00> : vector<128xf32>
    %90 = vector.multi_reduction <add>, %89, %cst_72 [0] : vector<256x128xf32> to vector<128xf32>
    %91 = vector.shape_cast %90 : vector<128xf32> to vector<1x128xf32>
    %cst_73 = arith.constant 3.906250e-03 : f32
    %92 = vector.broadcast %cst_73 : f32 to vector<1x128xf32>
    %93 = arith.mulf %91, %92 : vector<1x128xf32>
    %cst_74 = arith.constant 9.99999974E-6 : f32
    %94 = vector.broadcast %cst_74 : f32 to vector<1x128xf32>
    %95 = arith.addf %93, %94 : vector<1x128xf32>
    %96 = math.rsqrt %95 : vector<1x128xf32>
    %97 = vector.broadcast %96 : vector<1x128xf32> to vector<256x128xf32>
    %98 = arith.mulf %88, %97 : vector<256x128xf32>
    %cst_75 = arith.constant 0.000000e+00 : f32
    %99 = vector.broadcast %cst_75 : f32 to vector<256x128xf32>
    %100 = arith.maximumf %98, %99 : vector<256x128xf32>
    %c0_76 = arith.constant 0 : index
    %c0_77 = arith.constant 0 : index
    %c0_78 = arith.constant 0 : index
    %c0_79 = arith.constant 0 : index
    %101 = vector.load %arg1[%c0_76, %c0_77, %c0_78, %c0_79] : memref<1x16x16x4xf32, #tpu.memory_space<vmem>>, vector<1x16x16x4xf32>
    %102 = vector.shape_cast %101 : vector<1x16x16x4xf32> to vector<16x16x4xf32>
    %103 = vector.shape_cast %100 : vector<256x128xf32> to vector<16x16x128xf32>
    %104 = vector.extract_strided_slice %103 {offsets = [0, 0, 0], sizes = [16, 16, 4], strides = [1, 1, 1]} : vector<16x16x128xf32> to vector<16x16x4xf32>
    %105 = arith.addf %102, %104 : vector<16x16x4xf32>
    %c0_80 = arith.constant 0 : index
    %c0_81 = arith.constant 0 : index
    %c0_82 = arith.constant 0 : index
    %c0_83 = arith.constant 0 : index
    %106 = vector.load %arg6[%c0_80, %c0_81, %c0_82, %c0_83] : memref<1x16x16x4xf32, #tpu.memory_space<vmem>>, vector<1x16x16x4xf32>
    %107 = vector.shape_cast %106 : vector<1x16x16x4xf32> to vector<16x16x4xf32>
    %108 = vector.shape_cast %105 : vector<16x16x4xf32> to vector<1x16x16x4xf32>
    tpu.vector_store %arg6[%c0_80, %c0_81, %c0_82, %c0_83], %108 {strides = array<i32>} : memref<1x16x16x4xf32, #tpu.memory_space<vmem>>, vector<1x16x16x4xf32>,
    return
  }
  func.func @transform_0(%arg0: i32) -> (i32, i32, i32, i32) {
    %c0_i32 = arith.constant 0 : i32
    %c0_i32_0 = arith.constant 0 : i32
    %c0_i32_1 = arith.constant 0 : i32
    %c0_i32_2 = arith.constant 0 : i32
    return %arg0, %c0_i32, %c0_i32_0, %c0_i32_1 : i32, i32, i32, i32
  }
  func.func @transform_1(%arg0: i32) -> (i32, i32, i32) {
    %c0_i32 = arith.constant 0 : i32
    %c0_i32_0 = arith.constant 0 : i32
    %c0_i32_1 = arith.constant 0 : i32
    %c0_i32_2 = arith.constant 0 : i32
    return %c0_i32, %c0_i32_0, %c0_i32_1 : i32, i32, i32
  }
  func.func @transform_2(%arg0: i32) -> (i32, i32) {
    %c0_i32 = arith.constant 0 : i32
    %c0_i32_0 = arith.constant 0 : i32
    %c0_i32_1 = arith.constant 0 : i32
    return %c0_i32, %c0_i32_0 : i32, i32
  }
  func.func @transform_3(%arg0: i32) -> (i32, i32, i32) {
    %c0_i32 = arith.constant 0 : i32
    %c0_i32_0 = arith.constant 0 : i32
    %c0_i32_1 = arith.constant 0 : i32
    %c0_i32_2 = arith.constant 0 : i32
    return %c0_i32, %c0_i32_0, %c0_i32_1 : i32, i32, i32
  }
  func.func @transform_4(%arg0: i32) -> (i32, i32) {
    %c0_i32 = arith.constant 0 : i32
    %c0_i32_0 = arith.constant 0 : i32
    %c0_i32_1 = arith.constant 0 : i32
    return %c0_i32, %c0_i32_0 : i32, i32
  }
  func.func @transform_5(%arg0: i32) -> (i32, i32, i32, i32) {
    %c0_i32 = arith.constant 0 : i32
    %c0_i32_0 = arith.constant 0 : i32
    %c0_i32_1 = arith.constant 0 : i32
    %c0_i32_2 = arith.constant 0 : i32
    return %arg0, %c0_i32, %c0_i32_0, %c0_i32_1 : i32, i32, i32, i32
  }
}

</mosaic_0001>

<llo_original>
// kernel: tpu_custom_call.1
$region0: #{tpu_custom_call.1}
  #allocation0 [shape = 'u32[]', space=smem, size = 0x4, offset = 0x4, fixed_abs, tag = 'smem constant byte address 0x4 - core index']
  #allocation1 [shape = 'u32[72,128]{1,0:T(1,128)}', space=vmem, size = 0x9000, scoped, tag = 'internal scratch']
  #allocation2 [shape = 'f32[18,25,128]{2,1,0:T(8,128)}', space=vmem, size = 0x48000, scoped, tag = 'scratch operand']
  %s0 = inlined_call_operand.vmem [shape: f32[2,16,16,4], index: 0, kind: input, shape index: {}]
  %s1 = inlined_call_operand.hbm [shape: f32[3,384,128], index: 1, kind: input, shape index: {}]
  %s2 = inlined_call_operand.vmem [shape: f32[1,128], index: 2, kind: input, shape index: {}]
  %s3 = inlined_call_operand.hbm [shape: f32[3,384,128], index: 3, kind: input, shape index: {}]
  %s4 = inlined_call_operand.vmem [shape: f32[1,128], index: 4, kind: input, shape index: {}]
  %s5 = inlined_call_operand.vmem [shape: f32[2,16,16,4], index: 5, kind: output, shape index: {}]
  %s6 = sld [smem:[#allocation0]]
  $region61: #{tpu_custom_call.1} parent=0
    _
  %s8 = ssub.s32 1, %s6
  %s9 = scalar_select 0, %s8, %s6
  $region1: #{tpu_custom_call.1} parent=0
    #allocation3 [shape = 'u8[589824]{0}', space=vmem, size = 0x90000, scoped, tag = 'input window, operand 1, single buffered']
    #allocation4 [shape = 's32[2]{0}', space=sflag, size = 0x8, scoped, tag = 'scoped memory for tpu_custom_call.1']
    #allocation5 [shape = 'u8[589824]{0}', space=vmem, size = 0x90000, scoped, tag = 'input window, operand 3, single buffered']
    #allocation6 [shape = 's32[1]{0}', space=sflag, size = 0x4, scoped, tag = 'scoped memory for tpu_custom_call.1']
    %10 = vsyncpa [#allocation4], 0
    %11 = vsyncpa [#allocation6], 0
    loop: start=0, step=1, limit=4
    $region2: #{tpu_custom_call.1} parent=1 // loop_pre_header
      _
    $region3: #{tpu_custom_call.1} parent=1 // loop_header
      %s13 = sphi 0, %s17
      %p14 = scmp.ge.s32.totalorder %s13, 4
      %s23 = sphi 0, %s25
      %s26 = sphi 0, %s23
      %s27 = sphi 0, %s26
      %s43 = sphi 0, %s27
      %s47 = sphi 0, %s47
      %s49 = sphi 0, %s47
      %s50 = sphi 0, %s49
      %s64 = sphi 0, %s50
      %s68 = sphi 0, %s68
      %s70 = sphi 0, %s68
      %s71 = sphi 0, %s70
      %s85 = sphi 0, %s71
      %s89 = sphi 0, %s89
      %s91 = sphi 0, %s89
      %s92 = sphi 0, %s91
      %s106 = sphi 0, %s92
      %s110 = sphi 0, %s110
      %s112 = sphi 0, %s110
      %s113 = sphi 0, %s112
      %s127 = sphi 0, %s113
      %s133 = sphi 0, %s135
      %s136 = sphi 0, %s133
      %s137 = sphi 0, %s136
      %s153 = sphi 0, %s137
    $region4: #{tpu_custom_call.1} parent=1 // loop_header_branch
      %16 = sbr.rel (%p14) target = $region8
    $region5: #{tpu_custom_call.1} parent=1 // loop_body
      %s18 = ssub.s32 %s13, 1
      %s19 = ssub.s32 %s13, 2
      %s20 = sadd.s32 %s13, 1
      %s21 = ssub.s32 %s13, %s20
      %p22 = scmp.eq.s32.totalorder %s21, 0
      %s24 = sadd.s32 %s23, 1
      %s25 = scalar_select %p22, %s23, %s24
      %p28 = pneg %p22
      %p29 = scmp.eq.s32.totalorder %s13, 1
      %p30 = por %p28, %p29
      %p31 = scmp.ne.s32.totalorder %s23, %s26
      %p32 = scmp.eq.s32.totalorder %s13, 0
      %p33 = por %p31, %p32
      %p34 = scmp.ne.s32.totalorder %s23, %s26
      %p35 = scmp.eq.s32.totalorder %s18, 1
      %p36 = por %p34, %p35
      %p37 = scmp.ne.s32.totalorder %s26, %s27
      %p38 = scmp.eq.s32.totalorder %s18, 0
      %p39 = por %p37, %p38
      %p40 = scmp.ne.s32.totalorder %s26, %s27
      %p41 = scmp.eq.s32.totalorder %s19, 1
      %p42 = por %p40, %p41
      %p44 = scmp.ne.s32.totalorder %s27, %s43
      %p45 = scmp.eq.s32.totalorder %s19, 0
      %p46 = por %p44, %p45
      %s48 = sadd.s32 %s47, 1
      %p51 = scmp.eq.s32.totalorder %s13, 1
      %p52 = scmp.ne.s32.totalorder %s47, %s49
      %p53 = scmp.eq.s32.totalorder %s13, 0
      %p54 = por %p52, %p53
      %p55 = scmp.ne.s32.totalorder %s47, %s49
      %p56 = scmp.eq.s32.totalorder %s18, 1
      %p57 = por %p55, %p56
      %p58 = scmp.ne.s32.totalorder %s49, %s50
      %p59 = scmp.eq.s32.totalorder %s18, 0
      %p60 = por %p58, %p59
      %p61 = scmp.ne.s32.totalorder %s49, %s50
      %p62 = scmp.eq.s32.totalorder %s19, 1
      %p63 = por %p61, %p62
      %p65 = scmp.ne.s32.totalorder %s50, %s64
      %p66 = scmp.eq.s32.totalorder %s19, 0
      %p67 = por %p65, %p66
      %s69 = sadd.s32 %s68, 1
      %p72 = scmp.eq.s32.totalorder %s13, 1
      %p73 = scmp.ne.s32.totalorder %s68, %s70
      %p74 = scmp.eq.s32.totalorder %s13, 0
      %p75 = por %p73, %p74
      %p76 = scmp.ne.s32.totalorder %s68, %s70
      %p77 = scmp.eq.s32.totalorder %s18, 1
      %p78 = por %p76, %p77
      %p79 = scmp.ne.s32.totalorder %s70, %s71
      %p80 = scmp.eq.s32.totalorder %s18, 0
      %p81 = por %p79, %p80
      %p82 = scmp.ne.s32.totalorder %s70, %s71
      %p83 = scmp.eq.s32.totalorder %s19, 1
      %p84 = por %p82, %p83
      %p86 = scmp.ne.s32.totalorder %s71, %s85
      %p87 = scmp.eq.s32.totalorder %s19, 0
      %p88 = por %p86, %p87
      %s90 = sadd.s32 %s89, 1
      %p93 = scmp.eq.s32.totalorder %s13, 1
      %p94 = scmp.ne.s32.totalorder %s89, %s91
      %p95 = scmp.eq.s32.totalorder %s13, 0
      %p96 = por %p94, %p95
      %p97 = scmp.ne.s32.totalorder %s89, %s91
      %p98 = scmp.eq.s32.totalorder %s18, 1
      %p99 = por %p97, %p98
      %p100 = scmp.ne.s32.totalorder %s91, %s92
      %p101 = scmp.eq.s32.totalorder %s18, 0
      %p102 = por %p100, %p101
      %p103 = scmp.ne.s32.totalorder %s91, %s92
      %p104 = scmp.eq.s32.totalorder %s19, 1
      %p105 = por %p103, %p104
      %p107 = scmp.ne.s32.totalorder %s92, %s106
      %p108 = scmp.eq.s32.totalorder %s19, 0
      %p109 = por %p107, %p108
      %s111 = sadd.s32 %s110, 1
      %p114 = scmp.eq.s32.totalorder %s13, 1
      %p115 = scmp.ne.s32.totalorder %s110, %s112
      %p116 = scmp.eq.s32.totalorder %s13, 0
      %p117 = por %p115, %p116
      %p118 = scmp.ne.s32.totalorder %s110, %s112
      %p119 = scmp.eq.s32.totalorder %s18, 1
      %p120 = por %p118, %p119
      %p121 = scmp.ne.s32.totalorder %s112, %s113
      %p122 = scmp.eq.s32.totalorder %s18, 0
      %p123 = por %p121, %p122
      %p124 = scmp.ne.s32.totalorder %s112, %s113
      %p125 = scmp.eq.s32.totalorder %s19, 1
      %p126 = por %p124, %p125
      %p128 = scmp.ne.s32.totalorder %s113, %s127
      %p129 = scmp.eq.s32.totalorder %s19, 0
      %p130 = por %p128, %p129
      %s131 = ssub.s32 %s13, %s20
      %p132 = scmp.eq.s32.totalorder %s131, 0
      %s134 = sadd.s32 %s133, 1
      %s135 = scalar_select %p132, %s133, %s134
      %p138 = pneg %p132
      %p139 = scmp.eq.s32.totalorder %s13, 1
      %p140 = por %p138, %p139
      %p141 = scmp.ne.s32.totalorder %s133, %s136
      %p142 = scmp.eq.s32.totalorder %s13, 0
      %p143 = por %p141, %p142
      %p144 = scmp.ne.s32.totalorder %s133, %s136
      %p145 = scmp.eq.s32.totalorder %s18, 1
      %p146 = por %p144, %p145
      %p147 = scmp.ne.s32.totalorder %s136, %s137
      %p148 = scmp.eq.s32.totalorder %s18, 0
      %p149 = por %p147, %p148
      %p150 = scmp.ne.s32.totalorder %s136, %s137
      %p151 = scmp.eq.s32.totalorder %s19, 1
      %p152 = por %p150, %p151
      %p154 = scmp.ne.s32.totalorder %s137, %s153
      %p155 = scmp.eq.s32.totalorder %s19, 0
      %p156 = por %p154, %p155
      %p157 = scmp.le.s32.totalorder 1, %s13
      %p158 = scmp.lt.s32.totalorder %s13, 3
      %p159 = pnand %p157, %p158
      %p160 = pneg %p159
      // Predicated region
      $region9: #{tpu_custom_call.1} parent=5 // pred_check
        _
      $region10: #{tpu_custom_call.1} parent=5 // pred_check_branch
        %162 = sbr.rel (%p159) target = $region12
      $region11: #{tpu_custom_call.1} parent=5 // pred_region
        %s163 = ssub.s32 %s13, 1
        // Predicated region
        $region13: #{tpu_custom_call.1} parent=11 // pred_check
          %p164 = pneg %p60
        $region14: #{tpu_custom_call.1} parent=11 // pred_check_branch
          %166 = sbr.rel (%p164) target = $region16
        $region15: #{tpu_custom_call.1} parent=11 // pred_region
          %168 = vsyncadd [#allocation4], 0
          %s169 = sshll.u32 %s1, 4
          %s170 = int_to_ptr.hbm [resolvable:$true] %s169
          %s171 = sshll.u32 [#allocation3], 4
          %s172 = int_to_ptr.vmem [resolvable:$true] %s171
          %177 = dma.hbm_to_vmem [thread:$0]  %s170, 18432, %s172, [#allocation4], 128, 128, 8
        $region16: #{tpu_custom_call.1} parent=11 // pred_fallthru
          _
        // Predicated region
        $region17: #{tpu_custom_call.1} parent=11 // pred_check
          %p178 = pneg %p81
        $region18: #{tpu_custom_call.1} parent=11 // pred_check_branch
          %180 = sbr.rel (%p178) target = $region20
        $region19: #{tpu_custom_call.1} parent=11 // pred_region
          _
        $region20: #{tpu_custom_call.1} parent=11 // pred_fallthru
          _
        // Predicated region
        $region21: #{tpu_custom_call.1} parent=11 // pred_check
          %p181 = pneg %p102
        $region22: #{tpu_custom_call.1} parent=11 // pred_check_branch
          %183 = sbr.rel (%p181) target = $region24
        $region23: #{tpu_custom_call.1} parent=11 // pred_region
          %185 = vsyncadd [#allocation6], 0
          %s186 = sshll.u32 %s3, 4
          %s187 = int_to_ptr.hbm [resolvable:$true] %s186
          %s188 = sshll.u32 [#allocation5], 4
          %s189 = int_to_ptr.vmem [resolvable:$true] %s188
          %194 = dma.hbm_to_vmem [thread:$0]  %s187, 18432, %s189, [#allocation6], 128, 128, 8
        $region24: #{tpu_custom_call.1} parent=11 // pred_fallthru
          _
        // Predicated region
        $region25: #{tpu_custom_call.1} parent=11 // pred_check
          %p195 = pneg %p123
        $region26: #{tpu_custom_call.1} parent=11 // pred_check_branch
          %197 = sbr.rel (%p195) target = $region28
        $region27: #{tpu_custom_call.1} parent=11 // pred_region
          _
        $region28: #{tpu_custom_call.1} parent=11 // pred_fallthru
          _
      $region12: #{tpu_custom_call.1} parent=5 // pred_fallthru
        _
      %p198 = scmp.lt.s32.totalorder %s13, 2
      // Predicated region
      $region29: #{tpu_custom_call.1} parent=5 // pred_check
        %p199 = pneg %p198
      $region30: #{tpu_custom_call.1} parent=5 // pred_check_branch
        %201 = sbr.rel (%p199) target = $region32
      $region31: #{tpu_custom_call.1} parent=5 // pred_region
        // Predicated region
        $region33: #{tpu_custom_call.1} parent=31 // pred_check
          %p202 = pneg %p33
        $region34: #{tpu_custom_call.1} parent=31 // pred_check_branch
          %204 = sbr.rel (%p202) target = $region36
        $region35: #{tpu_custom_call.1} parent=31 // pred_region
          %p205 = scmp.lt.s32.totalorder %s13, 1
          %s206 = scalar_select %p205, %s13, 1
          %s207 = smul.addr %s206, 32
          %s208 = smul.addr %s207, 8
          %s209 = scalar_lea.vmem %s0, %s208
        $region36: #{tpu_custom_call.1} parent=31 // pred_fallthru
          _
      $region32: #{tpu_custom_call.1} parent=5 // pred_fallthru
        _
      %p210 = scmp.le.s32.totalorder 1, %s13
      %p211 = scmp.lt.s32.totalorder %s13, 3
      %p212 = pnand %p210, %p211
      %p213 = pneg %p212
      // Predicated region
      $region37: #{tpu_custom_call.1} parent=5 // pred_check
        _
      $region38: #{tpu_custom_call.1} parent=5 // pred_check_branch
        %215 = sbr.rel (%p212) target = $region40
      $region39: #{tpu_custom_call.1} parent=5 // pred_region
        %s216 = ssub.s32 %s13, 1
        // Predicated region
        $region41: #{tpu_custom_call.1} parent=39 // pred_check
          %p217 = pneg %p60
        $region42: #{tpu_custom_call.1} parent=39 // pred_check_branch
          %219 = sbr.rel (%p217) target = $region44
        $region43: #{tpu_custom_call.1} parent=39 // pred_region
          %221 = dma.done [#allocation4], 18432
        $region44: #{tpu_custom_call.1} parent=39 // pred_fallthru
          _
        // Predicated region
        $region45: #{tpu_custom_call.1} parent=39 // pred_check
          %p222 = pneg %p102
        $region46: #{tpu_custom_call.1} parent=39 // pred_check_branch
          %224 = sbr.rel (%p222) target = $region48
        $region47: #{tpu_custom_call.1} parent=39 // pred_region
          %226 = dma.done [#allocation6], 18432
        $region48: #{tpu_custom_call.1} parent=39 // pred_fallthru
          _
        %p227 = scmp.lt.s32.totalorder %s18, 1
        %s228 = scalar_select %p227, %s18, 1
        %s229 = smul.addr %s228, 32
        %s230 = smul.addr %s229, 8
        %s231 = scalar_lea.vmem %s0, %s230
        %p232 = pneg %p39
        %p233 = pneg %p36
        %p234 = pneg %p60
        %p235 = pneg %p57
        %p236 = pneg %p81
        %p237 = pneg %p78
        %p238 = pneg %p102
        %p239 = pneg %p99
        %p240 = pneg %p123
        %p241 = pneg %p120
        %p242 = pneg %p149
        %p243 = pneg %p146
        %p244 = scmp.lt.s32.totalorder %s18, 1
        %s245 = scalar_select %p244, %s18, 1
        %s246 = smul.addr %s245, 32
        %s247 = smul.addr %s246, 8
        %s248 = scalar_lea.vmem %s5, %s247
        %p249 = scmp.lt.s32.totalorder %s18, 1
        %s250 = scalar_select %p249, %s18, 1
        %s251 = smul.addr %s250, 32
        %s252 = smul.addr %s251, 8
        %s253 = scalar_lea.vmem %s0, %s252
        %p254 = scmp.lt.s32.totalorder %s18, 1
        %s255 = scalar_select %p254, %s18, 1
        %s256 = smul.addr %s255, 32
        %s257 = smul.addr %s256, 8
        %s258 = scalar_lea.vmem %s5, %s257
        %259 = vst [vmem:[#allocation2] sm:$0xff] 0.0
        %260 = vst [vmem:[#allocation2 + $0x8] sm:$0xff] 0.0
        %261 = vst [vmem:[#allocation2 + $0x10] sm:$0xff] 0.0
        %262 = vst [vmem:[#allocation2 + $0x18] sm:$0x1] 0.0
        %s263 = scalar_lea.vmem [#allocation2], 544
        %264 = vst [vmem:[%s263] sm:$0xff] 0.0
        %265 = vst [vmem:[%s263 + $0x8] sm:$0xff] 0.0
        %266 = vst [vmem:[%s263 + $0x10] sm:$0xff] 0.0
        %267 = vst [vmem:[%s263 + $0x18] sm:$0x1] 0.0
        %268 = vst [vmem:[#allocation2 + $0x7] sm:$0x1] 0.0
        %269 = vst [vmem:[#allocation2 + $0x27] sm:$0x1] 0.0
        %270 = vst [vmem:[#allocation2 + $0x47] sm:$0x1] 0.0
        %271 = vst [vmem:[#allocation2 + $0x67] sm:$0x1] 0.0
        %272 = vst [vmem:[#allocation2 + $0x87] sm:$0x1] 0.0
        %273 = vst [vmem:[#allocation2 + $0xa7] sm:$0x1] 0.0
        %274 = vst [vmem:[#allocation2 + $0xc7] sm:$0x1] 0.0
        %275 = vst [vmem:[#allocation2 + $0xe7] sm:$0x1] 0.0
        %276 = vst [vmem:[#allocation2 + $0x107] sm:$0x1] 0.0
        %277 = vst [vmem:[#allocation2 + $0x127] sm:$0x1] 0.0
        %278 = vst [vmem:[#allocation2 + $0x147] sm:$0x1] 0.0
        %279 = vst [vmem:[#allocation2 + $0x167] sm:$0x1] 0.0
        %280 = vst [vmem:[#allocation2 + $0x187] sm:$0x1] 0.0
        %281 = vst [vmem:[#allocation2 + $0x1a7] sm:$0x1] 0.0
        %282 = vst [vmem:[#allocation2 + $0x1c7] sm:$0x1] 0.0
        %283 = vst [vmem:[#allocation2 + $0x1e7] sm:$0x1] 0.0
        %284 = vst [vmem:[#allocation2 + $0x207] sm:$0x1] 0.0
        %285 = vst [vmem:[#allocation2 + $0x227] sm:$0x1] 0.0
        %286 = vst [vmem:[#allocation2 + $0x18] sm:$0x1] 0.0
        %287 = vst [vmem:[#allocation2 + $0x38] sm:$0x1] 0.0
        %288 = vst [vmem:[#allocation2 + $0x58] sm:$0x1] 0.0
        %289 = vst [vmem:[#allocation2 + $0x78] sm:$0x1] 0.0
        %290 = vst [vmem:[#allocation2 + $0x98] sm:$0x1] 0.0
        %291 = vst [vmem:[#allocation2 + $0xb8] sm:$0x1] 0.0
        %292 = vst [vmem:[#allocation2 + $0xd8] sm:$0x1] 0.0
        %293 = vst [vmem:[#allocation2 + $0xf8] sm:$0x1] 0.0
        %294 = vst [vmem:[#allocation2 + $0x118] sm:$0x1] 0.0
        %295 = vst [vmem:[#allocation2 + $0x138] sm:$0x1] 0.0
        %296 = vst [vmem:[#allocation2 + $0x158] sm:$0x1] 0.0
        %297 = vst [vmem:[#allocation2 + $0x178] sm:$0x1] 0.0
        %298 = vst [vmem:[#allocation2 + $0x198] sm:$0x1] 0.0
        %299 = vst [vmem:[#allocation2 + $0x1b8] sm:$0x1] 0.0
        %300 = vst [vmem:[#allocation2 + $0x1d8] sm:$0x1] 0.0
        %301 = vst [vmem:[#allocation2 + $0x1f8] sm:$0x1] 0.0
        %302 = vst [vmem:[#allocation2 + $0x218] sm:$0x1] 0.0
        %303 = vst [vmem:[#allocation2 + $0x238] sm:$0x1] 0.0
        %v304 = vld [vmem:[%s253] sm:$0xff]
        %v305 = vld [vmem:[%s253 + $0x8] sm:$0xff]
        %v306 = vld [vmem:[%s253 + $0x10] sm:$0xff]
        %v307 = vld [vmem:[%s253 + $0x18] sm:$0xff]
        %v308 = vld [vmem:[%s253 + $0x20] sm:$0xff]
        %v309 = vld [vmem:[%s253 + $0x28] sm:$0xff]
        %v310 = vld [vmem:[%s253 + $0x30] sm:$0xff]
        %v311 = vld [vmem:[%s253 + $0x38] sm:$0xff]
        %v312 = vld [vmem:[%s253 + $0x40] sm:$0xff]
        %v313 = vld [vmem:[%s253 + $0x48] sm:$0xff]
        %v314 = vld [vmem:[%s253 + $0x50] sm:$0xff]
        %v315 = vld [vmem:[%s253 + $0x58] sm:$0xff]
        %v316 = vld [vmem:[%s253 + $0x60] sm:$0xff]
        %v317 = vld [vmem:[%s253 + $0x68] sm:$0xff]
        %v318 = vld [vmem:[%s253 + $0x70] sm:$0xff]
        %v319 = vld [vmem:[%s253 + $0x78] sm:$0xff]
        %v320 = vld [vmem:[%s253 + $0x80] sm:$0xff]
        %v321 = vld [vmem:[%s253 + $0x88] sm:$0xff]
        %v322 = vld [vmem:[%s253 + $0x90] sm:$0xff]
        %v323 = vld [vmem:[%s253 + $0x98] sm:$0xff]
        %v324 = vld [vmem:[%s253 + $0xa0] sm:$0xff]
        %v325 = vld [vmem:[%s253 + $0xa8] sm:$0xff]
        %v326 = vld [vmem:[%s253 + $0xb0] sm:$0xff]
        %v327 = vld [vmem:[%s253 + $0xb8] sm:$0xff]
        %v328 = vld [vmem:[%s253 + $0xc0] sm:$0xff]
        %v329 = vld [vmem:[%s253 + $0xc8] sm:$0xff]
        %v330 = vld [vmem:[%s253 + $0xd0] sm:$0xff]
        %v331 = vld [vmem:[%s253 + $0xd8] sm:$0xff]
        %v332 = vld [vmem:[%s253 + $0xe0] sm:$0xff]
        %v333 = vld [vmem:[%s253 + $0xe8] sm:$0xff]
        %v334 = vld [vmem:[%s253 + $0xf0] sm:$0xff]
        %v335 = vld [vmem:[%s253 + $0xf8] sm:$0xff]
        %vm336 = vcmask 31744
        %v337 = vsel %vm336, %v304, 0.0
        %v338 = vsel %vm336, %v305, 0.0
        %v339 = vsel %vm336, %v306, 0.0
        %v340 = vsel %vm336, %v307, 0.0
        %v341 = vsel %vm336, %v308, 0.0
        %v342 = vsel %vm336, %v309, 0.0
        %v343 = vsel %vm336, %v310, 0.0
        %v344 = vsel %vm336, %v311, 0.0
        %v345 = vsel %vm336, %v312, 0.0
        %v346 = vsel %vm336, %v313, 0.0
        %v347 = vsel %vm336, %v314, 0.0
        %v348 = vsel %vm336, %v315, 0.0
        %v349 = vsel %vm336, %v316, 0.0
        %v350 = vsel %vm336, %v317, 0.0
        %v351 = vsel %vm336, %v318, 0.0
        %v352 = vsel %vm336, %v319, 0.0
        %v353 = vsel %vm336, %v320, 0.0
        %v354 = vsel %vm336, %v321, 0.0
        %v355 = vsel %vm336, %v322, 0.0
        %v356 = vsel %vm336, %v323, 0.0
        %v357 = vsel %vm336, %v324, 0.0
        %v358 = vsel %vm336, %v325, 0.0
        %v359 = vsel %vm336, %v326, 0.0
        %v360 = vsel %vm336, %v327, 0.0
        %v361 = vsel %vm336, %v328, 0.0
        %v362 = vsel %vm336, %v329, 0.0
        %v363 = vsel %vm336, %v330, 0.0
        %v364 = vsel %vm336, %v331, 0.0
        %v365 = vsel %vm336, %v332, 0.0
        %v366 = vsel %vm336, %v333, 0.0
        %v367 = vsel %vm336, %v334, 0.0
        %v368 = vsel %vm336, %v335, 0.0
        %s369 = scalar_lea.vmem [#allocation2], 32
        %370 = vst [vmem:[%s369 + $0x8] sm:$0xff] %v337
        %371 = vst [vmem:[%s369 + $0x10] sm:$0xff] %v338
        %372 = vst [vmem:[%s369 + $0x28] sm:$0xff] %v339
        %373 = vst [vmem:[%s369 + $0x30] sm:$0xff] %v340
        %374 = vst [vmem:[%s369 + $0x48] sm:$0xff] %v341
        %375 = vst [vmem:[%s369 + $0x50] sm:$0xff] %v342
        %376 = vst [vmem:[%s369 + $0x68] sm:$0xff] %v343
        %377 = vst [vmem:[%s369 + $0x70] sm:$0xff] %v344
        %378 = vst [vmem:[%s369 + $0x88] sm:$0xff] %v345
        %379 = vst [vmem:[%s369 + $0x90] sm:$0xff] %v346
        %380 = vst [vmem:[%s369 + $0xa8] sm:$0xff] %v347
        %381 = vst [vmem:[%s369 + $0xb0] sm:$0xff] %v348
        %382 = vst [vmem:[%s369 + $0xc8] sm:$0xff] %v349
        %383 = vst [vmem:[%s369 + $0xd0] sm:$0xff] %v350
        %384 = vst [vmem:[%s369 + $0xe8] sm:$0xff] %v351
        %385 = vst [vmem:[%s369 + $0xf0] sm:$0xff] %v352
        %386 = vst [vmem:[%s369 + $0x108] sm:$0xff] %v353
        %387 = vst [vmem:[%s369 + $0x110] sm:$0xff] %v354
        %388 = vst [vmem:[%s369 + $0x128] sm:$0xff] %v355
        %389 = vst [vmem:[%s369 + $0x130] sm:$0xff] %v356
        %390 = vst [vmem:[%s369 + $0x148] sm:$0xff] %v357
        %391 = vst [vmem:[%s369 + $0x150] sm:$0xff] %v358
        %392 = vst [vmem:[%s369 + $0x168] sm:$0xff] %v359
        %393 = vst [vmem:[%s369 + $0x170] sm:$0xff] %v360
        %394 = vst [vmem:[%s369 + $0x188] sm:$0xff] %v361
        %395 = vst [vmem:[%s369 + $0x190] sm:$0xff] %v362
        %396 = vst [vmem:[%s369 + $0x1a8] sm:$0xff] %v363
        %397 = vst [vmem:[%s369 + $0x1b0] sm:$0xff] %v364
        %398 = vst [vmem:[%s369 + $0x1c8] sm:$0xff] %v365
        %399 = vst [vmem:[%s369 + $0x1d0] sm:$0xff] %v366
        %400 = vst [vmem:[%s369 + $0x1e8] sm:$0xff] %v367
        %401 = vst [vmem:[%s369 + $0x1f0] sm:$0xff] %v368
        %v402 = vld [vmem:[#allocation2 + $0x7] sm:$0xff]
        %v403 = vld [vmem:[#allocation2 + $0xf] sm:$0xff]
        %v404 = vld [vmem:[#allocation2 + $0x27] sm:$0xff]
        %v405 = vld [vmem:[#allocation2 + $0x2f] sm:$0xff]
        %v406 = vld [vmem:[#allocation2 + $0x47] sm:$0xff]
        %v407 = vld [vmem:[#allocation2 + $0x4f] sm:$0xff]
        %v408 = vld [vmem:[#allocation2 + $0x67] sm:$0xff]
        %v409 = vld [vmem:[#allocation2 + $0x6f] sm:$0xff]
        %v410 = vld [vmem:[#allocation2 + $0x87] sm:$0xff]
        %v411 = vld [vmem:[#allocation2 + $0x8f] sm:$0xff]
        %v412 = vld [vmem:[#allocation2 + $0xa7] sm:$0xff]
        %v413 = vld [vmem:[#allocation2 + $0xaf] sm:$0xff]
        %v414 = vld [vmem:[#allocation2 + $0xc7] sm:$0xff]
        %v415 = vld [vmem:[#allocation2 + $0xcf] sm:$0xff]
        %v416 = vld [vmem:[#allocation2 + $0xe7] sm:$0xff]
        %v417 = vld [vmem:[#allocation2 + $0xef] sm:$0xff]
        %v418 = vld [vmem:[#allocation2 + $0x107] sm:$0xff]
        %v419 = vld [vmem:[#allocation2 + $0x10f] sm:$0xff]
        %v420 = vld [vmem:[#allocation2 + $0x127] sm:$0xff]
        %v421 = vld [vmem:[#allocation2 + $0x12f] sm:$0xff]
        %v422 = vld [vmem:[#allocation2 + $0x147] sm:$0xff]
        %v423 = vld [vmem:[#allocation2 + $0x14f] sm:$0xff]
        %v424 = vld [vmem:[#allocation2 + $0x167] sm:$0xff]
        %v425 = vld [vmem:[#allocation2 + $0x16f] sm:$0xff]
        %v426 = vld [vmem:[#allocation2 + $0x187] sm:$0xff]
        %v427 = vld [vmem:[#allocation2 + $0x18f] sm:$0xff]
        %v428 = vld [vmem:[#allocation2 + $0x1a7] sm:$0xff]
        %v429 = vld [vmem:[#allocation2 + $0x1af] sm:$0xff]
        %v430 = vld [vmem:[#allocation2 + $0x1c7] sm:$0xff]
        %v431 = vld [vmem:[#allocation2 + $0x1cf] sm:$0xff]
        %v432 = vld [vmem:[#allocation2 + $0x1e7] sm:$0xff]
        %v433 = vld [vmem:[#allocation2 + $0x1ef] sm:$0xff]
        %v434 = vld [vmem:[#allocation2 + $0x207] sm:$0xff]
        %v435 = vld [vmem:[#allocation2 + $0x20f] sm:$0xff]
        %v436 = vld [vmem:[#allocation2 + $0x227] sm:$0xff]
        %v437 = vld [vmem:[#allocation2 + $0x22f] sm:$0xff]
        %v438 = vld [vmem:[#allocation2 + $0x8] sm:$0xff]
        %v439 = vld [vmem:[#allocation2 + $0x10] sm:$0xff]
        %v440 = vld [vmem:[#allocation2 + $0x28] sm:$0xff]
        %v441 = vld [vmem:[#allocation2 + $0x30] sm:$0xff]
        %v442 = vld [vmem:[#allocation2 + $0x48] sm:$0xff]
        %v443 = vld [vmem:[#allocation2 + $0x50] sm:$0xff]
        %v444 = vld [vmem:[#allocation2 + $0x68] sm:$0xff]
        %v445 = vld [vmem:[#allocation2 + $0x70] sm:$0xff]
        %v446 = vld [vmem:[#allocation2 + $0x88] sm:$0xff]
        %v447 = vld [vmem:[#allocation2 + $0x90] sm:$0xff]
        %v448 = vld [vmem:[#allocation2 + $0xa8] sm:$0xff]
        %v449 = vld [vmem:[#allocation2 + $0xb0] sm:$0xff]
        %v450 = vld [vmem:[#allocation2 + $0xc8] sm:$0xff]
        %v451 = vld [vmem:[#allocation2 + $0xd0] sm:$0xff]
        %v452 = vld [vmem:[#allocation2 + $0xe8] sm:$0xff]
        %v453 = vld [vmem:[#allocation2 + $0xf0] sm:$0xff]
        %v454 = vld [vmem:[#allocation2 + $0x108] sm:$0xff]
        %v455 = vld [vmem:[#allocation2 + $0x110] sm:$0xff]
        %v456 = vld [vmem:[#allocation2 + $0x128] sm:$0xff]
        %v457 = vld [vmem:[#allocation2 + $0x130] sm:$0xff]
        %v458 = vld [vmem:[#allocation2 + $0x148] sm:$0xff]
        %v459 = vld [vmem:[#allocation2 + $0x150] sm:$0xff]
        %v460 = vld [vmem:[#allocation2 + $0x168] sm:$0xff]
        %v461 = vld [vmem:[#allocation2 + $0x170] sm:$0xff]
        %v462 = vld [vmem:[#allocation2 + $0x188] sm:$0xff]
        %v463 = vld [vmem:[#allocation2 + $0x190] sm:$0xff]
        %v464 = vld [vmem:[#allocation2 + $0x1a8] sm:$0xff]
        %v465 = vld [vmem:[#allocation2 + $0x1b0] sm:$0xff]
        %v466 = vld [vmem:[#allocation2 + $0x1c8] sm:$0xff]
        %v467 = vld [vmem:[#allocation2 + $0x1d0] sm:$0xff]
        %v468 = vld [vmem:[#allocation2 + $0x1e8] sm:$0xff]
        %v469 = vld [vmem:[#allocation2 + $0x1f0] sm:$0xff]
        %v470 = vld [vmem:[#allocation2 + $0x208] sm:$0xff]
        %v471 = vld [vmem:[#allocation2 + $0x210] sm:$0xff]
        %v472 = vld [vmem:[#allocation2 + $0x228] sm:$0xff]
        %v473 = vld [vmem:[#allocation2 + $0x230] sm:$0xff]
        %v474 = vld [vmem:[#allocation2 + $0x9] sm:$0xff]
        %v475 = vld [vmem:[#allocation2 + $0x11] sm:$0xff]
        %v476 = vld [vmem:[#allocation2 + $0x29] sm:$0xff]
        %v477 = vld [vmem:[#allocation2 + $0x31] sm:$0xff]
        %v478 = vld [vmem:[#allocation2 + $0x49] sm:$0xff]
        %v479 = vld [vmem:[#allocation2 + $0x51] sm:$0xff]
        %v480 = vld [vmem:[#allocation2 + $0x69] sm:$0xff]
        %v481 = vld [vmem:[#allocation2 + $0x71] sm:$0xff]
        %v482 = vld [vmem:[#allocation2 + $0x89] sm:$0xff]
        %v483 = vld [vmem:[#allocation2 + $0x91] sm:$0xff]
        %v484 = vld [vmem:[#allocation2 + $0xa9] sm:$0xff]
        %v485 = vld [vmem:[#allocation2 + $0xb1] sm:$0xff]
        %v486 = vld [vmem:[#allocation2 + $0xc9] sm:$0xff]
        %v487 = vld [vmem:[#allocation2 + $0xd1] sm:$0xff]
        %v488 = vld [vmem:[#allocation2 + $0xe9] sm:$0xff]
        %v489 = vld [vmem:[#allocation2 + $0xf1] sm:$0xff]
        %v490 = vld [vmem:[#allocation2 + $0x109] sm:$0xff]
        %v491 = vld [vmem:[#allocation2 + $0x111] sm:$0xff]
        %v492 = vld [vmem:[#allocation2 + $0x129] sm:$0xff]
        %v493 = vld [vmem:[#allocation2 + $0x131] sm:$0xff]
        %v494 = vld [vmem:[#allocation2 + $0x149] sm:$0xff]
        %v495 = vld [vmem:[#allocation2 + $0x151] sm:$0xff]
        %v496 = vld [vmem:[#allocation2 + $0x169] sm:$0xff]
        %v497 = vld [vmem:[#allocation2 + $0x171] sm:$0xff]
        %v498 = vld [vmem:[#allocation2 + $0x189] sm:$0xff]
        %v499 = vld [vmem:[#allocation2 + $0x191] sm:$0xff]
        %v500 = vld [vmem:[#allocation2 + $0x1a9] sm:$0xff]
        %v501 = vld [vmem:[#allocation2 + $0x1b1] sm:$0xff]
        %v502 = vld [vmem:[#allocation2 + $0x1c9] sm:$0xff]
        %v503 = vld [vmem:[#allocation2 + $0x1d1] sm:$0xff]
        %v504 = vld [vmem:[#allocation2 + $0x1e9] sm:$0xff]
        %v505 = vld [vmem:[#allocation2 + $0x1f1] sm:$0xff]
        %v506 = vld [vmem:[#allocation2 + $0x209] sm:$0xff]
        %v507 = vld [vmem:[#allocation2 + $0x211] sm:$0xff]
        %v508 = vld [vmem:[#allocation2 + $0x229] sm:$0xff]
        %v509 = vld [vmem:[#allocation2 + $0x231] sm:$0xff]
        %v510 = vld [vmem:[#allocation3] sm:$0xff]
        %v511 = vld [vmem:[#allocation3 + $0x8] sm:$0xff]
        %v512 = vld [vmem:[#allocation3 + $0x10] sm:$0xff]
        %v513 = vld [vmem:[#allocation3 + $0x18] sm:$0xff]
        %v514 = vld [vmem:[#allocation3 + $0x20] sm:$0xff]
        %v515 = vld [vmem:[#allocation3 + $0x28] sm:$0xff]
        %v516 = vld [vmem:[#allocation3 + $0x30] sm:$0xff]
        %v517 = vld [vmem:[#allocation3 + $0x38] sm:$0xff]
        %v518 = vld [vmem:[#allocation3 + $0x40] sm:$0xff]
        %v519 = vld [vmem:[#allocation3 + $0x48] sm:$0xff]
        %v520 = vld [vmem:[#allocation3 + $0x50] sm:$0xff]
        %v521 = vld [vmem:[#allocation3 + $0x58] sm:$0xff]
        %v522 = vld [vmem:[#allocation3 + $0x60] sm:$0xff]
        %v523 = vld [vmem:[#allocation3 + $0x68] sm:$0xff]
        %v524 = vld [vmem:[#allocation3 + $0x70] sm:$0xff]
        %v525 = vld [vmem:[#allocation3 + $0x78] sm:$0xff]
        %v526 = vld [vmem:[#allocation3 + $0x80] sm:$0xff]
        %v527 = vld [vmem:[#allocation3 + $0x88] sm:$0xff]
        %v528 = vld [vmem:[#allocation3 + $0x90] sm:$0xff]
        %v529 = vld [vmem:[#allocation3 + $0x98] sm:$0xff]
        %v530 = vld [vmem:[#allocation3 + $0xa0] sm:$0xff]
        %v531 = vld [vmem:[#allocation3 + $0xa8] sm:$0xff]
        %v532 = vld [vmem:[#allocation3 + $0xb0] sm:$0xff]
        %v533 = vld [vmem:[#allocation3 + $0xb8] sm:$0xff]
        %v534 = vld [vmem:[#allocation3 + $0xc0] sm:$0xff]
        %v535 = vld [vmem:[#allocation3 + $0xc8] sm:$0xff]
        %v536 = vld [vmem:[#allocation3 + $0xd0] sm:$0xff]
        %v537 = vld [vmem:[#allocation3 + $0xd8] sm:$0xff]
        %v538 = vld [vmem:[#allocation3 + $0xe0] sm:$0xff]
        %v539 = vld [vmem:[#allocation3 + $0xe8] sm:$0xff]
        %v540 = vld [vmem:[#allocation3 + $0xf0] sm:$0xff]
        %v541 = vld [vmem:[#allocation3 + $0xf8] sm:$0xff]
        %v542 = vld [vmem:[#allocation3 + $0x100] sm:$0xff]
        %v543 = vld [vmem:[#allocation3 + $0x108] sm:$0xff]
        %v544 = vld [vmem:[#allocation3 + $0x110] sm:$0xff]
        %v545 = vld [vmem:[#allocation3 + $0x118] sm:$0xff]
        %v546 = vld [vmem:[#allocation3 + $0x120] sm:$0xff]
        %v547 = vld [vmem:[#allocation3 + $0x128] sm:$0xff]
        %v548 = vld [vmem:[#allocation3 + $0x130] sm:$0xff]
        %v549 = vld [vmem:[#allocation3 + $0x138] sm:$0xff]
        %v550 = vld [vmem:[#allocation3 + $0x140] sm:$0xff]
        %v551 = vld [vmem:[#allocation3 + $0x148] sm:$0xff]
        %v552 = vld [vmem:[#allocation3 + $0x150] sm:$0xff]
        %v553 = vld [vmem:[#allocation3 + $0x158] sm:$0xff]
        %v554 = vld [vmem:[#allocation3 + $0x160] sm:$0xff]
        %v555 = vld [vmem:[#allocation3 + $0x168] sm:$0xff]
        %v556 = vld [vmem:[#allocation3 + $0x170] sm:$0xff]
        %v557 = vld [vmem:[#allocation3 + $0x178] sm:$0xff]
        %s558 = scalar_lea.vmem [#allocation3], 384
        %v559 = vld [vmem:[%s558] sm:$0xff]
        %v560 = vld [vmem:[%s558 + $0x8] sm:$0xff]
        %v561 = vld [vmem:[%s558 + $0x10] sm:$0xff]
        %v562 = vld [vmem:[%s558 + $0x18] sm:$0xff]
        %v563 = vld [vmem:[%s558 + $0x20] sm:$0xff]
        %v564 = vld [vmem:[%s558 + $0x28] sm:$0xff]
        %v565 = vld [vmem:[%s558 + $0x30] sm:$0xff]
        %v566 = vld [vmem:[%s558 + $0x38] sm:$0xff]
        %v567 = vld [vmem:[%s558 + $0x40] sm:$0xff]
        %v568 = vld [vmem:[%s558 + $0x48] sm:$0xff]
        %v569 = vld [vmem:[%s558 + $0x50] sm:$0xff]
        %v570 = vld [vmem:[%s558 + $0x58] sm:$0xff]
        %v571 = vld [vmem:[%s558 + $0x60] sm:$0xff]
        %v572 = vld [vmem:[%s558 + $0x68] sm:$0xff]
        %v573 = vld [vmem:[%s558 + $0x70] sm:$0xff]
        %v574 = vld [vmem:[%s558 + $0x78] sm:$0xff]
        %v575 = vld [vmem:[%s558 + $0x80] sm:$0xff]
        %v576 = vld [vmem:[%s558 + $0x88] sm:$0xff]
        %v577 = vld [vmem:[%s558 + $0x90] sm:$0xff]
        %v578 = vld [vmem:[%s558 + $0x98] sm:$0xff]
        %v579 = vld [vmem:[%s558 + $0xa0] sm:$0xff]
        %v580 = vld [vmem:[%s558 + $0xa8] sm:$0xff]
        %v581 = vld [vmem:[%s558 + $0xb0] sm:$0xff]
        %v582 = vld [vmem:[%s558 + $0xb8] sm:$0xff]
        %v583 = vld [vmem:[%s558 + $0xc0] sm:$0xff]
        %v584 = vld [vmem:[%s558 + $0xc8] sm:$0xff]
        %v585 = vld [vmem:[%s558 + $0xd0] sm:$0xff]
        %v586 = vld [vmem:[%s558 + $0xd8] sm:$0xff]
        %v587 = vld [vmem:[%s558 + $0xe0] sm:$0xff]
        %v588 = vld [vmem:[%s558 + $0xe8] sm:$0xff]
        %v589 = vld [vmem:[%s558 + $0xf0] sm:$0xff]
        %v590 = vld [vmem:[%s558 + $0xf8] sm:$0xff]
        %v591 = vld [vmem:[%s558 + $0x100] sm:$0xff]
        %v592 = vld [vmem:[%s558 + $0x108] sm:$0xff]
        %v593 = vld [vmem:[%s558 + $0x110] sm:$0xff]
        %v594 = vld [vmem:[%s558 + $0x118] sm:$0xff]
        %v595 = vld [vmem:[%s558 + $0x120] sm:$0xff]
        %v596 = vld [vmem:[%s558 + $0x128] sm:$0xff]
        %v597 = vld [vmem:[%s558 + $0x130] sm:$0xff]
        %v598 = vld [vmem:[%s558 + $0x138] sm:$0xff]
        %v599 = vld [vmem:[%s558 + $0x140] sm:$0xff]
        %v600 = vld [vmem:[%s558 + $0x148] sm:$0xff]
        %v601 = vld [vmem:[%s558 + $0x150] sm:$0xff]
        %v602 = vld [vmem:[%s558 + $0x158] sm:$0xff]
        %v603 = vld [vmem:[%s558 + $0x160] sm:$0xff]
        %v604 = vld [vmem:[%s558 + $0x168] sm:$0xff]
        %v605 = vld [vmem:[%s558 + $0x170] sm:$0xff]
        %v606 = vld [vmem:[%s558 + $0x178] sm:$0xff]
        %607 = vmatpush.msra.mxu0 %v574
        %608 = vmatpush.msra.mxu0 %v573
        %609 = vmatpush.msra.mxu0 %v572
        %610 = vmatpush.msra.mxu0 %v571
        %611 = vmatpush.msra.mxu0 %v570
        %612 = vmatpush.msra.mxu0 %v569
        %613 = vmatpush.msra.mxu0 %v568
        %614 = vmatpush.msra.mxu0 %v567
        %615 = vmatpush.msra.mxu0 %v566
        %616 = vmatpush.msra.mxu0 %v565
        %617 = vmatpush.msra.mxu0 %v564
        %618 = vmatpush.msra.mxu0 %v563
        %619 = vmatpush.msra.mxu0 %v562
        %620 = vmatpush.msra.mxu0 %v561
        %621 = vmatpush.msra.mxu0 %v560
        %622 = vmatpush.msra.mxu0 %v559
        %623 = vmatmul.f32.gmra.mxu0 %v404
        %v624 = vpop.f32.mrf.mxu0
        %v625 = vadd.f32 0.0, %v624
        %626 = vmatmul.f32.gmra.mxu0 %v405
        %v627 = vpop.f32.mrf.mxu0
        %v628 = vadd.f32 0.0, %v627
        %629 = vmatmul.f32.gmra.mxu0 %v406
        %v630 = vpop.f32.mrf.mxu0
        %v631 = vadd.f32 0.0, %v630
        %632 = vmatmul.f32.gmra.mxu0 %v407
        %v633 = vpop.f32.mrf.mxu0
        %v634 = vadd.f32 0.0, %v633
        %635 = vmatmul.f32.gmra.mxu0 %v408
        %v636 = vpop.f32.mrf.mxu0
        %v637 = vadd.f32 0.0, %v636
        %638 = vmatmul.f32.gmra.mxu0 %v409
        %v639 = vpop.f32.mrf.mxu0
        %v640 = vadd.f32 0.0, %v639
        %641 = vmatmul.f32.gmra.mxu0 %v410
        %v642 = vpop.f32.mrf.mxu0
        %v643 = vadd.f32 0.0, %v642
        %644 = vmatmul.f32.gmra.mxu0 %v411
        %v645 = vpop.f32.mrf.mxu0
        %v646 = vadd.f32 0.0, %v645
        %647 = vmatmul.f32.gmra.mxu0 %v412
        %v648 = vpop.f32.mrf.mxu0
        %v649 = vadd.f32 0.0, %v648
        %650 = vmatmul.f32.gmra.mxu0 %v413
        %v651 = vpop.f32.mrf.mxu0
        %v652 = vadd.f32 0.0, %v651
        %653 = vmatmul.f32.gmra.mxu0 %v414
        %v654 = vpop.f32.mrf.mxu0
        %v655 = vadd.f32 0.0, %v654
        %656 = vmatmul.f32.gmra.mxu0 %v415
        %v657 = vpop.f32.mrf.mxu0
        %v658 = vadd.f32 0.0, %v657
        %659 = vmatmul.f32.gmra.mxu0 %v416
        %v660 = vpop.f32.mrf.mxu0
        %v661 = vadd.f32 0.0, %v660
        %662 = vmatmul.f32.gmra.mxu0 %v417
        %v663 = vpop.f32.mrf.mxu0
        %v664 = vadd.f32 0.0, %v663
        %665 = vmatmul.f32.gmra.mxu0 %v418
        %v666 = vpop.f32.mrf.mxu0
        %v667 = vadd.f32 0.0, %v666
        %668 = vmatmul.f32.gmra.mxu0 %v419
        %v669 = vpop.f32.mrf.mxu0
        %v670 = vadd.f32 0.0, %v669
        %671 = vmatmul.f32.gmra.mxu0 %v420
        %v672 = vpop.f32.mrf.mxu0
        %v673 = vadd.f32 0.0, %v672
        %674 = vmatmul.f32.gmra.mxu0 %v421
        %v675 = vpop.f32.mrf.mxu0
        %v676 = vadd.f32 0.0, %v675
        %677 = vmatmul.f32.gmra.mxu0 %v422
        %v678 = vpop.f32.mrf.mxu0
        %v679 = vadd.f32 0.0, %v678
        %680 = vmatmul.f32.gmra.mxu0 %v423
        %v681 = vpop.f32.mrf.mxu0
        %v682 = vadd.f32 0.0, %v681
        %683 = vmatmul.f32.gmra.mxu0 %v424
        %v684 = vpop.f32.mrf.mxu0
        %v685 = vadd.f32 0.0, %v684
        %686 = vmatmul.f32.gmra.mxu0 %v425
        %v687 = vpop.f32.mrf.mxu0
        %v688 = vadd.f32 0.0, %v687
        %689 = vmatmul.f32.gmra.mxu0 %v426
        %v690 = vpop.f32.mrf.mxu0
        %v691 = vadd.f32 0.0, %v690
        %692 = vmatmul.f32.gmra.mxu0 %v427
        %v693 = vpop.f32.mrf.mxu0
        %v694 = vadd.f32 0.0, %v693
        %695 = vmatmul.f32.gmra.mxu0 %v428
        %v696 = vpop.f32.mrf.mxu0
        %v697 = vadd.f32 0.0, %v696
        %698 = vmatmul.f32.gmra.mxu0 %v429
        %v699 = vpop.f32.mrf.mxu0
        %v700 = vadd.f32 0.0, %v699
        %701 = vmatmul.f32.gmra.mxu0 %v430
        %v702 = vpop.f32.mrf.mxu0
        %v703 = vadd.f32 0.0, %v702
        %704 = vmatmul.f32.gmra.mxu0 %v431
        %v705 = vpop.f32.mrf.mxu0
        %v706 = vadd.f32 0.0, %v705
        %707 = vmatmul.f32.gmra.mxu0 %v432
        %v708 = vpop.f32.mrf.mxu0
        %v709 = vadd.f32 0.0, %v708
        %710 = vmatmul.f32.gmra.mxu0 %v433
        %v711 = vpop.f32.mrf.mxu0
        %v712 = vadd.f32 0.0, %v711
        %713 = vmatmul.f32.gmra.mxu0 %v434
        %v714 = vpop.f32.mrf.mxu0
        %v715 = vadd.f32 0.0, %v714
        %716 = vmatmul.f32.gmra.mxu0 %v435
        %v717 = vpop.f32.mrf.mxu0
        %v718 = vadd.f32 0.0, %v717
        %719 = vdwg.mxu0
        %720 = vmatpush.msra.mxu0 %v590
        %721 = vmatpush.msra.mxu0 %v589
        %722 = vmatpush.msra.mxu0 %v588
        %723 = vmatpush.msra.mxu0 %v587
        %724 = vmatpush.msra.mxu0 %v586
        %725 = vmatpush.msra.mxu0 %v585
        %726 = vmatpush.msra.mxu0 %v584
        %727 = vmatpush.msra.mxu0 %v583
        %728 = vmatpush.msra.mxu0 %v582
        %729 = vmatpush.msra.mxu0 %v581
        %730 = vmatpush.msra.mxu0 %v580
        %731 = vmatpush.msra.mxu0 %v579
        %732 = vmatpush.msra.mxu0 %v578
        %733 = vmatpush.msra.mxu0 %v577
        %734 = vmatpush.msra.mxu0 %v576
        %735 = vmatpush.msra.mxu0 %v575
        %736 = vmatmul.f32.gmra.mxu0 %v440
        %v737 = vpop.f32.mrf.mxu0
        %v738 = vadd.f32 %v625, %v737
        %739 = vmatmul.f32.gmra.mxu0 %v441
        %v740 = vpop.f32.mrf.mxu0
        %v741 = vadd.f32 %v628, %v740
        %742 = vmatmul.f32.gmra.mxu0 %v442
        %v743 = vpop.f32.mrf.mxu0
        %v744 = vadd.f32 %v631, %v743
        %745 = vmatmul.f32.gmra.mxu0 %v443
        %v746 = vpop.f32.mrf.mxu0
        %v747 = vadd.f32 %v634, %v746
        %748 = vmatmul.f32.gmra.mxu0 %v444
        %v749 = vpop.f32.mrf.mxu0
        %v750 = vadd.f32 %v637, %v749
        %751 = vmatmul.f32.gmra.mxu0 %v445
        %v752 = vpop.f32.mrf.mxu0
        %v753 = vadd.f32 %v640, %v752
        %754 = vmatmul.f32.gmra.mxu0 %v446
        %v755 = vpop.f32.mrf.mxu0
        %v756 = vadd.f32 %v643, %v755
        %757 = vmatmul.f32.gmra.mxu0 %v447
        %v758 = vpop.f32.mrf.mxu0
        %v759 = vadd.f32 %v646, %v758
        %760 = vmatmul.f32.gmra.mxu0 %v448
        %v761 = vpop.f32.mrf.mxu0
        %v762 = vadd.f32 %v649, %v761
        %763 = vmatmul.f32.gmra.mxu0 %v449
        %v764 = vpop.f32.mrf.mxu0
        %v765 = vadd.f32 %v652, %v764
        %766 = vmatmul.f32.gmra.mxu0 %v450
        %v767 = vpop.f32.mrf.mxu0
        %v768 = vadd.f32 %v655, %v767
        %769 = vmatmul.f32.gmra.mxu0 %v451
        %v770 = vpop.f32.mrf.mxu0
        %v771 = vadd.f32 %v658, %v770
        %772 = vmatmul.f32.gmra.mxu0 %v452
        %v773 = vpop.f32.mrf.mxu0
        %v774 = vadd.f32 %v661, %v773
        %775 = vmatmul.f32.gmra.mxu0 %v453
        %v776 = vpop.f32.mrf.mxu0
        %v777 = vadd.f32 %v664, %v776
        %778 = vmatmul.f32.gmra.mxu0 %v454
        %v779 = vpop.f32.mrf.mxu0
        %v780 = vadd.f32 %v667, %v779
        %781 = vmatmul.f32.gmra.mxu0 %v455
        %v782 = vpop.f32.mrf.mxu0
        %v783 = vadd.f32 %v670, %v782
        %784 = vmatmul.f32.gmra.mxu0 %v456
        %v785 = vpop.f32.mrf.mxu0
        %v786 = vadd.f32 %v673, %v785
        %787 = vmatmul.f32.gmra.mxu0 %v457
        %v788 = vpop.f32.mrf.mxu0
        %v789 = vadd.f32 %v676, %v788
        %790 = vmatmul.f32.gmra.mxu0 %v458
        %v791 = vpop.f32.mrf.mxu0
        %v792 = vadd.f32 %v679, %v791
        %793 = vmatmul.f32.gmra.mxu0 %v459
        %v794 = vpop.f32.mrf.mxu0
        %v795 = vadd.f32 %v682, %v794
        %796 = vmatmul.f32.gmra.mxu0 %v460
        %v797 = vpop.f32.mrf.mxu0
        %v798 = vadd.f32 %v685, %v797
        %799 = vmatmul.f32.gmra.mxu0 %v461
        %v800 = vpop.f32.mrf.mxu0
        %v801 = vadd.f32 %v688, %v800
        %802 = vmatmul.f32.gmra.mxu0 %v462
        %v803 = vpop.f32.mrf.mxu0
        %v804 = vadd.f32 %v691, %v803
        %805 = vmatmul.f32.gmra.mxu0 %v463
        %v806 = vpop.f32.mrf.mxu0
        %v807 = vadd.f32 %v694, %v806
        %808 = vmatmul.f32.gmra.mxu0 %v464
        %v809 = vpop.f32.mrf.mxu0
        %v810 = vadd.f32 %v697, %v809
        %811 = vmatmul.f32.gmra.mxu0 %v465
        %v812 = vpop.f32.mrf.mxu0
        %v813 = vadd.f32 %v700, %v812
        %814 = vmatmul.f32.gmra.mxu0 %v466
        %v815 = vpop.f32.mrf.mxu0
        %v816 = vadd.f32 %v703, %v815
        %817 = vmatmul.f32.gmra.mxu0 %v467
        %v818 = vpop.f32.mrf.mxu0
        %v819 = vadd.f32 %v706, %v818
        %820 = vmatmul.f32.gmra.mxu0 %v468
        %v821 = vpop.f32.mrf.mxu0
        %v822 = vadd.f32 %v709, %v821
        %823 = vmatmul.f32.gmra.mxu0 %v469
        %v824 = vpop.f32.mrf.mxu0
        %v825 = vadd.f32 %v712, %v824
        %826 = vmatmul.f32.gmra.mxu0 %v470
        %v827 = vpop.f32.mrf.mxu0
        %v828 = vadd.f32 %v715, %v827
        %829 = vmatmul.f32.gmra.mxu0 %v471
        %v830 = vpop.f32.mrf.mxu0
        %v831 = vadd.f32 %v718, %v830
        %832 = vdwg.mxu0
        %833 = vmatpush.msra.mxu0 %v606
        %834 = vmatpush.msra.mxu0 %v605
        %835 = vmatpush.msra.mxu0 %v604
        %836 = vmatpush.msra.mxu0 %v603
        %837 = vmatpush.msra.mxu0 %v602
        %838 = vmatpush.msra.mxu0 %v601
        %839 = vmatpush.msra.mxu0 %v600
        %840 = vmatpush.msra.mxu0 %v599
        %841 = vmatpush.msra.mxu0 %v598
        %842 = vmatpush.msra.mxu0 %v597
        %843 = vmatpush.msra.mxu0 %v596
        %844 = vmatpush.msra.mxu0 %v595
        %845 = vmatpush.msra.mxu0 %v594
        %846 = vmatpush.msra.mxu0 %v593
        %847 = vmatpush.msra.mxu0 %v592
        %848 = vmatpush.msra.mxu0 %v591
        %849 = vmatmul.f32.gmra.mxu0 %v476
        %v850 = vpop.f32.mrf.mxu0
        %v851 = vadd.f32 %v738, %v850
        %852 = vmatmul.f32.gmra.mxu0 %v477
        %v853 = vpop.f32.mrf.mxu0
        %v854 = vadd.f32 %v741, %v853
        %855 = vmatmul.f32.gmra.mxu0 %v478
        %v856 = vpop.f32.mrf.mxu0
        %v857 = vadd.f32 %v744, %v856
        %858 = vmatmul.f32.gmra.mxu0 %v479
        %v859 = vpop.f32.mrf.mxu0
        %v860 = vadd.f32 %v747, %v859
        %861 = vmatmul.f32.gmra.mxu0 %v480
        %v862 = vpop.f32.mrf.mxu0
        %v863 = vadd.f32 %v750, %v862
        %864 = vmatmul.f32.gmra.mxu0 %v481
        %v865 = vpop.f32.mrf.mxu0
        %v866 = vadd.f32 %v753, %v865
        %867 = vmatmul.f32.gmra.mxu0 %v482
        %v868 = vpop.f32.mrf.mxu0
        %v869 = vadd.f32 %v756, %v868
        %870 = vmatmul.f32.gmra.mxu0 %v483
        %v871 = vpop.f32.mrf.mxu0
        %v872 = vadd.f32 %v759, %v871
        %873 = vmatmul.f32.gmra.mxu0 %v484
        %v874 = vpop.f32.mrf.mxu0
        %v875 = vadd.f32 %v762, %v874
        %876 = vmatmul.f32.gmra.mxu0 %v485
        %v877 = vpop.f32.mrf.mxu0
        %v878 = vadd.f32 %v765, %v877
        %879 = vmatmul.f32.gmra.mxu0 %v486
        %v880 = vpop.f32.mrf.mxu0
        %v881 = vadd.f32 %v768, %v880
        %882 = vmatmul.f32.gmra.mxu0 %v487
        %v883 = vpop.f32.mrf.mxu0
        %v884 = vadd.f32 %v771, %v883
        %885 = vmatmul.f32.gmra.mxu0 %v488
        %v886 = vpop.f32.mrf.mxu0
        %v887 = vadd.f32 %v774, %v886
        %888 = vmatmul.f32.gmra.mxu0 %v489
        %v889 = vpop.f32.mrf.mxu0
        %v890 = vadd.f32 %v777, %v889
        %891 = vmatmul.f32.gmra.mxu0 %v490
        %v892 = vpop.f32.mrf.mxu0
        %v893 = vadd.f32 %v780, %v892
        %894 = vmatmul.f32.gmra.mxu0 %v491
        %v895 = vpop.f32.mrf.mxu0
        %v896 = vadd.f32 %v783, %v895
        %897 = vmatmul.f32.gmra.mxu0 %v492
        %v898 = vpop.f32.mrf.mxu0
        %v899 = vadd.f32 %v786, %v898
        %900 = vmatmul.f32.gmra.mxu0 %v493
        %v901 = vpop.f32.mrf.mxu0
        %v902 = vadd.f32 %v789, %v901
        %903 = vmatmul.f32.gmra.mxu0 %v494
        %v904 = vpop.f32.mrf.mxu0
        %v905 = vadd.f32 %v792, %v904
        %906 = vmatmul.f32.gmra.mxu0 %v495
        %v907 = vpop.f32.mrf.mxu0
        %v908 = vadd.f32 %v795, %v907
        %909 = vmatmul.f32.gmra.mxu0 %v496
        %v910 = vpop.f32.mrf.mxu0
        %v911 = vadd.f32 %v798, %v910
        %912 = vmatmul.f32.gmra.mxu0 %v497
        %v913 = vpop.f32.mrf.mxu0
        %v914 = vadd.f32 %v801, %v913
        %915 = vmatmul.f32.gmra.mxu0 %v498
        %v916 = vpop.f32.mrf.mxu0
        %v917 = vadd.f32 %v804, %v916
        %918 = vmatmul.f32.gmra.mxu0 %v499
        %v919 = vpop.f32.mrf.mxu0
        %v920 = vadd.f32 %v807, %v919
        %921 = vmatmul.f32.gmra.mxu0 %v500
        %v922 = vpop.f32.mrf.mxu0
        %v923 = vadd.f32 %v810, %v922
        %924 = vmatmul.f32.gmra.mxu0 %v501
        %v925 = vpop.f32.mrf.mxu0
        %v926 = vadd.f32 %v813, %v925
        %927 = vmatmul.f32.gmra.mxu0 %v502
        %v928 = vpop.f32.mrf.mxu0
        %v929 = vadd.f32 %v816, %v928
        %930 = vmatmul.f32.gmra.mxu0 %v503
        %v931 = vpop.f32.mrf.mxu0
        %v932 = vadd.f32 %v819, %v931
        %933 = vmatmul.f32.gmra.mxu0 %v504
        %v934 = vpop.f32.mrf.mxu0
        %v935 = vadd.f32 %v822, %v934
        %936 = vmatmul.f32.gmra.mxu0 %v505
        %v937 = vpop.f32.mrf.mxu0
        %v938 = vadd.f32 %v825, %v937
        %939 = vmatmul.f32.gmra.mxu0 %v506
        %v940 = vpop.f32.mrf.mxu0
        %v941 = vadd.f32 %v828, %v940
        %942 = vmatmul.f32.gmra.mxu0 %v507
        %v943 = vpop.f32.mrf.mxu0
        %v944 = vadd.f32 %v831, %v943
        %945 = vdwg.mxu0
        %946 = vmatpush.msra.mxu0 %v525
        %947 = vmatpush.msra.mxu0 %v524
        %948 = vmatpush.msra.mxu0 %v523
        %949 = vmatpush.msra.mxu0 %v522
        %950 = vmatpush.msra.mxu0 %v521
        %951 = vmatpush.msra.mxu0 %v520
        %952 = vmatpush.msra.mxu0 %v519
        %953 = vmatpush.msra.mxu0 %v518
        %954 = vmatpush.msra.mxu0 %v517
        %955 = vmatpush.msra.mxu0 %v516
        %956 = vmatpush.msra.mxu0 %v515
        %957 = vmatpush.msra.mxu0 %v514
        %958 = vmatpush.msra.mxu0 %v513
        %959 = vmatpush.msra.mxu0 %v512
        %960 = vmatpush.msra.mxu0 %v511
        %961 = vmatpush.msra.mxu0 %v510
        %962 = vmatmul.f32.gmra.mxu0 %v402
        %v963 = vpop.f32.mrf.mxu0
        %v964 = vadd.f32 %v851, %v963
        %965 = vmatmul.f32.gmra.mxu0 %v403
        %v966 = vpop.f32.mrf.mxu0
        %v967 = vadd.f32 %v854, %v966
        %968 = vmatmul.f32.gmra.mxu0 %v404
        %v969 = vpop.f32.mrf.mxu0
        %v970 = vadd.f32 %v857, %v969
        %971 = vmatmul.f32.gmra.mxu0 %v405
        %v972 = vpop.f32.mrf.mxu0
        %v973 = vadd.f32 %v860, %v972
        %974 = vmatmul.f32.gmra.mxu0 %v406
        %v975 = vpop.f32.mrf.mxu0
        %v976 = vadd.f32 %v863, %v975
        %977 = vmatmul.f32.gmra.mxu0 %v407
        %v978 = vpop.f32.mrf.mxu0
        %v979 = vadd.f32 %v866, %v978
        %980 = vmatmul.f32.gmra.mxu0 %v408
        %v981 = vpop.f32.mrf.mxu0
        %v982 = vadd.f32 %v869, %v981
        %983 = vmatmul.f32.gmra.mxu0 %v409
        %v984 = vpop.f32.mrf.mxu0
        %v985 = vadd.f32 %v872, %v984
        %986 = vmatmul.f32.gmra.mxu0 %v410
        %v987 = vpop.f32.mrf.mxu0
        %v988 = vadd.f32 %v875, %v987
        %989 = vmatmul.f32.gmra.mxu0 %v411
        %v990 = vpop.f32.mrf.mxu0
        %v991 = vadd.f32 %v878, %v990
        %992 = vmatmul.f32.gmra.mxu0 %v412
        %v993 = vpop.f32.mrf.mxu0
        %v994 = vadd.f32 %v881, %v993
        %995 = vmatmul.f32.gmra.mxu0 %v413
        %v996 = vpop.f32.mrf.mxu0
        %v997 = vadd.f32 %v884, %v996
        %998 = vmatmul.f32.gmra.mxu0 %v414
        %v999 = vpop.f32.mrf.mxu0
        %v1000 = vadd.f32 %v887, %v999
        %1001 = vmatmul.f32.gmra.mxu0 %v415
        %v1002 = vpop.f32.mrf.mxu0
        %v1003 = vadd.f32 %v890, %v1002
        %1004 = vmatmul.f32.gmra.mxu0 %v416
        %v1005 = vpop.f32.mrf.mxu0
        %v1006 = vadd.f32 %v893, %v1005
        %1007 = vmatmul.f32.gmra.mxu0 %v417
        %v1008 = vpop.f32.mrf.mxu0
        %v1009 = vadd.f32 %v896, %v1008
        %1010 = vmatmul.f32.gmra.mxu0 %v418
        %v1011 = vpop.f32.mrf.mxu0
        %v1012 = vadd.f32 %v899, %v1011
        %1013 = vmatmul.f32.gmra.mxu0 %v419
        %v1014 = vpop.f32.mrf.mxu0
        %v1015 = vadd.f32 %v902, %v1014
        %1016 = vmatmul.f32.gmra.mxu0 %v420
        %v1017 = vpop.f32.mrf.mxu0
        %v1018 = vadd.f32 %v905, %v1017
        %1019 = vmatmul.f32.gmra.mxu0 %v421
        %v1020 = vpop.f32.mrf.mxu0
        %v1021 = vadd.f32 %v908, %v1020
        %1022 = vmatmul.f32.gmra.mxu0 %v422
        %v1023 = vpop.f32.mrf.mxu0
        %v1024 = vadd.f32 %v911, %v1023
        %1025 = vmatmul.f32.gmra.mxu0 %v423
        %v1026 = vpop.f32.mrf.mxu0
        %v1027 = vadd.f32 %v914, %v1026
        %1028 = vmatmul.f32.gmra.mxu0 %v424
        %v1029 = vpop.f32.mrf.mxu0
        %v1030 = vadd.f32 %v917, %v1029
        %1031 = vmatmul.f32.gmra.mxu0 %v425
        %v1032 = vpop.f32.mrf.mxu0
        %v1033 = vadd.f32 %v920, %v1032
        %1034 = vmatmul.f32.gmra.mxu0 %v426
        %v1035 = vpop.f32.mrf.mxu0
        %v1036 = vadd.f32 %v923, %v1035
        %1037 = vmatmul.f32.gmra.mxu0 %v427
        %v1038 = vpop.f32.mrf.mxu0
        %v1039 = vadd.f32 %v926, %v1038
        %1040 = vmatmul.f32.gmra.mxu0 %v428
        %v1041 = vpop.f32.mrf.mxu0
        %v1042 = vadd.f32 %v929, %v1041
        %1043 = vmatmul.f32.gmra.mxu0 %v429
        %v1044 = vpop.f32.mrf.mxu0
        %v1045 = vadd.f32 %v932, %v1044
        %1046 = vmatmul.f32.gmra.mxu0 %v430
        %v1047 = vpop.f32.mrf.mxu0
        %v1048 = vadd.f32 %v935, %v1047
        %1049 = vmatmul.f32.gmra.mxu0 %v431
        %v1050 = vpop.f32.mrf.mxu0
        %v1051 = vadd.f32 %v938, %v1050
        %1052 = vmatmul.f32.gmra.mxu0 %v432
        %v1053 = vpop.f32.mrf.mxu0
        %v1054 = vadd.f32 %v941, %v1053
        %1055 = vmatmul.f32.gmra.mxu0 %v433
        %v1056 = vpop.f32.mrf.mxu0
        %v1057 = vadd.f32 %v944, %v1056
        %1058 = vdwg.mxu0
        %1059 = vmatpush.msra.mxu0 %v541
        %1060 = vmatpush.msra.mxu0 %v540
        %1061 = vmatpush.msra.mxu0 %v539
        %1062 = vmatpush.msra.mxu0 %v538
        %1063 = vmatpush.msra.mxu0 %v537
        %1064 = vmatpush.msra.mxu0 %v536
        %1065 = vmatpush.msra.mxu0 %v535
        %1066 = vmatpush.msra.mxu0 %v534
        %1067 = vmatpush.msra.mxu0 %v533
        %1068 = vmatpush.msra.mxu0 %v532
        %1069 = vmatpush.msra.mxu0 %v531
        %1070 = vmatpush.msra.mxu0 %v530
        %1071 = vmatpush.msra.mxu0 %v529
        %1072 = vmatpush.msra.mxu0 %v528
        %1073 = vmatpush.msra.mxu0 %v527
        %1074 = vmatpush.msra.mxu0 %v526
        %1075 = vmatmul.f32.gmra.mxu0 %v438
        %v1076 = vpop.f32.mrf.mxu0
        %v1077 = vadd.f32 %v964, %v1076
        %1078 = vmatmul.f32.gmra.mxu0 %v439
        %v1079 = vpop.f32.mrf.mxu0
        %v1080 = vadd.f32 %v967, %v1079
        %1081 = vmatmul.f32.gmra.mxu0 %v440
        %v1082 = vpop.f32.mrf.mxu0
        %v1083 = vadd.f32 %v970, %v1082
        %1084 = vmatmul.f32.gmra.mxu0 %v441
        %v1085 = vpop.f32.mrf.mxu0
        %v1086 = vadd.f32 %v973, %v1085
        %1087 = vmatmul.f32.gmra.mxu0 %v442
        %v1088 = vpop.f32.mrf.mxu0
        %v1089 = vadd.f32 %v976, %v1088
        %1090 = vmatmul.f32.gmra.mxu0 %v443
        %v1091 = vpop.f32.mrf.mxu0
        %v1092 = vadd.f32 %v979, %v1091
        %1093 = vmatmul.f32.gmra.mxu0 %v444
        %v1094 = vpop.f32.mrf.mxu0
        %v1095 = vadd.f32 %v982, %v1094
        %1096 = vmatmul.f32.gmra.mxu0 %v445
        %v1097 = vpop.f32.mrf.mxu0
        %v1098 = vadd.f32 %v985, %v1097
        %1099 = vmatmul.f32.gmra.mxu0 %v446
        %v1100 = vpop.f32.mrf.mxu0
        %v1101 = vadd.f32 %v988, %v1100
        %1102 = vmatmul.f32.gmra.mxu0 %v447
        %v1103 = vpop.f32.mrf.mxu0
        %v1104 = vadd.f32 %v991, %v1103
        %1105 = vmatmul.f32.gmra.mxu0 %v448
        %v1106 = vpop.f32.mrf.mxu0
        %v1107 = vadd.f32 %v994, %v1106
        %1108 = vmatmul.f32.gmra.mxu0 %v449
        %v1109 = vpop.f32.mrf.mxu0
        %v1110 = vadd.f32 %v997, %v1109
        %1111 = vmatmul.f32.gmra.mxu0 %v450
        %v1112 = vpop.f32.mrf.mxu0
        %v1113 = vadd.f32 %v1000, %v1112
        %1114 = vmatmul.f32.gmra.mxu0 %v451
        %v1115 = vpop.f32.mrf.mxu0
        %v1116 = vadd.f32 %v1003, %v1115
        %1117 = vmatmul.f32.gmra.mxu0 %v452
        %v1118 = vpop.f32.mrf.mxu0
        %v1119 = vadd.f32 %v1006, %v1118
        %1120 = vmatmul.f32.gmra.mxu0 %v453
        %v1121 = vpop.f32.mrf.mxu0
        %v1122 = vadd.f32 %v1009, %v1121
        %1123 = vmatmul.f32.gmra.mxu0 %v454
        %v1124 = vpop.f32.mrf.mxu0
        %v1125 = vadd.f32 %v1012, %v1124
        %1126 = vmatmul.f32.gmra.mxu0 %v455
        %v1127 = vpop.f32.mrf.mxu0
        %v1128 = vadd.f32 %v1015, %v1127
        %1129 = vmatmul.f32.gmra.mxu0 %v456
        %v1130 = vpop.f32.mrf.mxu0
        %v1131 = vadd.f32 %v1018, %v1130
        %1132 = vmatmul.f32.gmra.mxu0 %v457
        %v1133 = vpop.f32.mrf.mxu0
        %v1134 = vadd.f32 %v1021, %v1133
        %1135 = vmatmul.f32.gmra.mxu0 %v458
        %v1136 = vpop.f32.mrf.mxu0
        %v1137 = vadd.f32 %v1024, %v1136
        %1138 = vmatmul.f32.gmra.mxu0 %v459
        %v1139 = vpop.f32.mrf.mxu0
        %v1140 = vadd.f32 %v1027, %v1139
        %1141 = vmatmul.f32.gmra.mxu0 %v460
        %v1142 = vpop.f32.mrf.mxu0
        %v1143 = vadd.f32 %v1030, %v1142
        %1144 = vmatmul.f32.gmra.mxu0 %v461
        %v1145 = vpop.f32.mrf.mxu0
        %v1146 = vadd.f32 %v1033, %v1145
        %1147 = vmatmul.f32.gmra.mxu0 %v462
        %v1148 = vpop.f32.mrf.mxu0
        %v1149 = vadd.f32 %v1036, %v1148
        %1150 = vmatmul.f32.gmra.mxu0 %v463
        %v1151 = vpop.f32.mrf.mxu0
        %v1152 = vadd.f32 %v1039, %v1151
        %1153 = vmatmul.f32.gmra.mxu0 %v464
        %v1154 = vpop.f32.mrf.mxu0
        %v1155 = vadd.f32 %v1042, %v1154
        %1156 = vmatmul.f32.gmra.mxu0 %v465
        %v1157 = vpop.f32.mrf.mxu0
        %v1158 = vadd.f32 %v1045, %v1157
        %1159 = vmatmul.f32.gmra.mxu0 %v466
        %v1160 = vpop.f32.mrf.mxu0
        %v1161 = vadd.f32 %v1048, %v1160
        %1162 = vmatmul.f32.gmra.mxu0 %v467
        %v1163 = vpop.f32.mrf.mxu0
        %v1164 = vadd.f32 %v1051, %v1163
        %1165 = vmatmul.f32.gmra.mxu0 %v468
        %v1166 = vpop.f32.mrf.mxu0
        %v1167 = vadd.f32 %v1054, %v1166
        %1168 = vmatmul.f32.gmra.mxu0 %v469
        %v1169 = vpop.f32.mrf.mxu0
        %v1170 = vadd.f32 %v1057, %v1169
        %1171 = vdwg.mxu0
        %1172 = vmatpush.msra.mxu0 %v557
        %1173 = vmatpush.msra.mxu0 %v556
        %1174 = vmatpush.msra.mxu0 %v555
        %1175 = vmatpush.msra.mxu0 %v554
        %1176 = vmatpush.msra.mxu0 %v553
        %1177 = vmatpush.msra.mxu0 %v552
        %1178 = vmatpush.msra.mxu0 %v551
        %1179 = vmatpush.msra.mxu0 %v550
        %1180 = vmatpush.msra.mxu0 %v549
        %1181 = vmatpush.msra.mxu0 %v548
        %1182 = vmatpush.msra.mxu0 %v547
        %1183 = vmatpush.msra.mxu0 %v546
        %1184 = vmatpush.msra.mxu0 %v545
        %1185 = vmatpush.msra.mxu0 %v544
        %1186 = vmatpush.msra.mxu0 %v543
        %1187 = vmatpush.msra.mxu0 %v542
        %1188 = vmatmul.f32.gmra.mxu0 %v474
        %v1189 = vpop.f32.mrf.mxu0
        %v1190 = vadd.f32 %v1077, %v1189
        %1191 = vmatmul.f32.gmra.mxu0 %v475
        %v1192 = vpop.f32.mrf.mxu0
        %v1193 = vadd.f32 %v1080, %v1192
        %1194 = vmatmul.f32.gmra.mxu0 %v476
        %v1195 = vpop.f32.mrf.mxu0
        %v1196 = vadd.f32 %v1083, %v1195
        %1197 = vmatmul.f32.gmra.mxu0 %v477
        %v1198 = vpop.f32.mrf.mxu0
        %v1199 = vadd.f32 %v1086, %v1198
        %1200 = vmatmul.f32.gmra.mxu0 %v478
        %v1201 = vpop.f32.mrf.mxu0
        %v1202 = vadd.f32 %v1089, %v1201
        %1203 = vmatmul.f32.gmra.mxu0 %v479
        %v1204 = vpop.f32.mrf.mxu0
        %v1205 = vadd.f32 %v1092, %v1204
        %1206 = vmatmul.f32.gmra.mxu0 %v480
        %v1207 = vpop.f32.mrf.mxu0
        %v1208 = vadd.f32 %v1095, %v1207
        %1209 = vmatmul.f32.gmra.mxu0 %v481
        %v1210 = vpop.f32.mrf.mxu0
        %v1211 = vadd.f32 %v1098, %v1210
        %1212 = vmatmul.f32.gmra.mxu0 %v482
        %v1213 = vpop.f32.mrf.mxu0
        %v1214 = vadd.f32 %v1101, %v1213
        %1215 = vmatmul.f32.gmra.mxu0 %v483
        %v1216 = vpop.f32.mrf.mxu0
        %v1217 = vadd.f32 %v1104, %v1216
        %1218 = vmatmul.f32.gmra.mxu0 %v484
        %v1219 = vpop.f32.mrf.mxu0
        %v1220 = vadd.f32 %v1107, %v1219
        %1221 = vmatmul.f32.gmra.mxu0 %v485
        %v1222 = vpop.f32.mrf.mxu0
        %v1223 = vadd.f32 %v1110, %v1222
        %1224 = vmatmul.f32.gmra.mxu0 %v486
        %v1225 = vpop.f32.mrf.mxu0
        %v1226 = vadd.f32 %v1113, %v1225
        %1227 = vmatmul.f32.gmra.mxu0 %v487
        %v1228 = vpop.f32.mrf.mxu0
        %v1229 = vadd.f32 %v1116, %v1228
        %1230 = vmatmul.f32.gmra.mxu0 %v488
        %v1231 = vpop.f32.mrf.mxu0
        %v1232 = vadd.f32 %v1119, %v1231
        %1233 = vmatmul.f32.gmra.mxu0 %v489
        %v1234 = vpop.f32.mrf.mxu0
        %v1235 = vadd.f32 %v1122, %v1234
        %1236 = vmatmul.f32.gmra.mxu0 %v490
        %v1237 = vpop.f32.mrf.mxu0
        %v1238 = vadd.f32 %v1125, %v1237
        %1239 = vmatmul.f32.gmra.mxu0 %v491
        %v1240 = vpop.f32.mrf.mxu0
        %v1241 = vadd.f32 %v1128, %v1240
        %1242 = vmatmul.f32.gmra.mxu0 %v492
        %v1243 = vpop.f32.mrf.mxu0
        %v1244 = vadd.f32 %v1131, %v1243
        %1245 = vmatmul.f32.gmra.mxu0 %v493
        %v1246 = vpop.f32.mrf.mxu0
        %v1247 = vadd.f32 %v1134, %v1246
        %1248 = vmatmul.f32.gmra.mxu0 %v494
        %v1249 = vpop.f32.mrf.mxu0
        %v1250 = vadd.f32 %v1137, %v1249
        %1251 = vmatmul.f32.gmra.mxu0 %v495
        %v1252 = vpop.f32.mrf.mxu0
        %v1253 = vadd.f32 %v1140, %v1252
        %1254 = vmatmul.f32.gmra.mxu0 %v496
        %v1255 = vpop.f32.mrf.mxu0
        %v1256 = vadd.f32 %v1143, %v1255
        %1257 = vmatmul.f32.gmra.mxu0 %v497
        %v1258 = vpop.f32.mrf.mxu0
        %v1259 = vadd.f32 %v1146, %v1258
        %1260 = vmatmul.f32.gmra.mxu0 %v498
        %v1261 = vpop.f32.mrf.mxu0
        %v1262 = vadd.f32 %v1149, %v1261
        %1263 = vmatmul.f32.gmra.mxu0 %v499
        %v1264 = vpop.f32.mrf.mxu0
        %v1265 = vadd.f32 %v1152, %v1264
        %1266 = vmatmul.f32.gmra.mxu0 %v500
        %v1267 = vpop.f32.mrf.mxu0
        %v1268 = vadd.f32 %v1155, %v1267
        %1269 = vmatmul.f32.gmra.mxu0 %v501
        %v1270 = vpop.f32.mrf.mxu0
        %v1271 = vadd.f32 %v1158, %v1270
        %1272 = vmatmul.f32.gmra.mxu0 %v502
        %v1273 = vpop.f32.mrf.mxu0
        %v1274 = vadd.f32 %v1161, %v1273
        %1275 = vmatmul.f32.gmra.mxu0 %v503
        %v1276 = vpop.f32.mrf.mxu0
        %v1277 = vadd.f32 %v1164, %v1276
        %1278 = vmatmul.f32.gmra.mxu0 %v504
        %v1279 = vpop.f32.mrf.mxu0
        %v1280 = vadd.f32 %v1167, %v1279
        %1281 = vmatmul.f32.gmra.mxu0 %v505
        %v1282 = vpop.f32.mrf.mxu0
        %v1283 = vadd.f32 %v1170, %v1282
        %1284 = vdwg.mxu0
        %s1285 = scalar_lea.vmem [#allocation3], 768
        %v1286 = vld [vmem:[%s1285] sm:$0xff]
        %v1287 = vld [vmem:[%s1285 + $0x8] sm:$0xff]
        %v1288 = vld [vmem:[%s1285 + $0x10] sm:$0xff]
        %v1289 = vld [vmem:[%s1285 + $0x18] sm:$0xff]
        %v1290 = vld [vmem:[%s1285 + $0x20] sm:$0xff]
        %v1291 = vld [vmem:[%s1285 + $0x28] sm:$0xff]
        %v1292 = vld [vmem:[%s1285 + $0x30] sm:$0xff]
        %v1293 = vld [vmem:[%s1285 + $0x38] sm:$0xff]
        %v1294 = vld [vmem:[%s1285 + $0x40] sm:$0xff]
        %v1295 = vld [vmem:[%s1285 + $0x48] sm:$0xff]
        %v1296 = vld [vmem:[%s1285 + $0x50] sm:$0xff]
        %v1297 = vld [vmem:[%s1285 + $0x58] sm:$0xff]
        %v1298 = vld [vmem:[%s1285 + $0x60] sm:$0xff]
        %v1299 = vld [vmem:[%s1285 + $0x68] sm:$0xff]
        %v1300 = vld [vmem:[%s1285 + $0x70] sm:$0xff]
        %v1301 = vld [vmem:[%s1285 + $0x78] sm:$0xff]
        %v1302 = vld [vmem:[%s1285 + $0x80] sm:$0xff]
        %v1303 = vld [vmem:[%s1285 + $0x88] sm:$0xff]
        %v1304 = vld [vmem:[%s1285 + $0x90] sm:$0xff]
        %v1305 = vld [vmem:[%s1285 + $0x98] sm:$0xff]
        %v1306 = vld [vmem:[%s1285 + $0xa0] sm:$0xff]
        %v1307 = vld [vmem:[%s1285 + $0xa8] sm:$0xff]
        %v1308 = vld [vmem:[%s1285 + $0xb0] sm:$0xff]
        %v1309 = vld [vmem:[%s1285 + $0xb8] sm:$0xff]
        %v1310 = vld [vmem:[%s1285 + $0xc0] sm:$0xff]
        %v1311 = vld [vmem:[%s1285 + $0xc8] sm:$0xff]
        %v1312 = vld [vmem:[%s1285 + $0xd0] sm:$0xff]
        %v1313 = vld [vmem:[%s1285 + $0xd8] sm:$0xff]
        %v1314 = vld [vmem:[%s1285 + $0xe0] sm:$0xff]
        %v1315 = vld [vmem:[%s1285 + $0xe8] sm:$0xff]
        %v1316 = vld [vmem:[%s1285 + $0xf0] sm:$0xff]
        %v1317 = vld [vmem:[%s1285 + $0xf8] sm:$0xff]
        %v1318 = vld [vmem:[%s1285 + $0x100] sm:$0xff]
        %v1319 = vld [vmem:[%s1285 + $0x108] sm:$0xff]
        %v1320 = vld [vmem:[%s1285 + $0x110] sm:$0xff]
        %v1321 = vld [vmem:[%s1285 + $0x118] sm:$0xff]
        %v1322 = vld [vmem:[%s1285 + $0x120] sm:$0xff]
        %v1323 = vld [vmem:[%s1285 + $0x128] sm:$0xff]
        %v1324 = vld [vmem:[%s1285 + $0x130] sm:$0xff]
        %v1325 = vld [vmem:[%s1285 + $0x138] sm:$0xff]
        %v1326 = vld [vmem:[%s1285 + $0x140] sm:$0xff]
        %v1327 = vld [vmem:[%s1285 + $0x148] sm:$0xff]
        %v1328 = vld [vmem:[%s1285 + $0x150] sm:$0xff]
        %v1329 = vld [vmem:[%s1285 + $0x158] sm:$0xff]
        %v1330 = vld [vmem:[%s1285 + $0x160] sm:$0xff]
        %v1331 = vld [vmem:[%s1285 + $0x168] sm:$0xff]
        %v1332 = vld [vmem:[%s1285 + $0x170] sm:$0xff]
        %v1333 = vld [vmem:[%s1285 + $0x178] sm:$0xff]
        %1334 = vmatpush.msra.mxu0 %v1301
        %1335 = vmatpush.msra.mxu0 %v1300
        %1336 = vmatpush.msra.mxu0 %v1299
        %1337 = vmatpush.msra.mxu0 %v1298
        %1338 = vmatpush.msra.mxu0 %v1297
        %1339 = vmatpush.msra.mxu0 %v1296
        %1340 = vmatpush.msra.mxu0 %v1295
        %1341 = vmatpush.msra.mxu0 %v1294
        %1342 = vmatpush.msra.mxu0 %v1293
        %1343 = vmatpush.msra.mxu0 %v1292
        %1344 = vmatpush.msra.mxu0 %v1291
        %1345 = vmatpush.msra.mxu0 %v1290
        %1346 = vmatpush.msra.mxu0 %v1289
        %1347 = vmatpush.msra.mxu0 %v1288
        %1348 = vmatpush.msra.mxu0 %v1287
        %1349 = vmatpush.msra.mxu0 %v1286
        %1350 = vmatmul.f32.gmra.mxu0 %v406
        %v1351 = vpop.f32.mrf.mxu0
        %v1352 = vadd.f32 0.0, %v1351
        %1353 = vmatmul.f32.gmra.mxu0 %v407
        %v1354 = vpop.f32.mrf.mxu0
        %v1355 = vadd.f32 0.0, %v1354
        %1356 = vmatmul.f32.gmra.mxu0 %v408
        %v1357 = vpop.f32.mrf.mxu0
        %v1358 = vadd.f32 0.0, %v1357
        %1359 = vmatmul.f32.gmra.mxu0 %v409
        %v1360 = vpop.f32.mrf.mxu0
        %v1361 = vadd.f32 0.0, %v1360
        %1362 = vmatmul.f32.gmra.mxu0 %v410
        %v1363 = vpop.f32.mrf.mxu0
        %v1364 = vadd.f32 0.0, %v1363
        %1365 = vmatmul.f32.gmra.mxu0 %v411
        %v1366 = vpop.f32.mrf.mxu0
        %v1367 = vadd.f32 0.0, %v1366
        %1368 = vmatmul.f32.gmra.mxu0 %v412
        %v1369 = vpop.f32.mrf.mxu0
        %v1370 = vadd.f32 0.0, %v1369
        %1371 = vmatmul.f32.gmra.mxu0 %v413
        %v1372 = vpop.f32.mrf.mxu0
        %v1373 = vadd.f32 0.0, %v1372
        %1374 = vmatmul.f32.gmra.mxu0 %v414
        %v1375 = vpop.f32.mrf.mxu0
        %v1376 = vadd.f32 0.0, %v1375
        %1377 = vmatmul.f32.gmra.mxu0 %v415
        %v1378 = vpop.f32.mrf.mxu0
        %v1379 = vadd.f32 0.0, %v1378
        %1380 = vmatmul.f32.gmra.mxu0 %v416
        %v1381 = vpop.f32.mrf.mxu0
        %v1382 = vadd.f32 0.0, %v1381
        %1383 = vmatmul.f32.gmra.mxu0 %v417
        %v1384 = vpop.f32.mrf.mxu0
        %v1385 = vadd.f32 0.0, %v1384
        %1386 = vmatmul.f32.gmra.mxu0 %v418
        %v1387 = vpop.f32.mrf.mxu0
        %v1388 = vadd.f32 0.0, %v1387
        %1389 = vmatmul.f32.gmra.mxu0 %v419
        %v1390 = vpop.f32.mrf.mxu0
        %v1391 = vadd.f32 0.0, %v1390
        %1392 = vmatmul.f32.gmra.mxu0 %v420
        %v1393 = vpop.f32.mrf.mxu0
        %v1394 = vadd.f32 0.0, %v1393
        %1395 = vmatmul.f32.gmra.mxu0 %v421
        %v1396 = vpop.f32.mrf.mxu0
        %v1397 = vadd.f32 0.0, %v1396
        %1398 = vmatmul.f32.gmra.mxu0 %v422
        %v1399 = vpop.f32.mrf.mxu0
        %v1400 = vadd.f32 0.0, %v1399
        %1401 = vmatmul.f32.gmra.mxu0 %v423
        %v1402 = vpop.f32.mrf.mxu0
        %v1403 = vadd.f32 0.0, %v1402
        %1404 = vmatmul.f32.gmra.mxu0 %v424
        %v1405 = vpop.f32.mrf.mxu0
        %v1406 = vadd.f32 0.0, %v1405
        %1407 = vmatmul.f32.gmra.mxu0 %v425
        %v1408 = vpop.f32.mrf.mxu0
        %v1409 = vadd.f32 0.0, %v1408
        %1410 = vmatmul.f32.gmra.mxu0 %v426
        %v1411 = vpop.f32.mrf.mxu0
        %v1412 = vadd.f32 0.0, %v1411
        %1413 = vmatmul.f32.gmra.mxu0 %v427
        %v1414 = vpop.f32.mrf.mxu0
        %v1415 = vadd.f32 0.0, %v1414
        %1416 = vmatmul.f32.gmra.mxu0 %v428
        %v1417 = vpop.f32.mrf.mxu0
        %v1418 = vadd.f32 0.0, %v1417
        %1419 = vmatmul.f32.gmra.mxu0 %v429
        %v1420 = vpop.f32.mrf.mxu0
        %v1421 = vadd.f32 0.0, %v1420
        %1422 = vmatmul.f32.gmra.mxu0 %v430
        %v1423 = vpop.f32.mrf.mxu0
        %v1424 = vadd.f32 0.0, %v1423
        %1425 = vmatmul.f32.gmra.mxu0 %v431
        %v1426 = vpop.f32.mrf.mxu0
        %v1427 = vadd.f32 0.0, %v1426
        %1428 = vmatmul.f32.gmra.mxu0 %v432
        %v1429 = vpop.f32.mrf.mxu0
        %v1430 = vadd.f32 0.0, %v1429
        %1431 = vmatmul.f32.gmra.mxu0 %v433
        %v1432 = vpop.f32.mrf.mxu0
        %v1433 = vadd.f32 0.0, %v1432
        %1434 = vmatmul.f32.gmra.mxu0 %v434
        %v1435 = vpop.f32.mrf.mxu0
        %v1436 = vadd.f32 0.0, %v1435
        %1437 = vmatmul.f32.gmra.mxu0 %v435
        %v1438 = vpop.f32.mrf.mxu0
        %v1439 = vadd.f32 0.0, %v1438
        %1440 = vmatmul.f32.gmra.mxu0 %v436
        %v1441 = vpop.f32.mrf.mxu0
        %v1442 = vadd.f32 0.0, %v1441
        %1443 = vmatmul.f32.gmra.mxu0 %v437
        %v1444 = vpop.f32.mrf.mxu0
        %v1445 = vadd.f32 0.0, %v1444
        %1446 = vdwg.mxu0
        %1447 = vmatpush.msra.mxu0 %v1317
        %1448 = vmatpush.msra.mxu0 %v1316
        %1449 = vmatpush.msra.mxu0 %v1315
        %1450 = vmatpush.msra.mxu0 %v1314
        %1451 = vmatpush.msra.mxu0 %v1313
        %1452 = vmatpush.msra.mxu0 %v1312
        %1453 = vmatpush.msra.mxu0 %v1311
        %1454 = vmatpush.msra.mxu0 %v1310
        %1455 = vmatpush.msra.mxu0 %v1309
        %1456 = vmatpush.msra.mxu0 %v1308
        %1457 = vmatpush.msra.mxu0 %v1307
        %1458 = vmatpush.msra.mxu0 %v1306
        %1459 = vmatpush.msra.mxu0 %v1305
        %1460 = vmatpush.msra.mxu0 %v1304
        %1461 = vmatpush.msra.mxu0 %v1303
        %1462 = vmatpush.msra.mxu0 %v1302
        %1463 = vmatmul.f32.gmra.mxu0 %v442
        %v1464 = vpop.f32.mrf.mxu0
        %v1465 = vadd.f32 %v1352, %v1464
        %1466 = vmatmul.f32.gmra.mxu0 %v443
        %v1467 = vpop.f32.mrf.mxu0
        %v1468 = vadd.f32 %v1355, %v1467
        %1469 = vmatmul.f32.gmra.mxu0 %v444
        %v1470 = vpop.f32.mrf.mxu0
        %v1471 = vadd.f32 %v1358, %v1470
        %1472 = vmatmul.f32.gmra.mxu0 %v445
        %v1473 = vpop.f32.mrf.mxu0
        %v1474 = vadd.f32 %v1361, %v1473
        %1475 = vmatmul.f32.gmra.mxu0 %v446
        %v1476 = vpop.f32.mrf.mxu0
        %v1477 = vadd.f32 %v1364, %v1476
        %1478 = vmatmul.f32.gmra.mxu0 %v447
        %v1479 = vpop.f32.mrf.mxu0
        %v1480 = vadd.f32 %v1367, %v1479
        %1481 = vmatmul.f32.gmra.mxu0 %v448
        %v1482 = vpop.f32.mrf.mxu0
        %v1483 = vadd.f32 %v1370, %v1482
        %1484 = vmatmul.f32.gmra.mxu0 %v449
        %v1485 = vpop.f32.mrf.mxu0
        %v1486 = vadd.f32 %v1373, %v1485
        %1487 = vmatmul.f32.gmra.mxu0 %v450
        %v1488 = vpop.f32.mrf.mxu0
        %v1489 = vadd.f32 %v1376, %v1488
        %1490 = vmatmul.f32.gmra.mxu0 %v451
        %v1491 = vpop.f32.mrf.mxu0
        %v1492 = vadd.f32 %v1379, %v1491
        %1493 = vmatmul.f32.gmra.mxu0 %v452
        %v1494 = vpop.f32.mrf.mxu0
        %v1495 = vadd.f32 %v1382, %v1494
        %1496 = vmatmul.f32.gmra.mxu0 %v453
        %v1497 = vpop.f32.mrf.mxu0
        %v1498 = vadd.f32 %v1385, %v1497
        %1499 = vmatmul.f32.gmra.mxu0 %v454
        %v1500 = vpop.f32.mrf.mxu0
        %v1501 = vadd.f32 %v1388, %v1500
        %1502 = vmatmul.f32.gmra.mxu0 %v455
        %v1503 = vpop.f32.mrf.mxu0
        %v1504 = vadd.f32 %v1391, %v1503
        %1505 = vmatmul.f32.gmra.mxu0 %v456
        %v1506 = vpop.f32.mrf.mxu0
        %v1507 = vadd.f32 %v1394, %v1506
        %1508 = vmatmul.f32.gmra.mxu0 %v457
        %v1509 = vpop.f32.mrf.mxu0
        %v1510 = vadd.f32 %v1397, %v1509
        %1511 = vmatmul.f32.gmra.mxu0 %v458
        %v1512 = vpop.f32.mrf.mxu0
        %v1513 = vadd.f32 %v1400, %v1512
        %1514 = vmatmul.f32.gmra.mxu0 %v459
        %v1515 = vpop.f32.mrf.mxu0
        %v1516 = vadd.f32 %v1403, %v1515
        %1517 = vmatmul.f32.gmra.mxu0 %v460
        %v1518 = vpop.f32.mrf.mxu0
        %v1519 = vadd.f32 %v1406, %v1518
        %1520 = vmatmul.f32.gmra.mxu0 %v461
        %v1521 = vpop.f32.mrf.mxu0
        %v1522 = vadd.f32 %v1409, %v1521
        %1523 = vmatmul.f32.gmra.mxu0 %v462
        %v1524 = vpop.f32.mrf.mxu0
        %v1525 = vadd.f32 %v1412, %v1524
        %1526 = vmatmul.f32.gmra.mxu0 %v463
        %v1527 = vpop.f32.mrf.mxu0
        %v1528 = vadd.f32 %v1415, %v1527
        %1529 = vmatmul.f32.gmra.mxu0 %v464
        %v1530 = vpop.f32.mrf.mxu0
        %v1531 = vadd.f32 %v1418, %v1530
        %1532 = vmatmul.f32.gmra.mxu0 %v465
        %v1533 = vpop.f32.mrf.mxu0
        %v1534 = vadd.f32 %v1421, %v1533
        %1535 = vmatmul.f32.gmra.mxu0 %v466
        %v1536 = vpop.f32.mrf.mxu0
        %v1537 = vadd.f32 %v1424, %v1536
        %1538 = vmatmul.f32.gmra.mxu0 %v467
        %v1539 = vpop.f32.mrf.mxu0
        %v1540 = vadd.f32 %v1427, %v1539
        %1541 = vmatmul.f32.gmra.mxu0 %v468
        %v1542 = vpop.f32.mrf.mxu0
        %v1543 = vadd.f32 %v1430, %v1542
        %1544 = vmatmul.f32.gmra.mxu0 %v469
        %v1545 = vpop.f32.mrf.mxu0
        %v1546 = vadd.f32 %v1433, %v1545
        %1547 = vmatmul.f32.gmra.mxu0 %v470
        %v1548 = vpop.f32.mrf.mxu0
        %v1549 = vadd.f32 %v1436, %v1548
        %1550 = vmatmul.f32.gmra.mxu0 %v471
        %v1551 = vpop.f32.mrf.mxu0
        %v1552 = vadd.f32 %v1439, %v1551
        %1553 = vmatmul.f32.gmra.mxu0 %v472
        %v1554 = vpop.f32.mrf.mxu0
        %v1555 = vadd.f32 %v1442, %v1554
        %1556 = vmatmul.f32.gmra.mxu0 %v473
        %v1557 = vpop.f32.mrf.mxu0
        %v1558 = vadd.f32 %v1445, %v1557
        %1559 = vdwg.mxu0
        %1560 = vmatpush.msra.mxu0 %v1333
        %1561 = vmatpush.msra.mxu0 %v1332
        %1562 = vmatpush.msra.mxu0 %v1331
        %1563 = vmatpush.msra.mxu0 %v1330
        %1564 = vmatpush.msra.mxu0 %v1329
        %1565 = vmatpush.msra.mxu0 %v1328
        %1566 = vmatpush.msra.mxu0 %v1327
        %1567 = vmatpush.msra.mxu0 %v1326
        %1568 = vmatpush.msra.mxu0 %v1325
        %1569 = vmatpush.msra.mxu0 %v1324
        %1570 = vmatpush.msra.mxu0 %v1323
        %1571 = vmatpush.msra.mxu0 %v1322
        %1572 = vmatpush.msra.mxu0 %v1321
        %1573 = vmatpush.msra.mxu0 %v1320
        %1574 = vmatpush.msra.mxu0 %v1319
        %1575 = vmatpush.msra.mxu0 %v1318
        %1576 = vmatmul.f32.gmra.mxu0 %v478
        %v1577 = vpop.f32.mrf.mxu0
        %v1578 = vadd.f32 %v1465, %v1577
        %1579 = vmatmul.f32.gmra.mxu0 %v479
        %v1580 = vpop.f32.mrf.mxu0
        %v1581 = vadd.f32 %v1468, %v1580
        %1582 = vmatmul.f32.gmra.mxu0 %v480
        %v1583 = vpop.f32.mrf.mxu0
        %v1584 = vadd.f32 %v1471, %v1583
        %1585 = vmatmul.f32.gmra.mxu0 %v481
        %v1586 = vpop.f32.mrf.mxu0
        %v1587 = vadd.f32 %v1474, %v1586
        %1588 = vmatmul.f32.gmra.mxu0 %v482
        %v1589 = vpop.f32.mrf.mxu0
        %v1590 = vadd.f32 %v1477, %v1589
        %1591 = vmatmul.f32.gmra.mxu0 %v483
        %v1592 = vpop.f32.mrf.mxu0
        %v1593 = vadd.f32 %v1480, %v1592
        %1594 = vmatmul.f32.gmra.mxu0 %v484
        %v1595 = vpop.f32.mrf.mxu0
        %v1596 = vadd.f32 %v1483, %v1595
        %1597 = vmatmul.f32.gmra.mxu0 %v485
        %v1598 = vpop.f32.mrf.mxu0
        %v1599 = vadd.f32 %v1486, %v1598
        %1600 = vmatmul.f32.gmra.mxu0 %v486
        %v1601 = vpop.f32.mrf.mxu0
        %v1602 = vadd.f32 %v1489, %v1601
        %1603 = vmatmul.f32.gmra.mxu0 %v487
        %v1604 = vpop.f32.mrf.mxu0
        %v1605 = vadd.f32 %v1492, %v1604
        %1606 = vmatmul.f32.gmra.mxu0 %v488
        %v1607 = vpop.f32.mrf.mxu0
        %v1608 = vadd.f32 %v1495, %v1607
        %1609 = vmatmul.f32.gmra.mxu0 %v489
        %v1610 = vpop.f32.mrf.mxu0
        %v1611 = vadd.f32 %v1498, %v1610
        %1612 = vmatmul.f32.gmra.mxu0 %v490
        %v1613 = vpop.f32.mrf.mxu0
        %v1614 = vadd.f32 %v1501, %v1613
        %1615 = vmatmul.f32.gmra.mxu0 %v491
        %v1616 = vpop.f32.mrf.mxu0
        %v1617 = vadd.f32 %v1504, %v1616
        %1618 = vmatmul.f32.gmra.mxu0 %v492
        %v1619 = vpop.f32.mrf.mxu0
        %v1620 = vadd.f32 %v1507, %v1619
        %1621 = vmatmul.f32.gmra.mxu0 %v493
        %v1622 = vpop.f32.mrf.mxu0
        %v1623 = vadd.f32 %v1510, %v1622
        %1624 = vmatmul.f32.gmra.mxu0 %v494
        %v1625 = vpop.f32.mrf.mxu0
        %v1626 = vadd.f32 %v1513, %v1625
        %1627 = vmatmul.f32.gmra.mxu0 %v495
        %v1628 = vpop.f32.mrf.mxu0
        %v1629 = vadd.f32 %v1516, %v1628
        %1630 = vmatmul.f32.gmra.mxu0 %v496
        %v1631 = vpop.f32.mrf.mxu0
        %v1632 = vadd.f32 %v1519, %v1631
        %1633 = vmatmul.f32.gmra.mxu0 %v497
        %v1634 = vpop.f32.mrf.mxu0
        %v1635 = vadd.f32 %v1522, %v1634
        %1636 = vmatmul.f32.gmra.mxu0 %v498
        %v1637 = vpop.f32.mrf.mxu0
        %v1638 = vadd.f32 %v1525, %v1637
        %1639 = vmatmul.f32.gmra.mxu0 %v499
        %v1640 = vpop.f32.mrf.mxu0
        %v1641 = vadd.f32 %v1528, %v1640
        %1642 = vmatmul.f32.gmra.mxu0 %v500
        %v1643 = vpop.f32.mrf.mxu0
        %v1644 = vadd.f32 %v1531, %v1643
        %1645 = vmatmul.f32.gmra.mxu0 %v501
        %v1646 = vpop.f32.mrf.mxu0
        %v1647 = vadd.f32 %v1534, %v1646
        %1648 = vmatmul.f32.gmra.mxu0 %v502
        %v1649 = vpop.f32.mrf.mxu0
        %v1650 = vadd.f32 %v1537, %v1649
        %1651 = vmatmul.f32.gmra.mxu0 %v503
        %v1652 = vpop.f32.mrf.mxu0
        %v1653 = vadd.f32 %v1540, %v1652
        %1654 = vmatmul.f32.gmra.mxu0 %v504
        %v1655 = vpop.f32.mrf.mxu0
        %v1656 = vadd.f32 %v1543, %v1655
        %1657 = vmatmul.f32.gmra.mxu0 %v505
        %v1658 = vpop.f32.mrf.mxu0
        %v1659 = vadd.f32 %v1546, %v1658
        %1660 = vmatmul.f32.gmra.mxu0 %v506
        %v1661 = vpop.f32.mrf.mxu0
        %v1662 = vadd.f32 %v1549, %v1661
        %1663 = vmatmul.f32.gmra.mxu0 %v507
        %v1664 = vpop.f32.mrf.mxu0
        %v1665 = vadd.f32 %v1552, %v1664
        %1666 = vmatmul.f32.gmra.mxu0 %v508
        %v1667 = vpop.f32.mrf.mxu0
        %v1668 = vadd.f32 %v1555, %v1667
        %1669 = vmatmul.f32.gmra.mxu0 %v509
        %v1670 = vpop.f32.mrf.mxu0
        %v1671 = vadd.f32 %v1558, %v1670
        %1672 = vdwg.mxu0
        %v1673 = vadd.f32 %v1190, %v1578
        %v1674 = vadd.f32 %v1193, %v1581
        %v1675 = vadd.f32 %v1196, %v1584
        %v1676 = vadd.f32 %v1199, %v1587
        %v1677 = vadd.f32 %v1202, %v1590
        %v1678 = vadd.f32 %v1205, %v1593
        %v1679 = vadd.f32 %v1208, %v1596
        %v1680 = vadd.f32 %v1211, %v1599
        %v1681 = vadd.f32 %v1214, %v1602
        %v1682 = vadd.f32 %v1217, %v1605
        %v1683 = vadd.f32 %v1220, %v1608
        %v1684 = vadd.f32 %v1223, %v1611
        %v1685 = vadd.f32 %v1226, %v1614
        %v1686 = vadd.f32 %v1229, %v1617
        %v1687 = vadd.f32 %v1232, %v1620
        %v1688 = vadd.f32 %v1235, %v1623
        %v1689 = vadd.f32 %v1238, %v1626
        %v1690 = vadd.f32 %v1241, %v1629
        %v1691 = vadd.f32 %v1244, %v1632
        %v1692 = vadd.f32 %v1247, %v1635
        %v1693 = vadd.f32 %v1250, %v1638
        %v1694 = vadd.f32 %v1253, %v1641
        %v1695 = vadd.f32 %v1256, %v1644
        %v1696 = vadd.f32 %v1259, %v1647
        %v1697 = vadd.f32 %v1262, %v1650
        %v1698 = vadd.f32 %v1265, %v1653
        %v1699 = vadd.f32 %v1268, %v1656
        %v1700 = vadd.f32 %v1271, %v1659
        %v1701 = vadd.f32 %v1274, %v1662
        %v1702 = vadd.f32 %v1277, %v1665
        %v1703 = vadd.f32 %v1280, %v1668
        %v1704 = vadd.f32 %v1283, %v1671
        %v1705 = vld [vmem:[%s2] sm:$0x1]
        %v1707 = vperm.slane %v1705, 0
        %v1709 = vadd.f32 %v1673, %v1707
        %v1710 = vadd.f32 %v1674, %v1707
        %v1711 = vadd.f32 %v1675, %v1707
        %v1712 = vadd.f32 %v1676, %v1707
        %v1713 = vadd.f32 %v1677, %v1707
        %v1714 = vadd.f32 %v1678, %v1707
        %v1715 = vadd.f32 %v1679, %v1707
        %v1716 = vadd.f32 %v1680, %v1707
        %v1717 = vadd.f32 %v1681, %v1707
        %v1718 = vadd.f32 %v1682, %v1707
        %v1719 = vadd.f32 %v1683, %v1707
        %v1720 = vadd.f32 %v1684, %v1707
        %v1721 = vadd.f32 %v1685, %v1707
        %v1722 = vadd.f32 %v1686, %v1707
        %v1723 = vadd.f32 %v1687, %v1707
        %v1724 = vadd.f32 %v1688, %v1707
        %v1725 = vadd.f32 %v1689, %v1707
        %v1726 = vadd.f32 %v1690, %v1707
        %v1727 = vadd.f32 %v1691, %v1707
        %v1728 = vadd.f32 %v1692, %v1707
        %v1729 = vadd.f32 %v1693, %v1707
        %v1730 = vadd.f32 %v1694, %v1707
        %v1731 = vadd.f32 %v1695, %v1707
        %v1732 = vadd.f32 %v1696, %v1707
        %v1733 = vadd.f32 %v1697, %v1707
        %v1734 = vadd.f32 %v1698, %v1707
        %v1735 = vadd.f32 %v1699, %v1707
        %v1736 = vadd.f32 %v1700, %v1707
        %v1737 = vadd.f32 %v1701, %v1707
        %v1738 = vadd.f32 %v1702, %v1707
        %v1739 = vadd.f32 %v1703, %v1707
        %v1740 = vadd.f32 %v1704, %v1707
        %v1741 = vadd.f32 %v1709, %v1710
        %v1742 = vadd.f32 %v1741, %v1711
        %v1743 = vadd.f32 %v1742, %v1712
        %v1744 = vadd.f32 %v1743, %v1713
        %v1745 = vadd.f32 %v1744, %v1714
        %v1746 = vadd.f32 %v1745, %v1715
        %v1747 = vadd.f32 %v1746, %v1716
        %v1748 = vadd.f32 %v1747, %v1717
        %v1749 = vadd.f32 %v1748, %v1718
        %v1750 = vadd.f32 %v1749, %v1719
        %v1751 = vadd.f32 %v1750, %v1720
        %v1752 = vadd.f32 %v1751, %v1721
        %v1753 = vadd.f32 %v1752, %v1722
        %v1754 = vadd.f32 %v1753, %v1723
        %v1755 = vadd.f32 %v1754, %v1724
        %v1756 = vadd.f32 %v1755, %v1725
        %v1757 = vadd.f32 %v1756, %v1726
        %v1758 = vadd.f32 %v1757, %v1727
        %v1759 = vadd.f32 %v1758, %v1728
        %v1760 = vadd.f32 %v1759, %v1729
        %v1761 = vadd.f32 %v1760, %v1730
        %v1762 = vadd.f32 %v1761, %v1731
        %v1763 = vadd.f32 %v1762, %v1732
        %v1764 = vadd.f32 %v1763, %v1733
        %v1765 = vadd.f32 %v1764, %v1734
        %v1766 = vadd.f32 %v1765, %v1735
        %v1767 = vadd.f32 %v1766, %v1736
        %v1768 = vadd.f32 %v1767, %v1737
        %v1769 = vadd.f32 %v1768, %v1738
        %v1770 = vadd.f32 %v1769, %v1739
        %v1771 = vadd.f32 %v1770, %v1740
        %v1772 = vrot.slane %v1771, 4
        %v1773 = vadd.f32 %v1771, %v1772
        %v1774 = vrot.slane %v1773, 2
        %v1775 = vadd.f32 %v1773, %v1774
        %v1776 = vrot.slane %v1775, 1
        %v1777 = vadd.f32 %v1775, %v1776
        %v1778 = vmul.f32 %v1777, 0.00390625
        %v1779 = vsub.f32 %v1709, %v1778
        %v1780 = vsub.f32 %v1710, %v1778
        %v1781 = vsub.f32 %v1711, %v1778
        %v1782 = vsub.f32 %v1712, %v1778
        %v1783 = vsub.f32 %v1713, %v1778
        %v1784 = vsub.f32 %v1714, %v1778
        %v1785 = vsub.f32 %v1715, %v1778
        %v1786 = vsub.f32 %v1716, %v1778
        %v1787 = vsub.f32 %v1717, %v1778
        %v1788 = vsub.f32 %v1718, %v1778
        %v1789 = vsub.f32 %v1719, %v1778
        %v1790 = vsub.f32 %v1720, %v1778
        %v1791 = vsub.f32 %v1721, %v1778
        %v1792 = vsub.f32 %v1722, %v1778
        %v1793 = vsub.f32 %v1723, %v1778
        %v1794 = vsub.f32 %v1724, %v1778
        %v1795 = vsub.f32 %v1725, %v1778
        %v1796 = vsub.f32 %v1726, %v1778
        %v1797 = vsub.f32 %v1727, %v1778
        %v1798 = vsub.f32 %v1728, %v1778
        %v1799 = vsub.f32 %v1729, %v1778
        %v1800 = vsub.f32 %v1730, %v1778
        %v1801 = vsub.f32 %v1731, %v1778
        %v1802 = vsub.f32 %v1732, %v1778
        %v1803 = vsub.f32 %v1733, %v1778
        %v1804 = vsub.f32 %v1734, %v1778
        %v1805 = vsub.f32 %v1735, %v1778
        %v1806 = vsub.f32 %v1736, %v1778
        %v1807 = vsub.f32 %v1737, %v1778
        %v1808 = vsub.f32 %v1738, %v1778
        %v1809 = vsub.f32 %v1739, %v1778
        %v1810 = vsub.f32 %v1740, %v1778
        %v1811 = vmul.f32 %v1779, %v1779
        %v1812 = vmul.f32 %v1780, %v1780
        %v1813 = vmul.f32 %v1781, %v1781
        %v1814 = vmul.f32 %v1782, %v1782
        %v1815 = vmul.f32 %v1783, %v1783
        %v1816 = vmul.f32 %v1784, %v1784
        %v1817 = vmul.f32 %v1785, %v1785
        %v1818 = vmul.f32 %v1786, %v1786
        %v1819 = vmul.f32 %v1787, %v1787
        %v1820 = vmul.f32 %v1788, %v1788
        %v1821 = vmul.f32 %v1789, %v1789
        %v1822 = vmul.f32 %v1790, %v1790
        %v1823 = vmul.f32 %v1791, %v1791
        %v1824 = vmul.f32 %v1792, %v1792
        %v1825 = vmul.f32 %v1793, %v1793
        %v1826 = vmul.f32 %v1794, %v1794
        %v1827 = vmul.f32 %v1795, %v1795
        %v1828 = vmul.f32 %v1796, %v1796
        %v1829 = vmul.f32 %v1797, %v1797
        %v1830 = vmul.f32 %v1798, %v1798
        %v1831 = vmul.f32 %v1799, %v1799
        %v1832 = vmul.f32 %v1800, %v1800
        %v1833 = vmul.f32 %v1801, %v1801
        %v1834 = vmul.f32 %v1802, %v1802
        %v1835 = vmul.f32 %v1803, %v1803
        %v1836 = vmul.f32 %v1804, %v1804
        %v1837 = vmul.f32 %v1805, %v1805
        %v1838 = vmul.f32 %v1806, %v1806
        %v1839 = vmul.f32 %v1807, %v1807
        %v1840 = vmul.f32 %v1808, %v1808
        %v1841 = vmul.f32 %v1809, %v1809
        %v1842 = vmul.f32 %v1810, %v1810
        %v1843 = vadd.f32 %v1811, %v1812
        %v1844 = vadd.f32 %v1843, %v1813
        %v1845 = vadd.f32 %v1844, %v1814
        %v1846 = vadd.f32 %v1845, %v1815
        %v1847 = vadd.f32 %v1846, %v1816
        %v1848 = vadd.f32 %v1847, %v1817
        %v1849 = vadd.f32 %v1848, %v1818
        %v1850 = vadd.f32 %v1849, %v1819
        %v1851 = vadd.f32 %v1850, %v1820
        %v1852 = vadd.f32 %v1851, %v1821
        %v1853 = vadd.f32 %v1852, %v1822
        %v1854 = vadd.f32 %v1853, %v1823
        %v1855 = vadd.f32 %v1854, %v1824
        %v1856 = vadd.f32 %v1855, %v1825
        %v1857 = vadd.f32 %v1856, %v1826
        %v1858 = vadd.f32 %v1857, %v1827
        %v1859 = vadd.f32 %v1858, %v1828
        %v1860 = vadd.f32 %v1859, %v1829
        %v1861 = vadd.f32 %v1860, %v1830
        %v1862 = vadd.f32 %v1861, %v1831
        %v1863 = vadd.f32 %v1862, %v1832
        %v1864 = vadd.f32 %v1863, %v1833
        %v1865 = vadd.f32 %v1864, %v1834
        %v1866 = vadd.f32 %v1865, %v1835
        %v1867 = vadd.f32 %v1866, %v1836
        %v1868 = vadd.f32 %v1867, %v1837
        %v1869 = vadd.f32 %v1868, %v1838
        %v1870 = vadd.f32 %v1869, %v1839
        %v1871 = vadd.f32 %v1870, %v1840
        %v1872 = vadd.f32 %v1871, %v1841
        %v1873 = vadd.f32 %v1872, %v1842
        %v1874 = vrot.slane %v1873, 4
        %v1875 = vadd.f32 %v1873, %v1874
        %v1876 = vrot.slane %v1875, 2
        %v1877 = vadd.f32 %v1875, %v1876
        %v1878 = vrot.slane %v1877, 1
        %v1879 = vadd.f32 %v1877, %v1878
        %v1880 = vmul.f32 %v1879, 0.00390625
        %v1881 = vadd.f32 %v1880, 1e-05
        %v1882 = vrsqrt.pop %v1881
        %v1883 = vmul.f32 %v1882, %v1881
        %v1884 = vmul.f32 %v1883, %v1882
        %v1885 = vmul.f32 0.5, %v1884
        %v1886 = vsub.f32 1.5, %v1885
        %v1887 = vmul.f32 %v1882, %v1886
        %vm1888 = vweird.f32 %v1881
        %vm1889 = vweird.f32 %v1882
        %vm1890 = vmor %vm1888, %vm1889
        %v1891 = vsel %vm1890, %v1882, %v1887
        %v1892 = vmul.f32 %v1779, %v1891
        %v1893 = vmul.f32 %v1780, %v1891
        %v1894 = vmul.f32 %v1781, %v1891
        %v1895 = vmul.f32 %v1782, %v1891
        %v1896 = vmul.f32 %v1783, %v1891
        %v1897 = vmul.f32 %v1784, %v1891
        %v1898 = vmul.f32 %v1785, %v1891
        %v1899 = vmul.f32 %v1786, %v1891
        %v1900 = vmul.f32 %v1787, %v1891
        %v1901 = vmul.f32 %v1788, %v1891
        %v1902 = vmul.f32 %v1789, %v1891
        %v1903 = vmul.f32 %v1790, %v1891
        %v1904 = vmul.f32 %v1791, %v1891
        %v1905 = vmul.f32 %v1792, %v1891
        %v1906 = vmul.f32 %v1793, %v1891
        %v1907 = vmul.f32 %v1794, %v1891
        %v1908 = vmul.f32 %v1795, %v1891
        %v1909 = vmul.f32 %v1796, %v1891
        %v1910 = vmul.f32 %v1797, %v1891
        %v1911 = vmul.f32 %v1798, %v1891
        %v1912 = vmul.f32 %v1799, %v1891
        %v1913 = vmul.f32 %v1800, %v1891
        %v1914 = vmul.f32 %v1801, %v1891
        %v1915 = vmul.f32 %v1802, %v1891
        %v1916 = vmul.f32 %v1803, %v1891
        %v1917 = vmul.f32 %v1804, %v1891
        %v1918 = vmul.f32 %v1805, %v1891
        %v1919 = vmul.f32 %v1806, %v1891
        %v1920 = vmul.f32 %v1807, %v1891
        %v1921 = vmul.f32 %v1808, %v1891
        %v1922 = vmul.f32 %v1809, %v1891
        %v1923 = vmul.f32 %v1810, %v1891
        %v1924 = vmax.f32 %v1892, 0.0
        %v1925 = vmax.f32 %v1893, 0.0
        %v1926 = vmax.f32 %v1894, 0.0
        %v1927 = vmax.f32 %v1895, 0.0
        %v1928 = vmax.f32 %v1896, 0.0
        %v1929 = vmax.f32 %v1897, 0.0
        %v1930 = vmax.f32 %v1898, 0.0
        %v1931 = vmax.f32 %v1899, 0.0
        %v1932 = vmax.f32 %v1900, 0.0
        %v1933 = vmax.f32 %v1901, 0.0
        %v1934 = vmax.f32 %v1902, 0.0
        %v1935 = vmax.f32 %v1903, 0.0
        %v1936 = vmax.f32 %v1904, 0.0
        %v1937 = vmax.f32 %v1905, 0.0
        %v1938 = vmax.f32 %v1906, 0.0
        %v1939 = vmax.f32 %v1907, 0.0
        %v1940 = vmax.f32 %v1908, 0.0
        %v1941 = vmax.f32 %v1909, 0.0
        %v1942 = vmax.f32 %v1910, 0.0
        %v1943 = vmax.f32 %v1911, 0.0
        %v1944 = vmax.f32 %v1912, 0.0
        %v1945 = vmax.f32 %v1913, 0.0
        %v1946 = vmax.f32 %v1914, 0.0
        %v1947 = vmax.f32 %v1915, 0.0
        %v1948 = vmax.f32 %v1916, 0.0
        %v1949 = vmax.f32 %v1917, 0.0
        %v1950 = vmax.f32 %v1918, 0.0
        %v1951 = vmax.f32 %v1919, 0.0
        %v1952 = vmax.f32 %v1920, 0.0
        %v1953 = vmax.f32 %v1921, 0.0
        %v1954 = vmax.f32 %v1922, 0.0
        %v1955 = vmax.f32 %v1923, 0.0
        %1956 = vst [vmem:[%s369 + $0x8] sm:$0xff] %v1924
        %1957 = vst [vmem:[%s369 + $0x10] sm:$0xff] %v1925
        %1958 = vst [vmem:[%s369 + $0x28] sm:$0xff] %v1926
        %1959 = vst [vmem:[%s369 + $0x30] sm:$0xff] %v1927
        %1960 = vst [vmem:[%s369 + $0x48] sm:$0xff] %v1928
        %1961 = vst [vmem:[%s369 + $0x50] sm:$0xff] %v1929
        %1962 = vst [vmem:[%s369 + $0x68] sm:$0xff] %v1930
        %1963 = vst [vmem:[%s369 + $0x70] sm:$0xff] %v1931
        %1964 = vst [vmem:[%s369 + $0x88] sm:$0xff] %v1932
        %1965 = vst [vmem:[%s369 + $0x90] sm:$0xff] %v1933
        %1966 = vst [vmem:[%s369 + $0xa8] sm:$0xff] %v1934
        %1967 = vst [vmem:[%s369 + $0xb0] sm:$0xff] %v1935
        %1968 = vst [vmem:[%s369 + $0xc8] sm:$0xff] %v1936
        %1969 = vst [vmem:[%s369 + $0xd0] sm:$0xff] %v1937
        %1970 = vst [vmem:[%s369 + $0xe8] sm:$0xff] %v1938
        %1971 = vst [vmem:[%s369 + $0xf0] sm:$0xff] %v1939
        %1972 = vst [vmem:[%s369 + $0x108] sm:$0xff] %v1940
        %1973 = vst [vmem:[%s369 + $0x110] sm:$0xff] %v1941
        %1974 = vst [vmem:[%s369 + $0x128] sm:$0xff] %v1942
        %1975 = vst [vmem:[%s369 + $0x130] sm:$0xff] %v1943
        %1976 = vst [vmem:[%s369 + $0x148] sm:$0xff] %v1944
        %1977 = vst [vmem:[%s369 + $0x150] sm:$0xff] %v1945
        %1978 = vst [vmem:[%s369 + $0x168] sm:$0xff] %v1946
        %1979 = vst [vmem:[%s369 + $0x170] sm:$0xff] %v1947
        %1980 = vst [vmem:[%s369 + $0x188] sm:$0xff] %v1948
        %1981 = vst [vmem:[%s369 + $0x190] sm:$0xff] %v1949
        %1982 = vst [vmem:[%s369 + $0x1a8] sm:$0xff] %v1950
        %1983 = vst [vmem:[%s369 + $0x1b0] sm:$0xff] %v1951
        %1984 = vst [vmem:[%s369 + $0x1c8] sm:$0xff] %v1952
        %1985 = vst [vmem:[%s369 + $0x1d0] sm:$0xff] %v1953
        %1986 = vst [vmem:[%s369 + $0x1e8] sm:$0xff] %v1954
        %1987 = vst [vmem:[%s369 + $0x1f0] sm:$0xff] %v1955
        %v1988 = vld [vmem:[#allocation2 + $0x7] sm:$0xff]
        %v1989 = vld [vmem:[#allocation2 + $0xf] sm:$0xff]
        %v1990 = vld [vmem:[#allocation2 + $0x27] sm:$0xff]
        %v1991 = vld [vmem:[#allocation2 + $0x2f] sm:$0xff]
        %v1992 = vld [vmem:[#allocation2 + $0x47] sm:$0xff]
        %v1993 = vld [vmem:[#allocation2 + $0x4f] sm:$0xff]
        %v1994 = vld [vmem:[#allocation2 + $0x67] sm:$0xff]
        %v1995 = vld [vmem:[#allocation2 + $0x6f] sm:$0xff]
        %v1996 = vld [vmem:[#allocation2 + $0x87] sm:$0xff]
        %v1997 = vld [vmem:[#allocation2 + $0x8f] sm:$0xff]
        %v1998 = vld [vmem:[#allocation2 + $0xa7] sm:$0xff]
        %v1999 = vld [vmem:[#allocation2 + $0xaf] sm:$0xff]
        %v2000 = vld [vmem:[#allocation2 + $0xc7] sm:$0xff]
        %v2001 = vld [vmem:[#allocation2 + $0xcf] sm:$0xff]
        %v2002 = vld [vmem:[#allocation2 + $0xe7] sm:$0xff]
        %v2003 = vld [vmem:[#allocation2 + $0xef] sm:$0xff]
        %v2004 = vld [vmem:[#allocation2 + $0x107] sm:$0xff]
        %v2005 = vld [vmem:[#allocation2 + $0x10f] sm:$0xff]
        %v2006 = vld [vmem:[#allocation2 + $0x127] sm:$0xff]
        %v2007 = vld [vmem:[#allocation2 + $0x12f] sm:$0xff]
        %v2008 = vld [vmem:[#allocation2 + $0x147] sm:$0xff]
        %v2009 = vld [vmem:[#allocation2 + $0x14f] sm:$0xff]
        %v2010 = vld [vmem:[#allocation2 + $0x167] sm:$0xff]
        %v2011 = vld [vmem:[#allocation2 + $0x16f] sm:$0xff]
        %v2012 = vld [vmem:[#allocation2 + $0x187] sm:$0xff]
        %v2013 = vld [vmem:[#allocation2 + $0x18f] sm:$0xff]
        %v2014 = vld [vmem:[#allocation2 + $0x1a7] sm:$0xff]
        %v2015 = vld [vmem:[#allocation2 + $0x1af] sm:$0xff]
        %v2016 = vld [vmem:[#allocation2 + $0x1c7] sm:$0xff]
        %v2017 = vld [vmem:[#allocation2 + $0x1cf] sm:$0xff]
        %v2018 = vld [vmem:[#allocation2 + $0x1e7] sm:$0xff]
        %v2019 = vld [vmem:[#allocation2 + $0x1ef] sm:$0xff]
        %v2020 = vld [vmem:[#allocation2 + $0x207] sm:$0xff]
        %v2021 = vld [vmem:[#allocation2 + $0x20f] sm:$0xff]
        %v2022 = vld [vmem:[#allocation2 + $0x227] sm:$0xff]
        %v2023 = vld [vmem:[#allocation2 + $0x22f] sm:$0xff]
        %v2024 = vld [vmem:[#allocation2 + $0x8] sm:$0xff]
        %v2025 = vld [vmem:[#allocation2 + $0x10] sm:$0xff]
        %v2026 = vld [vmem:[#allocation2 + $0x28] sm:$0xff]
        %v2027 = vld [vmem:[#allocation2 + $0x30] sm:$0xff]
        %v2028 = vld [vmem:[#allocation2 + $0x48] sm:$0xff]
        %v2029 = vld [vmem:[#allocation2 + $0x50] sm:$0xff]
        %v2030 = vld [vmem:[#allocation2 + $0x68] sm:$0xff]
        %v2031 = vld [vmem:[#allocation2 + $0x70] sm:$0xff]
        %v2032 = vld [vmem:[#allocation2 + $0x88] sm:$0xff]
        %v2033 = vld [vmem:[#allocation2 + $0x90] sm:$0xff]
        %v2034 = vld [vmem:[#allocation2 + $0xa8] sm:$0xff]
        %v2035 = vld [vmem:[#allocation2 + $0xb0] sm:$0xff]
        %v2036 = vld [vmem:[#allocation2 + $0xc8] sm:$0xff]
        %v2037 = vld [vmem:[#allocation2 + $0xd0] sm:$0xff]
        %v2038 = vld [vmem:[#allocation2 + $0xe8] sm:$0xff]
        %v2039 = vld [vmem:[#allocation2 + $0xf0] sm:$0xff]
        %v2040 = vld [vmem:[#allocation2 + $0x108] sm:$0xff]
        %v2041 = vld [vmem:[#allocation2 + $0x110] sm:$0xff]
        %v2042 = vld [vmem:[#allocation2 + $0x128] sm:$0xff]
        %v2043 = vld [vmem:[#allocation2 + $0x130] sm:$0xff]
        %v2044 = vld [vmem:[#allocation2 + $0x148] sm:$0xff]
        %v2045 = vld [vmem:[#allocation2 + $0x150] sm:$0xff]
        %v2046 = vld [vmem:[#allocation2 + $0x168] sm:$0xff]
        %v2047 = vld [vmem:[#allocation2 + $0x170] sm:$0xff]
        %v2048 = vld [vmem:[#allocation2 + $0x188] sm:$0xff]
        %v2049 = vld [vmem:[#allocation2 + $0x190] sm:$0xff]
        %v2050 = vld [vmem:[#allocation2 + $0x1a8] sm:$0xff]
        %v2051 = vld [vmem:[#allocation2 + $0x1b0] sm:$0xff]
        %v2052 = vld [vmem:[#allocation2 + $0x1c8] sm:$0xff]
        %v2053 = vld [vmem:[#allocation2 + $0x1d0] sm:$0xff]
        %v2054 = vld [vmem:[#allocation2 + $0x1e8] sm:$0xff]
        %v2055 = vld [vmem:[#allocation2 + $0x1f0] sm:$0xff]
        %v2056 = vld [vmem:[#allocation2 + $0x208] sm:$0xff]
        %v2057 = vld [vmem:[#allocation2 + $0x210] sm:$0xff]
        %v2058 = vld [vmem:[#allocation2 + $0x228] sm:$0xff]
        %v2059 = vld [vmem:[#allocation2 + $0x230] sm:$0xff]
        %v2060 = vld [vmem:[#allocation2 + $0x9] sm:$0xff]
        %v2061 = vld [vmem:[#allocation2 + $0x11] sm:$0xff]
        %v2062 = vld [vmem:[#allocation2 + $0x29] sm:$0xff]
        %v2063 = vld [vmem:[#allocation2 + $0x31] sm:$0xff]
        %v2064 = vld [vmem:[#allocation2 + $0x49] sm:$0xff]
        %v2065 = vld [vmem:[#allocation2 + $0x51] sm:$0xff]
        %v2066 = vld [vmem:[#allocation2 + $0x69] sm:$0xff]
        %v2067 = vld [vmem:[#allocation2 + $0x71] sm:$0xff]
        %v2068 = vld [vmem:[#allocation2 + $0x89] sm:$0xff]
        %v2069 = vld [vmem:[#allocation2 + $0x91] sm:$0xff]
        %v2070 = vld [vmem:[#allocation2 + $0xa9] sm:$0xff]
        %v2071 = vld [vmem:[#allocation2 + $0xb1] sm:$0xff]
        %v2072 = vld [vmem:[#allocation2 + $0xc9] sm:$0xff]
        %v2073 = vld [vmem:[#allocation2 + $0xd1] sm:$0xff]
        %v2074 = vld [vmem:[#allocation2 + $0xe9] sm:$0xff]
        %v2075 = vld [vmem:[#allocation2 + $0xf1] sm:$0xff]
        %v2076 = vld [vmem:[#allocation2 + $0x109] sm:$0xff]
        %v2077 = vld [vmem:[#allocation2 + $0x111] sm:$0xff]
        %v2078 = vld [vmem:[#allocation2 + $0x129] sm:$0xff]
        %v2079 = vld [vmem:[#allocation2 + $0x131] sm:$0xff]
        %v2080 = vld [vmem:[#allocation2 + $0x149] sm:$0xff]
        %v2081 = vld [vmem:[#allocation2 + $0x151] sm:$0xff]
        %v2082 = vld [vmem:[#allocation2 + $0x169] sm:$0xff]
        %v2083 = vld [vmem:[#allocation2 + $0x171] sm:$0xff]
        %v2084 = vld [vmem:[#allocation2 + $0x189] sm:$0xff]
        %v2085 = vld [vmem:[#allocation2 + $0x191] sm:$0xff]
        %v2086 = vld [vmem:[#allocation2 + $0x1a9] sm:$0xff]
        %v2087 = vld [vmem:[#allocation2 + $0x1b1] sm:$0xff]
        %v2088 = vld [vmem:[#allocation2 + $0x1c9] sm:$0xff]
        %v2089 = vld [vmem:[#allocation2 + $0x1d1] sm:$0xff]
        %v2090 = vld [vmem:[#allocation2 + $0x1e9] sm:$0xff]
        %v2091 = vld [vmem:[#allocation2 + $0x1f1] sm:$0xff]
        %v2092 = vld [vmem:[#allocation2 + $0x209] sm:$0xff]
        %v2093 = vld [vmem:[#allocation2 + $0x211] sm:$0xff]
        %v2094 = vld [vmem:[#allocation2 + $0x229] sm:$0xff]
        %v2095 = vld [vmem:[#allocation2 + $0x231] sm:$0xff]
        %v2096 = vld [vmem:[#allocation5] sm:$0xff]
        %v2097 = vld [vmem:[#allocation5 + $0x8] sm:$0xff]
        %v2098 = vld [vmem:[#allocation5 + $0x10] sm:$0xff]
        %v2099 = vld [vmem:[#allocation5 + $0x18] sm:$0xff]
        %v2100 = vld [vmem:[#allocation5 + $0x20] sm:$0xff]
        %v2101 = vld [vmem:[#allocation5 + $0x28] sm:$0xff]
        %v2102 = vld [vmem:[#allocation5 + $0x30] sm:$0xff]
        %v2103 = vld [vmem:[#allocation5 + $0x38] sm:$0xff]
        %v2104 = vld [vmem:[#allocation5 + $0x40] sm:$0xff]
        %v2105 = vld [vmem:[#allocation5 + $0x48] sm:$0xff]
        %v2106 = vld [vmem:[#allocation5 + $0x50] sm:$0xff]
        %v2107 = vld [vmem:[#allocation5 + $0x58] sm:$0xff]
        %v2108 = vld [vmem:[#allocation5 + $0x60] sm:$0xff]
        %v2109 = vld [vmem:[#allocation5 + $0x68] sm:$0xff]
        %v2110 = vld [vmem:[#allocation5 + $0x70] sm:$0xff]
        %v2111 = vld [vmem:[#allocation5 + $0x78] sm:$0xff]
        %v2112 = vld [vmem:[#allocation5 + $0x80] sm:$0xff]
        %v2113 = vld [vmem:[#allocation5 + $0x88] sm:$0xff]
        %v2114 = vld [vmem:[#allocation5 + $0x90] sm:$0xff]
        %v2115 = vld [vmem:[#allocation5 + $0x98] sm:$0xff]
        %v2116 = vld [vmem:[#allocation5 + $0xa0] sm:$0xff]
        %v2117 = vld [vmem:[#allocation5 + $0xa8] sm:$0xff]
        %v2118 = vld [vmem:[#allocation5 + $0xb0] sm:$0xff]
        %v2119 = vld [vmem:[#allocation5 + $0xb8] sm:$0xff]
        %v2120 = vld [vmem:[#allocation5 + $0xc0] sm:$0xff]
        %v2121 = vld [vmem:[#allocation5 + $0xc8] sm:$0xff]
        %v2122 = vld [vmem:[#allocation5 + $0xd0] sm:$0xff]
        %v2123 = vld [vmem:[#allocation5 + $0xd8] sm:$0xff]
        %v2124 = vld [vmem:[#allocation5 + $0xe0] sm:$0xff]
        %v2125 = vld [vmem:[#allocation5 + $0xe8] sm:$0xff]
        %v2126 = vld [vmem:[#allocation5 + $0xf0] sm:$0xff]
        %v2127 = vld [vmem:[#allocation5 + $0xf8] sm:$0xff]
        %v2128 = vld [vmem:[#allocation5 + $0x100] sm:$0xff]
        %v2129 = vld [vmem:[#allocation5 + $0x108] sm:$0xff]
        %v2130 = vld [vmem:[#allocation5 + $0x110] sm:$0xff]
        %v2131 = vld [vmem:[#allocation5 + $0x118] sm:$0xff]
        %v2132 = vld [vmem:[#allocation5 + $0x120] sm:$0xff]
        %v2133 = vld [vmem:[#allocation5 + $0x128] sm:$0xff]
        %v2134 = vld [vmem:[#allocation5 + $0x130] sm:$0xff]
        %v2135 = vld [vmem:[#allocation5 + $0x138] sm:$0xff]
        %v2136 = vld [vmem:[#allocation5 + $0x140] sm:$0xff]
        %v2137 = vld [vmem:[#allocation5 + $0x148] sm:$0xff]
        %v2138 = vld [vmem:[#allocation5 + $0x150] sm:$0xff]
        %v2139 = vld [vmem:[#allocation5 + $0x158] sm:$0xff]
        %v2140 = vld [vmem:[#allocation5 + $0x160] sm:$0xff]
        %v2141 = vld [vmem:[#allocation5 + $0x168] sm:$0xff]
        %v2142 = vld [vmem:[#allocation5 + $0x170] sm:$0xff]
        %v2143 = vld [vmem:[#allocation5 + $0x178] sm:$0xff]
        %s2144 = scalar_lea.vmem [#allocation5], 384
        %v2145 = vld [vmem:[%s2144] sm:$0xff]
        %v2146 = vld [vmem:[%s2144 + $0x8] sm:$0xff]
        %v2147 = vld [vmem:[%s2144 + $0x10] sm:$0xff]
        %v2148 = vld [vmem:[%s2144 + $0x18] sm:$0xff]
        %v2149 = vld [vmem:[%s2144 + $0x20] sm:$0xff]
        %v2150 = vld [vmem:[%s2144 + $0x28] sm:$0xff]
        %v2151 = vld [vmem:[%s2144 + $0x30] sm:$0xff]
        %v2152 = vld [vmem:[%s2144 + $0x38] sm:$0xff]
        %v2153 = vld [vmem:[%s2144 + $0x40] sm:$0xff]
        %v2154 = vld [vmem:[%s2144 + $0x48] sm:$0xff]
        %v2155 = vld [vmem:[%s2144 + $0x50] sm:$0xff]
        %v2156 = vld [vmem:[%s2144 + $0x58] sm:$0xff]
        %v2157 = vld [vmem:[%s2144 + $0x60] sm:$0xff]
        %v2158 = vld [vmem:[%s2144 + $0x68] sm:$0xff]
        %v2159 = vld [vmem:[%s2144 + $0x70] sm:$0xff]
        %v2160 = vld [vmem:[%s2144 + $0x78] sm:$0xff]
        %v2161 = vld [vmem:[%s2144 + $0x80] sm:$0xff]
        %v2162 = vld [vmem:[%s2144 + $0x88] sm:$0xff]
        %v2163 = vld [vmem:[%s2144 + $0x90] sm:$0xff]
        %v2164 = vld [vmem:[%s2144 + $0x98] sm:$0xff]
        %v2165 = vld [vmem:[%s2144 + $0xa0] sm:$0xff]
        %v2166 = vld [vmem:[%s2144 + $0xa8] sm:$0xff]
        %v2167 = vld [vmem:[%s2144 + $0xb0] sm:$0xff]
        %v2168 = vld [vmem:[%s2144 + $0xb8] sm:$0xff]
        %v2169 = vld [vmem:[%s2144 + $0xc0] sm:$0xff]
        %v2170 = vld [vmem:[%s2144 + $0xc8] sm:$0xff]
        %v2171 = vld [vmem:[%s2144 + $0xd0] sm:$0xff]
        %v2172 = vld [vmem:[%s2144 + $0xd8] sm:$0xff]
        %v2173 = vld [vmem:[%s2144 + $0xe0] sm:$0xff]
        %v2174 = vld [vmem:[%s2144 + $0xe8] sm:$0xff]
        %v2175 = vld [vmem:[%s2144 + $0xf0] sm:$0xff]
        %v2176 = vld [vmem:[%s2144 + $0xf8] sm:$0xff]
        %v2177 = vld [vmem:[%s2144 + $0x100] sm:$0xff]
        %v2178 = vld [vmem:[%s2144 + $0x108] sm:$0xff]
        %v2179 = vld [vmem:[%s2144 + $0x110] sm:$0xff]
        %v2180 = vld [vmem:[%s2144 + $0x118] sm:$0xff]
        %v2181 = vld [vmem:[%s2144 + $0x120] sm:$0xff]
        %v2182 = vld [vmem:[%s2144 + $0x128] sm:$0xff]
        %v2183 = vld [vmem:[%s2144 + $0x130] sm:$0xff]
        %v2184 = vld [vmem:[%s2144 + $0x138] sm:$0xff]
        %v2185 = vld [vmem:[%s2144 + $0x140] sm:$0xff]
        %v2186 = vld [vmem:[%s2144 + $0x148] sm:$0xff]
        %v2187 = vld [vmem:[%s2144 + $0x150] sm:$0xff]
        %v2188 = vld [vmem:[%s2144 + $0x158] sm:$0xff]
        %v2189 = vld [vmem:[%s2144 + $0x160] sm:$0xff]
        %v2190 = vld [vmem:[%s2144 + $0x168] sm:$0xff]
        %v2191 = vld [vmem:[%s2144 + $0x170] sm:$0xff]
        %v2192 = vld [vmem:[%s2144 + $0x178] sm:$0xff]
        %2193 = vmatpush.msra.mxu0 %v2160
        %2194 = vmatpush.msra.mxu0 %v2159
        %2195 = vmatpush.msra.mxu0 %v2158
        %2196 = vmatpush.msra.mxu0 %v2157
        %2197 = vmatpush.msra.mxu0 %v2156
        %2198 = vmatpush.msra.mxu0 %v2155
        %2199 = vmatpush.msra.mxu0 %v2154
        %2200 = vmatpush.msra.mxu0 %v2153
        %2201 = vmatpush.msra.mxu0 %v2152
        %2202 = vmatpush.msra.mxu0 %v2151
        %2203 = vmatpush.msra.mxu0 %v2150
        %2204 = vmatpush.msra.mxu0 %v2149
        %2205 = vmatpush.msra.mxu0 %v2148
        %2206 = vmatpush.msra.mxu0 %v2147
        %2207 = vmatpush.msra.mxu0 %v2146
        %2208 = vmatpush.msra.mxu0 %v2145
        %2209 = vmatmul.f32.gmra.mxu0 %v1990
        %v2210 = vpop.f32.mrf.mxu0
        %v2211 = vadd.f32 0.0, %v2210
        %2212 = vmatmul.f32.gmra.mxu0 %v1991
        %v2213 = vpop.f32.mrf.mxu0
        %v2214 = vadd.f32 0.0, %v2213
        %2215 = vmatmul.f32.gmra.mxu0 %v1992
        %v2216 = vpop.f32.mrf.mxu0
        %v2217 = vadd.f32 0.0, %v2216
        %2218 = vmatmul.f32.gmra.mxu0 %v1993
        %v2219 = vpop.f32.mrf.mxu0
        %v2220 = vadd.f32 0.0, %v2219
        %2221 = vmatmul.f32.gmra.mxu0 %v1994
        %v2222 = vpop.f32.mrf.mxu0
        %v2223 = vadd.f32 0.0, %v2222
        %2224 = vmatmul.f32.gmra.mxu0 %v1995
        %v2225 = vpop.f32.mrf.mxu0
        %v2226 = vadd.f32 0.0, %v2225
        %2227 = vmatmul.f32.gmra.mxu0 %v1996
        %v2228 = vpop.f32.mrf.mxu0
        %v2229 = vadd.f32 0.0, %v2228
        %2230 = vmatmul.f32.gmra.mxu0 %v1997
        %v2231 = vpop.f32.mrf.mxu0
        %v2232 = vadd.f32 0.0, %v2231
        %2233 = vmatmul.f32.gmra.mxu0 %v1998
        %v2234 = vpop.f32.mrf.mxu0
        %v2235 = vadd.f32 0.0, %v2234
        %2236 = vmatmul.f32.gmra.mxu0 %v1999
        %v2237 = vpop.f32.mrf.mxu0
        %v2238 = vadd.f32 0.0, %v2237
        %2239 = vmatmul.f32.gmra.mxu0 %v2000
        %v2240 = vpop.f32.mrf.mxu0
        %v2241 = vadd.f32 0.0, %v2240
        %2242 = vmatmul.f32.gmra.mxu0 %v2001
        %v2243 = vpop.f32.mrf.mxu0
        %v2244 = vadd.f32 0.0, %v2243
        %2245 = vmatmul.f32.gmra.mxu0 %v2002
        %v2246 = vpop.f32.mrf.mxu0
        %v2247 = vadd.f32 0.0, %v2246
        %2248 = vmatmul.f32.gmra.mxu0 %v2003
        %v2249 = vpop.f32.mrf.mxu0
        %v2250 = vadd.f32 0.0, %v2249
        %2251 = vmatmul.f32.gmra.mxu0 %v2004
        %v2252 = vpop.f32.mrf.mxu0
        %v2253 = vadd.f32 0.0, %v2252
        %2254 = vmatmul.f32.gmra.mxu0 %v2005
        %v2255 = vpop.f32.mrf.mxu0
        %v2256 = vadd.f32 0.0, %v2255
        %2257 = vmatmul.f32.gmra.mxu0 %v2006
        %v2258 = vpop.f32.mrf.mxu0
        %v2259 = vadd.f32 0.0, %v2258
        %2260 = vmatmul.f32.gmra.mxu0 %v2007
        %v2261 = vpop.f32.mrf.mxu0
        %v2262 = vadd.f32 0.0, %v2261
        %2263 = vmatmul.f32.gmra.mxu0 %v2008
        %v2264 = vpop.f32.mrf.mxu0
        %v2265 = vadd.f32 0.0, %v2264
        %2266 = vmatmul.f32.gmra.mxu0 %v2009
        %v2267 = vpop.f32.mrf.mxu0
        %v2268 = vadd.f32 0.0, %v2267
        %2269 = vmatmul.f32.gmra.mxu0 %v2010
        %v2270 = vpop.f32.mrf.mxu0
        %v2271 = vadd.f32 0.0, %v2270
        %2272 = vmatmul.f32.gmra.mxu0 %v2011
        %v2273 = vpop.f32.mrf.mxu0
        %v2274 = vadd.f32 0.0, %v2273
        %2275 = vmatmul.f32.gmra.mxu0 %v2012
        %v2276 = vpop.f32.mrf.mxu0
        %v2277 = vadd.f32 0.0, %v2276
        %2278 = vmatmul.f32.gmra.mxu0 %v2013
        %v2279 = vpop.f32.mrf.mxu0
        %v2280 = vadd.f32 0.0, %v2279
        %2281 = vmatmul.f32.gmra.mxu0 %v2014
        %v2282 = vpop.f32.mrf.mxu0
        %v2283 = vadd.f32 0.0, %v2282
        %2284 = vmatmul.f32.gmra.mxu0 %v2015
        %v2285 = vpop.f32.mrf.mxu0
        %v2286 = vadd.f32 0.0, %v2285
        %2287 = vmatmul.f32.gmra.mxu0 %v2016
        %v2288 = vpop.f32.mrf.mxu0
        %v2289 = vadd.f32 0.0, %v2288
        %2290 = vmatmul.f32.gmra.mxu0 %v2017
        %v2291 = vpop.f32.mrf.mxu0
        %v2292 = vadd.f32 0.0, %v2291
        %2293 = vmatmul.f32.gmra.mxu0 %v2018
        %v2294 = vpop.f32.mrf.mxu0
        %v2295 = vadd.f32 0.0, %v2294
        %2296 = vmatmul.f32.gmra.mxu0 %v2019
        %v2297 = vpop.f32.mrf.mxu0
        %v2298 = vadd.f32 0.0, %v2297
        %2299 = vmatmul.f32.gmra.mxu0 %v2020
        %v2300 = vpop.f32.mrf.mxu0
        %v2301 = vadd.f32 0.0, %v2300
        %2302 = vmatmul.f32.gmra.mxu0 %v2021
        %v2303 = vpop.f32.mrf.mxu0
        %v2304 = vadd.f32 0.0, %v2303
        %2305 = vdwg.mxu0
        %2306 = vmatpush.msra.mxu0 %v2176
        %2307 = vmatpush.msra.mxu0 %v2175
        %2308 = vmatpush.msra.mxu0 %v2174
        %2309 = vmatpush.msra.mxu0 %v2173
        %2310 = vmatpush.msra.mxu0 %v2172
        %2311 = vmatpush.msra.mxu0 %v2171
        %2312 = vmatpush.msra.mxu0 %v2170
        %2313 = vmatpush.msra.mxu0 %v2169
        %2314 = vmatpush.msra.mxu0 %v2168
        %2315 = vmatpush.msra.mxu0 %v2167
        %2316 = vmatpush.msra.mxu0 %v2166
        %2317 = vmatpush.msra.mxu0 %v2165
        %2318 = vmatpush.msra.mxu0 %v2164
        %2319 = vmatpush.msra.mxu0 %v2163
        %2320 = vmatpush.msra.mxu0 %v2162
        %2321 = vmatpush.msra.mxu0 %v2161
        %2322 = vmatmul.f32.gmra.mxu0 %v2026
        %v2323 = vpop.f32.mrf.mxu0
        %v2324 = vadd.f32 %v2211, %v2323
        %2325 = vmatmul.f32.gmra.mxu0 %v2027
        %v2326 = vpop.f32.mrf.mxu0
        %v2327 = vadd.f32 %v2214, %v2326
        %2328 = vmatmul.f32.gmra.mxu0 %v2028
        %v2329 = vpop.f32.mrf.mxu0
        %v2330 = vadd.f32 %v2217, %v2329
        %2331 = vmatmul.f32.gmra.mxu0 %v2029
        %v2332 = vpop.f32.mrf.mxu0
        %v2333 = vadd.f32 %v2220, %v2332
        %2334 = vmatmul.f32.gmra.mxu0 %v2030
        %v2335 = vpop.f32.mrf.mxu0
        %v2336 = vadd.f32 %v2223, %v2335
        %2337 = vmatmul.f32.gmra.mxu0 %v2031
        %v2338 = vpop.f32.mrf.mxu0
        %v2339 = vadd.f32 %v2226, %v2338
        %2340 = vmatmul.f32.gmra.mxu0 %v2032
        %v2341 = vpop.f32.mrf.mxu0
        %v2342 = vadd.f32 %v2229, %v2341
        %2343 = vmatmul.f32.gmra.mxu0 %v2033
        %v2344 = vpop.f32.mrf.mxu0
        %v2345 = vadd.f32 %v2232, %v2344
        %2346 = vmatmul.f32.gmra.mxu0 %v2034
        %v2347 = vpop.f32.mrf.mxu0
        %v2348 = vadd.f32 %v2235, %v2347
        %2349 = vmatmul.f32.gmra.mxu0 %v2035
        %v2350 = vpop.f32.mrf.mxu0
        %v2351 = vadd.f32 %v2238, %v2350
        %2352 = vmatmul.f32.gmra.mxu0 %v2036
        %v2353 = vpop.f32.mrf.mxu0
        %v2354 = vadd.f32 %v2241, %v2353
        %2355 = vmatmul.f32.gmra.mxu0 %v2037
        %v2356 = vpop.f32.mrf.mxu0
        %v2357 = vadd.f32 %v2244, %v2356
        %2358 = vmatmul.f32.gmra.mxu0 %v2038
        %v2359 = vpop.f32.mrf.mxu0
        %v2360 = vadd.f32 %v2247, %v2359
        %2361 = vmatmul.f32.gmra.mxu0 %v2039
        %v2362 = vpop.f32.mrf.mxu0
        %v2363 = vadd.f32 %v2250, %v2362
        %2364 = vmatmul.f32.gmra.mxu0 %v2040
        %v2365 = vpop.f32.mrf.mxu0
        %v2366 = vadd.f32 %v2253, %v2365
        %2367 = vmatmul.f32.gmra.mxu0 %v2041
        %v2368 = vpop.f32.mrf.mxu0
        %v2369 = vadd.f32 %v2256, %v2368
        %2370 = vmatmul.f32.gmra.mxu0 %v2042
        %v2371 = vpop.f32.mrf.mxu0
        %v2372 = vadd.f32 %v2259, %v2371
        %2373 = vmatmul.f32.gmra.mxu0 %v2043
        %v2374 = vpop.f32.mrf.mxu0
        %v2375 = vadd.f32 %v2262, %v2374
        %2376 = vmatmul.f32.gmra.mxu0 %v2044
        %v2377 = vpop.f32.mrf.mxu0
        %v2378 = vadd.f32 %v2265, %v2377
        %2379 = vmatmul.f32.gmra.mxu0 %v2045
        %v2380 = vpop.f32.mrf.mxu0
        %v2381 = vadd.f32 %v2268, %v2380
        %2382 = vmatmul.f32.gmra.mxu0 %v2046
        %v2383 = vpop.f32.mrf.mxu0
        %v2384 = vadd.f32 %v2271, %v2383
        %2385 = vmatmul.f32.gmra.mxu0 %v2047
        %v2386 = vpop.f32.mrf.mxu0
        %v2387 = vadd.f32 %v2274, %v2386
        %2388 = vmatmul.f32.gmra.mxu0 %v2048
        %v2389 = vpop.f32.mrf.mxu0
        %v2390 = vadd.f32 %v2277, %v2389
        %2391 = vmatmul.f32.gmra.mxu0 %v2049
        %v2392 = vpop.f32.mrf.mxu0
        %v2393 = vadd.f32 %v2280, %v2392
        %2394 = vmatmul.f32.gmra.mxu0 %v2050
        %v2395 = vpop.f32.mrf.mxu0
        %v2396 = vadd.f32 %v2283, %v2395
        %2397 = vmatmul.f32.gmra.mxu0 %v2051
        %v2398 = vpop.f32.mrf.mxu0
        %v2399 = vadd.f32 %v2286, %v2398
        %2400 = vmatmul.f32.gmra.mxu0 %v2052
        %v2401 = vpop.f32.mrf.mxu0
        %v2402 = vadd.f32 %v2289, %v2401
        %2403 = vmatmul.f32.gmra.mxu0 %v2053
        %v2404 = vpop.f32.mrf.mxu0
        %v2405 = vadd.f32 %v2292, %v2404
        %2406 = vmatmul.f32.gmra.mxu0 %v2054
        %v2407 = vpop.f32.mrf.mxu0
        %v2408 = vadd.f32 %v2295, %v2407
        %2409 = vmatmul.f32.gmra.mxu0 %v2055
        %v2410 = vpop.f32.mrf.mxu0
        %v2411 = vadd.f32 %v2298, %v2410
        %2412 = vmatmul.f32.gmra.mxu0 %v2056
        %v2413 = vpop.f32.mrf.mxu0
        %v2414 = vadd.f32 %v2301, %v2413
        %2415 = vmatmul.f32.gmra.mxu0 %v2057
        %v2416 = vpop.f32.mrf.mxu0
        %v2417 = vadd.f32 %v2304, %v2416
        %2418 = vdwg.mxu0
        %2419 = vmatpush.msra.mxu0 %v2192
        %2420 = vmatpush.msra.mxu0 %v2191
        %2421 = vmatpush.msra.mxu0 %v2190
        %2422 = vmatpush.msra.mxu0 %v2189
        %2423 = vmatpush.msra.mxu0 %v2188
        %2424 = vmatpush.msra.mxu0 %v2187
        %2425 = vmatpush.msra.mxu0 %v2186
        %2426 = vmatpush.msra.mxu0 %v2185
        %2427 = vmatpush.msra.mxu0 %v2184
        %2428 = vmatpush.msra.mxu0 %v2183
        %2429 = vmatpush.msra.mxu0 %v2182
        %2430 = vmatpush.msra.mxu0 %v2181
        %2431 = vmatpush.msra.mxu0 %v2180
        %2432 = vmatpush.msra.mxu0 %v2179
        %2433 = vmatpush.msra.mxu0 %v2178
        %2434 = vmatpush.msra.mxu0 %v2177
        %2435 = vmatmul.f32.gmra.mxu0 %v2062
        %v2436 = vpop.f32.mrf.mxu0
        %v2437 = vadd.f32 %v2324, %v2436
        %2438 = vmatmul.f32.gmra.mxu0 %v2063
        %v2439 = vpop.f32.mrf.mxu0
        %v2440 = vadd.f32 %v2327, %v2439
        %2441 = vmatmul.f32.gmra.mxu0 %v2064
        %v2442 = vpop.f32.mrf.mxu0
        %v2443 = vadd.f32 %v2330, %v2442
        %2444 = vmatmul.f32.gmra.mxu0 %v2065
        %v2445 = vpop.f32.mrf.mxu0
        %v2446 = vadd.f32 %v2333, %v2445
        %2447 = vmatmul.f32.gmra.mxu0 %v2066
        %v2448 = vpop.f32.mrf.mxu0
        %v2449 = vadd.f32 %v2336, %v2448
        %2450 = vmatmul.f32.gmra.mxu0 %v2067
        %v2451 = vpop.f32.mrf.mxu0
        %v2452 = vadd.f32 %v2339, %v2451
        %2453 = vmatmul.f32.gmra.mxu0 %v2068
        %v2454 = vpop.f32.mrf.mxu0
        %v2455 = vadd.f32 %v2342, %v2454
        %2456 = vmatmul.f32.gmra.mxu0 %v2069
        %v2457 = vpop.f32.mrf.mxu0
        %v2458 = vadd.f32 %v2345, %v2457
        %2459 = vmatmul.f32.gmra.mxu0 %v2070
        %v2460 = vpop.f32.mrf.mxu0
        %v2461 = vadd.f32 %v2348, %v2460
        %2462 = vmatmul.f32.gmra.mxu0 %v2071
        %v2463 = vpop.f32.mrf.mxu0
        %v2464 = vadd.f32 %v2351, %v2463
        %2465 = vmatmul.f32.gmra.mxu0 %v2072
        %v2466 = vpop.f32.mrf.mxu0
        %v2467 = vadd.f32 %v2354, %v2466
        %2468 = vmatmul.f32.gmra.mxu0 %v2073
        %v2469 = vpop.f32.mrf.mxu0
        %v2470 = vadd.f32 %v2357, %v2469
        %2471 = vmatmul.f32.gmra.mxu0 %v2074
        %v2472 = vpop.f32.mrf.mxu0
        %v2473 = vadd.f32 %v2360, %v2472
        %2474 = vmatmul.f32.gmra.mxu0 %v2075
        %v2475 = vpop.f32.mrf.mxu0
        %v2476 = vadd.f32 %v2363, %v2475
        %2477 = vmatmul.f32.gmra.mxu0 %v2076
        %v2478 = vpop.f32.mrf.mxu0
        %v2479 = vadd.f32 %v2366, %v2478
        %2480 = vmatmul.f32.gmra.mxu0 %v2077
        %v2481 = vpop.f32.mrf.mxu0
        %v2482 = vadd.f32 %v2369, %v2481
        %2483 = vmatmul.f32.gmra.mxu0 %v2078
        %v2484 = vpop.f32.mrf.mxu0
        %v2485 = vadd.f32 %v2372, %v2484
        %2486 = vmatmul.f32.gmra.mxu0 %v2079
        %v2487 = vpop.f32.mrf.mxu0
        %v2488 = vadd.f32 %v2375, %v2487
        %2489 = vmatmul.f32.gmra.mxu0 %v2080
        %v2490 = vpop.f32.mrf.mxu0
        %v2491 = vadd.f32 %v2378, %v2490
        %2492 = vmatmul.f32.gmra.mxu0 %v2081
        %v2493 = vpop.f32.mrf.mxu0
        %v2494 = vadd.f32 %v2381, %v2493
        %2495 = vmatmul.f32.gmra.mxu0 %v2082
        %v2496 = vpop.f32.mrf.mxu0
        %v2497 = vadd.f32 %v2384, %v2496
        %2498 = vmatmul.f32.gmra.mxu0 %v2083
        %v2499 = vpop.f32.mrf.mxu0
        %v2500 = vadd.f32 %v2387, %v2499
        %2501 = vmatmul.f32.gmra.mxu0 %v2084
        %v2502 = vpop.f32.mrf.mxu0
        %v2503 = vadd.f32 %v2390, %v2502
        %2504 = vmatmul.f32.gmra.mxu0 %v2085
        %v2505 = vpop.f32.mrf.mxu0
        %v2506 = vadd.f32 %v2393, %v2505
        %2507 = vmatmul.f32.gmra.mxu0 %v2086
        %v2508 = vpop.f32.mrf.mxu0
        %v2509 = vadd.f32 %v2396, %v2508
        %2510 = vmatmul.f32.gmra.mxu0 %v2087
        %v2511 = vpop.f32.mrf.mxu0
        %v2512 = vadd.f32 %v2399, %v2511
        %2513 = vmatmul.f32.gmra.mxu0 %v2088
        %v2514 = vpop.f32.mrf.mxu0
        %v2515 = vadd.f32 %v2402, %v2514
        %2516 = vmatmul.f32.gmra.mxu0 %v2089
        %v2517 = vpop.f32.mrf.mxu0
        %v2518 = vadd.f32 %v2405, %v2517
        %2519 = vmatmul.f32.gmra.mxu0 %v2090
        %v2520 = vpop.f32.mrf.mxu0
        %v2521 = vadd.f32 %v2408, %v2520
        %2522 = vmatmul.f32.gmra.mxu0 %v2091
        %v2523 = vpop.f32.mrf.mxu0
        %v2524 = vadd.f32 %v2411, %v2523
        %2525 = vmatmul.f32.gmra.mxu0 %v2092
        %v2526 = vpop.f32.mrf.mxu0
        %v2527 = vadd.f32 %v2414, %v2526
        %2528 = vmatmul.f32.gmra.mxu0 %v2093
        %v2529 = vpop.f32.mrf.mxu0
        %v2530 = vadd.f32 %v2417, %v2529
        %2531 = vdwg.mxu0
        %2532 = vmatpush.msra.mxu0 %v2111
        %2533 = vmatpush.msra.mxu0 %v2110
        %2534 = vmatpush.msra.mxu0 %v2109
        %2535 = vmatpush.msra.mxu0 %v2108
        %2536 = vmatpush.msra.mxu0 %v2107
        %2537 = vmatpush.msra.mxu0 %v2106
        %2538 = vmatpush.msra.mxu0 %v2105
        %2539 = vmatpush.msra.mxu0 %v2104
        %2540 = vmatpush.msra.mxu0 %v2103
        %2541 = vmatpush.msra.mxu0 %v2102
        %2542 = vmatpush.msra.mxu0 %v2101
        %2543 = vmatpush.msra.mxu0 %v2100
        %2544 = vmatpush.msra.mxu0 %v2099
        %2545 = vmatpush.msra.mxu0 %v2098
        %2546 = vmatpush.msra.mxu0 %v2097
        %2547 = vmatpush.msra.mxu0 %v2096
        %2548 = vmatmul.f32.gmra.mxu0 %v1988
        %v2549 = vpop.f32.mrf.mxu0
        %v2550 = vadd.f32 %v2437, %v2549
        %2551 = vmatmul.f32.gmra.mxu0 %v1989
        %v2552 = vpop.f32.mrf.mxu0
        %v2553 = vadd.f32 %v2440, %v2552
        %2554 = vmatmul.f32.gmra.mxu0 %v1990
        %v2555 = vpop.f32.mrf.mxu0
        %v2556 = vadd.f32 %v2443, %v2555
        %2557 = vmatmul.f32.gmra.mxu0 %v1991
        %v2558 = vpop.f32.mrf.mxu0
        %v2559 = vadd.f32 %v2446, %v2558
        %2560 = vmatmul.f32.gmra.mxu0 %v1992
        %v2561 = vpop.f32.mrf.mxu0
        %v2562 = vadd.f32 %v2449, %v2561
        %2563 = vmatmul.f32.gmra.mxu0 %v1993
        %v2564 = vpop.f32.mrf.mxu0
        %v2565 = vadd.f32 %v2452, %v2564
        %2566 = vmatmul.f32.gmra.mxu0 %v1994
        %v2567 = vpop.f32.mrf.mxu0
        %v2568 = vadd.f32 %v2455, %v2567
        %2569 = vmatmul.f32.gmra.mxu0 %v1995
        %v2570 = vpop.f32.mrf.mxu0
        %v2571 = vadd.f32 %v2458, %v2570
        %2572 = vmatmul.f32.gmra.mxu0 %v1996
        %v2573 = vpop.f32.mrf.mxu0
        %v2574 = vadd.f32 %v2461, %v2573
        %2575 = vmatmul.f32.gmra.mxu0 %v1997
        %v2576 = vpop.f32.mrf.mxu0
        %v2577 = vadd.f32 %v2464, %v2576
        %2578 = vmatmul.f32.gmra.mxu0 %v1998
        %v2579 = vpop.f32.mrf.mxu0
        %v2580 = vadd.f32 %v2467, %v2579
        %2581 = vmatmul.f32.gmra.mxu0 %v1999
        %v2582 = vpop.f32.mrf.mxu0
        %v2583 = vadd.f32 %v2470, %v2582
        %2584 = vmatmul.f32.gmra.mxu0 %v2000
        %v2585 = vpop.f32.mrf.mxu0
        %v2586 = vadd.f32 %v2473, %v2585
        %2587 = vmatmul.f32.gmra.mxu0 %v2001
        %v2588 = vpop.f32.mrf.mxu0
        %v2589 = vadd.f32 %v2476, %v2588
        %2590 = vmatmul.f32.gmra.mxu0 %v2002
        %v2591 = vpop.f32.mrf.mxu0
        %v2592 = vadd.f32 %v2479, %v2591
        %2593 = vmatmul.f32.gmra.mxu0 %v2003
        %v2594 = vpop.f32.mrf.mxu0
        %v2595 = vadd.f32 %v2482, %v2594
        %2596 = vmatmul.f32.gmra.mxu0 %v2004
        %v2597 = vpop.f32.mrf.mxu0
        %v2598 = vadd.f32 %v2485, %v2597
        %2599 = vmatmul.f32.gmra.mxu0 %v2005
        %v2600 = vpop.f32.mrf.mxu0
        %v2601 = vadd.f32 %v2488, %v2600
        %2602 = vmatmul.f32.gmra.mxu0 %v2006
        %v2603 = vpop.f32.mrf.mxu0
        %v2604 = vadd.f32 %v2491, %v2603
        %2605 = vmatmul.f32.gmra.mxu0 %v2007
        %v2606 = vpop.f32.mrf.mxu0
        %v2607 = vadd.f32 %v2494, %v2606
        %2608 = vmatmul.f32.gmra.mxu0 %v2008
        %v2609 = vpop.f32.mrf.mxu0
        %v2610 = vadd.f32 %v2497, %v2609
        %2611 = vmatmul.f32.gmra.mxu0 %v2009
        %v2612 = vpop.f32.mrf.mxu0
        %v2613 = vadd.f32 %v2500, %v2612
        %2614 = vmatmul.f32.gmra.mxu0 %v2010
        %v2615 = vpop.f32.mrf.mxu0
        %v2616 = vadd.f32 %v2503, %v2615
        %2617 = vmatmul.f32.gmra.mxu0 %v2011
        %v2618 = vpop.f32.mrf.mxu0
        %v2619 = vadd.f32 %v2506, %v2618
        %2620 = vmatmul.f32.gmra.mxu0 %v2012
        %v2621 = vpop.f32.mrf.mxu0
        %v2622 = vadd.f32 %v2509, %v2621
        %2623 = vmatmul.f32.gmra.mxu0 %v2013
        %v2624 = vpop.f32.mrf.mxu0
        %v2625 = vadd.f32 %v2512, %v2624
        %2626 = vmatmul.f32.gmra.mxu0 %v2014
        %v2627 = vpop.f32.mrf.mxu0
        %v2628 = vadd.f32 %v2515, %v2627
        %2629 = vmatmul.f32.gmra.mxu0 %v2015
        %v2630 = vpop.f32.mrf.mxu0
        %v2631 = vadd.f32 %v2518, %v2630
        %2632 = vmatmul.f32.gmra.mxu0 %v2016
        %v2633 = vpop.f32.mrf.mxu0
        %v2634 = vadd.f32 %v2521, %v2633
        %2635 = vmatmul.f32.gmra.mxu0 %v2017
        %v2636 = vpop.f32.mrf.mxu0
        %v2637 = vadd.f32 %v2524, %v2636
        %2638 = vmatmul.f32.gmra.mxu0 %v2018
        %v2639 = vpop.f32.mrf.mxu0
        %v2640 = vadd.f32 %v2527, %v2639
        %2641 = vmatmul.f32.gmra.mxu0 %v2019
        %v2642 = vpop.f32.mrf.mxu0
        %v2643 = vadd.f32 %v2530, %v2642
        %2644 = vdwg.mxu0
        %2645 = vmatpush.msra.mxu0 %v2127
        %2646 = vmatpush.msra.mxu0 %v2126
        %2647 = vmatpush.msra.mxu0 %v2125
        %2648 = vmatpush.msra.mxu0 %v2124
        %2649 = vmatpush.msra.mxu0 %v2123
        %2650 = vmatpush.msra.mxu0 %v2122
        %2651 = vmatpush.msra.mxu0 %v2121
        %2652 = vmatpush.msra.mxu0 %v2120
        %2653 = vmatpush.msra.mxu0 %v2119
        %2654 = vmatpush.msra.mxu0 %v2118
        %2655 = vmatpush.msra.mxu0 %v2117
        %2656 = vmatpush.msra.mxu0 %v2116
        %2657 = vmatpush.msra.mxu0 %v2115
        %2658 = vmatpush.msra.mxu0 %v2114
        %2659 = vmatpush.msra.mxu0 %v2113
        %2660 = vmatpush.msra.mxu0 %v2112
        %2661 = vmatmul.f32.gmra.mxu0 %v2024
        %v2662 = vpop.f32.mrf.mxu0
        %v2663 = vadd.f32 %v2550, %v2662
        %2664 = vmatmul.f32.gmra.mxu0 %v2025
        %v2665 = vpop.f32.mrf.mxu0
        %v2666 = vadd.f32 %v2553, %v2665
        %2667 = vmatmul.f32.gmra.mxu0 %v2026
        %v2668 = vpop.f32.mrf.mxu0
        %v2669 = vadd.f32 %v2556, %v2668
        %2670 = vmatmul.f32.gmra.mxu0 %v2027
        %v2671 = vpop.f32.mrf.mxu0
        %v2672 = vadd.f32 %v2559, %v2671
        %2673 = vmatmul.f32.gmra.mxu0 %v2028
        %v2674 = vpop.f32.mrf.mxu0
        %v2675 = vadd.f32 %v2562, %v2674
        %2676 = vmatmul.f32.gmra.mxu0 %v2029
        %v2677 = vpop.f32.mrf.mxu0
        %v2678 = vadd.f32 %v2565, %v2677
        %2679 = vmatmul.f32.gmra.mxu0 %v2030
        %v2680 = vpop.f32.mrf.mxu0
        %v2681 = vadd.f32 %v2568, %v2680
        %2682 = vmatmul.f32.gmra.mxu0 %v2031
        %v2683 = vpop.f32.mrf.mxu0
        %v2684 = vadd.f32 %v2571, %v2683
        %2685 = vmatmul.f32.gmra.mxu0 %v2032
        %v2686 = vpop.f32.mrf.mxu0
        %v2687 = vadd.f32 %v2574, %v2686
        %2688 = vmatmul.f32.gmra.mxu0 %v2033
        %v2689 = vpop.f32.mrf.mxu0
        %v2690 = vadd.f32 %v2577, %v2689
        %2691 = vmatmul.f32.gmra.mxu0 %v2034
        %v2692 = vpop.f32.mrf.mxu0
        %v2693 = vadd.f32 %v2580, %v2692
        %2694 = vmatmul.f32.gmra.mxu0 %v2035
        %v2695 = vpop.f32.mrf.mxu0
        %v2696 = vadd.f32 %v2583, %v2695
        %2697 = vmatmul.f32.gmra.mxu0 %v2036
        %v2698 = vpop.f32.mrf.mxu0
        %v2699 = vadd.f32 %v2586, %v2698
        %2700 = vmatmul.f32.gmra.mxu0 %v2037
        %v2701 = vpop.f32.mrf.mxu0
        %v2702 = vadd.f32 %v2589, %v2701
        %2703 = vmatmul.f32.gmra.mxu0 %v2038
        %v2704 = vpop.f32.mrf.mxu0
        %v2705 = vadd.f32 %v2592, %v2704
        %2706 = vmatmul.f32.gmra.mxu0 %v2039
        %v2707 = vpop.f32.mrf.mxu0
        %v2708 = vadd.f32 %v2595, %v2707
        %2709 = vmatmul.f32.gmra.mxu0 %v2040
        %v2710 = vpop.f32.mrf.mxu0
        %v2711 = vadd.f32 %v2598, %v2710
        %2712 = vmatmul.f32.gmra.mxu0 %v2041
        %v2713 = vpop.f32.mrf.mxu0
        %v2714 = vadd.f32 %v2601, %v2713
        %2715 = vmatmul.f32.gmra.mxu0 %v2042
        %v2716 = vpop.f32.mrf.mxu0
        %v2717 = vadd.f32 %v2604, %v2716
        %2718 = vmatmul.f32.gmra.mxu0 %v2043
        %v2719 = vpop.f32.mrf.mxu0
        %v2720 = vadd.f32 %v2607, %v2719
        %2721 = vmatmul.f32.gmra.mxu0 %v2044
        %v2722 = vpop.f32.mrf.mxu0
        %v2723 = vadd.f32 %v2610, %v2722
        %2724 = vmatmul.f32.gmra.mxu0 %v2045
        %v2725 = vpop.f32.mrf.mxu0
        %v2726 = vadd.f32 %v2613, %v2725
        %2727 = vmatmul.f32.gmra.mxu0 %v2046
        %v2728 = vpop.f32.mrf.mxu0
        %v2729 = vadd.f32 %v2616, %v2728
        %2730 = vmatmul.f32.gmra.mxu0 %v2047
        %v2731 = vpop.f32.mrf.mxu0
        %v2732 = vadd.f32 %v2619, %v2731
        %2733 = vmatmul.f32.gmra.mxu0 %v2048
        %v2734 = vpop.f32.mrf.mxu0
        %v2735 = vadd.f32 %v2622, %v2734
        %2736 = vmatmul.f32.gmra.mxu0 %v2049
        %v2737 = vpop.f32.mrf.mxu0
        %v2738 = vadd.f32 %v2625, %v2737
        %2739 = vmatmul.f32.gmra.mxu0 %v2050
        %v2740 = vpop.f32.mrf.mxu0
        %v2741 = vadd.f32 %v2628, %v2740
        %2742 = vmatmul.f32.gmra.mxu0 %v2051
        %v2743 = vpop.f32.mrf.mxu0
        %v2744 = vadd.f32 %v2631, %v2743
        %2745 = vmatmul.f32.gmra.mxu0 %v2052
        %v2746 = vpop.f32.mrf.mxu0
        %v2747 = vadd.f32 %v2634, %v2746
        %2748 = vmatmul.f32.gmra.mxu0 %v2053
        %v2749 = vpop.f32.mrf.mxu0
        %v2750 = vadd.f32 %v2637, %v2749
        %2751 = vmatmul.f32.gmra.mxu0 %v2054
        %v2752 = vpop.f32.mrf.mxu0
        %v2753 = vadd.f32 %v2640, %v2752
        %2754 = vmatmul.f32.gmra.mxu0 %v2055
        %v2755 = vpop.f32.mrf.mxu0
        %v2756 = vadd.f32 %v2643, %v2755
        %2757 = vdwg.mxu0
        %2758 = vmatpush.msra.mxu0 %v2143
        %2759 = vmatpush.msra.mxu0 %v2142
        %2760 = vmatpush.msra.mxu0 %v2141
        %2761 = vmatpush.msra.mxu0 %v2140
        %2762 = vmatpush.msra.mxu0 %v2139
        %2763 = vmatpush.msra.mxu0 %v2138
        %2764 = vmatpush.msra.mxu0 %v2137
        %2765 = vmatpush.msra.mxu0 %v2136
        %2766 = vmatpush.msra.mxu0 %v2135
        %2767 = vmatpush.msra.mxu0 %v2134
        %2768 = vmatpush.msra.mxu0 %v2133
        %2769 = vmatpush.msra.mxu0 %v2132
        %2770 = vmatpush.msra.mxu0 %v2131
        %2771 = vmatpush.msra.mxu0 %v2130
        %2772 = vmatpush.msra.mxu0 %v2129
        %2773 = vmatpush.msra.mxu0 %v2128
        %2774 = vmatmul.f32.gmra.mxu0 %v2060
        %v2775 = vpop.f32.mrf.mxu0
        %v2776 = vadd.f32 %v2663, %v2775
        %2777 = vmatmul.f32.gmra.mxu0 %v2061
        %v2778 = vpop.f32.mrf.mxu0
        %v2779 = vadd.f32 %v2666, %v2778
        %2780 = vmatmul.f32.gmra.mxu0 %v2062
        %v2781 = vpop.f32.mrf.mxu0
        %v2782 = vadd.f32 %v2669, %v2781
        %2783 = vmatmul.f32.gmra.mxu0 %v2063
        %v2784 = vpop.f32.mrf.mxu0
        %v2785 = vadd.f32 %v2672, %v2784
        %2786 = vmatmul.f32.gmra.mxu0 %v2064
        %v2787 = vpop.f32.mrf.mxu0
        %v2788 = vadd.f32 %v2675, %v2787
        %2789 = vmatmul.f32.gmra.mxu0 %v2065
        %v2790 = vpop.f32.mrf.mxu0
        %v2791 = vadd.f32 %v2678, %v2790
        %2792 = vmatmul.f32.gmra.mxu0 %v2066
        %v2793 = vpop.f32.mrf.mxu0
        %v2794 = vadd.f32 %v2681, %v2793
        %2795 = vmatmul.f32.gmra.mxu0 %v2067
        %v2796 = vpop.f32.mrf.mxu0
        %v2797 = vadd.f32 %v2684, %v2796
        %2798 = vmatmul.f32.gmra.mxu0 %v2068
        %v2799 = vpop.f32.mrf.mxu0
        %v2800 = vadd.f32 %v2687, %v2799
        %2801 = vmatmul.f32.gmra.mxu0 %v2069
        %v2802 = vpop.f32.mrf.mxu0
        %v2803 = vadd.f32 %v2690, %v2802
        %2804 = vmatmul.f32.gmra.mxu0 %v2070
        %v2805 = vpop.f32.mrf.mxu0
        %v2806 = vadd.f32 %v2693, %v2805
        %2807 = vmatmul.f32.gmra.mxu0 %v2071
        %v2808 = vpop.f32.mrf.mxu0
        %v2809 = vadd.f32 %v2696, %v2808
        %2810 = vmatmul.f32.gmra.mxu0 %v2072
        %v2811 = vpop.f32.mrf.mxu0
        %v2812 = vadd.f32 %v2699, %v2811
        %2813 = vmatmul.f32.gmra.mxu0 %v2073
        %v2814 = vpop.f32.mrf.mxu0
        %v2815 = vadd.f32 %v2702, %v2814
        %2816 = vmatmul.f32.gmra.mxu0 %v2074
        %v2817 = vpop.f32.mrf.mxu0
        %v2818 = vadd.f32 %v2705, %v2817
        %2819 = vmatmul.f32.gmra.mxu0 %v2075
        %v2820 = vpop.f32.mrf.mxu0
        %v2821 = vadd.f32 %v2708, %v2820
        %2822 = vmatmul.f32.gmra.mxu0 %v2076
        %v2823 = vpop.f32.mrf.mxu0
        %v2824 = vadd.f32 %v2711, %v2823
        %2825 = vmatmul.f32.gmra.mxu0 %v2077
        %v2826 = vpop.f32.mrf.mxu0
        %v2827 = vadd.f32 %v2714, %v2826
        %2828 = vmatmul.f32.gmra.mxu0 %v2078
        %v2829 = vpop.f32.mrf.mxu0
        %v2830 = vadd.f32 %v2717, %v2829
        %2831 = vmatmul.f32.gmra.mxu0 %v2079
        %v2832 = vpop.f32.mrf.mxu0
        %v2833 = vadd.f32 %v2720, %v2832
        %2834 = vmatmul.f32.gmra.mxu0 %v2080
        %v2835 = vpop.f32.mrf.mxu0
        %v2836 = vadd.f32 %v2723, %v2835
        %2837 = vmatmul.f32.gmra.mxu0 %v2081
        %v2838 = vpop.f32.mrf.mxu0
        %v2839 = vadd.f32 %v2726, %v2838
        %2840 = vmatmul.f32.gmra.mxu0 %v2082
        %v2841 = vpop.f32.mrf.mxu0
        %v2842 = vadd.f32 %v2729, %v2841
        %2843 = vmatmul.f32.gmra.mxu0 %v2083
        %v2844 = vpop.f32.mrf.mxu0
        %v2845 = vadd.f32 %v2732, %v2844
        %2846 = vmatmul.f32.gmra.mxu0 %v2084
        %v2847 = vpop.f32.mrf.mxu0
        %v2848 = vadd.f32 %v2735, %v2847
        %2849 = vmatmul.f32.gmra.mxu0 %v2085
        %v2850 = vpop.f32.mrf.mxu0
        %v2851 = vadd.f32 %v2738, %v2850
        %2852 = vmatmul.f32.gmra.mxu0 %v2086
        %v2853 = vpop.f32.mrf.mxu0
        %v2854 = vadd.f32 %v2741, %v2853
        %2855 = vmatmul.f32.gmra.mxu0 %v2087
        %v2856 = vpop.f32.mrf.mxu0
        %v2857 = vadd.f32 %v2744, %v2856
        %2858 = vmatmul.f32.gmra.mxu0 %v2088
        %v2859 = vpop.f32.mrf.mxu0
        %v2860 = vadd.f32 %v2747, %v2859
        %2861 = vmatmul.f32.gmra.mxu0 %v2089
        %v2862 = vpop.f32.mrf.mxu0
        %v2863 = vadd.f32 %v2750, %v2862
        %2864 = vmatmul.f32.gmra.mxu0 %v2090
        %v2865 = vpop.f32.mrf.mxu0
        %v2866 = vadd.f32 %v2753, %v2865
        %2867 = vmatmul.f32.gmra.mxu0 %v2091
        %v2868 = vpop.f32.mrf.mxu0
        %v2869 = vadd.f32 %v2756, %v2868
        %2870 = vdwg.mxu0
        %s2871 = scalar_lea.vmem [#allocation5], 768
        %v2872 = vld [vmem:[%s2871] sm:$0xff]
        %v2873 = vld [vmem:[%s2871 + $0x8] sm:$0xff]
        %v2874 = vld [vmem:[%s2871 + $0x10] sm:$0xff]
        %v2875 = vld [vmem:[%s2871 + $0x18] sm:$0xff]
        %v2876 = vld [vmem:[%s2871 + $0x20] sm:$0xff]
        %v2877 = vld [vmem:[%s2871 + $0x28] sm:$0xff]
        %v2878 = vld [vmem:[%s2871 + $0x30] sm:$0xff]
        %v2879 = vld [vmem:[%s2871 + $0x38] sm:$0xff]
        %v2880 = vld [vmem:[%s2871 + $0x40] sm:$0xff]
        %v2881 = vld [vmem:[%s2871 + $0x48] sm:$0xff]
        %v2882 = vld [vmem:[%s2871 + $0x50] sm:$0xff]
        %v2883 = vld [vmem:[%s2871 + $0x58] sm:$0xff]
        %v2884 = vld [vmem:[%s2871 + $0x60] sm:$0xff]
        %v2885 = vld [vmem:[%s2871 + $0x68] sm:$0xff]
        %v2886 = vld [vmem:[%s2871 + $0x70] sm:$0xff]
        %v2887 = vld [vmem:[%s2871 + $0x78] sm:$0xff]
        %v2888 = vld [vmem:[%s2871 + $0x80] sm:$0xff]
        %v2889 = vld [vmem:[%s2871 + $0x88] sm:$0xff]
        %v2890 = vld [vmem:[%s2871 + $0x90] sm:$0xff]
        %v2891 = vld [vmem:[%s2871 + $0x98] sm:$0xff]
        %v2892 = vld [vmem:[%s2871 + $0xa0] sm:$0xff]
        %v2893 = vld [vmem:[%s2871 + $0xa8] sm:$0xff]
        %v2894 = vld [vmem:[%s2871 + $0xb0] sm:$0xff]
        %v2895 = vld [vmem:[%s2871 + $0xb8] sm:$0xff]
        %v2896 = vld [vmem:[%s2871 + $0xc0] sm:$0xff]
        %v2897 = vld [vmem:[%s2871 + $0xc8] sm:$0xff]
        %v2898 = vld [vmem:[%s2871 + $0xd0] sm:$0xff]
        %v2899 = vld [vmem:[%s2871 + $0xd8] sm:$0xff]
        %v2900 = vld [vmem:[%s2871 + $0xe0] sm:$0xff]
        %v2901 = vld [vmem:[%s2871 + $0xe8] sm:$0xff]
        %v2902 = vld [vmem:[%s2871 + $0xf0] sm:$0xff]
        %v2903 = vld [vmem:[%s2871 + $0xf8] sm:$0xff]
        %v2904 = vld [vmem:[%s2871 + $0x100] sm:$0xff]
        %v2905 = vld [vmem:[%s2871 + $0x108] sm:$0xff]
        %v2906 = vld [vmem:[%s2871 + $0x110] sm:$0xff]
        %v2907 = vld [vmem:[%s2871 + $0x118] sm:$0xff]
        %v2908 = vld [vmem:[%s2871 + $0x120] sm:$0xff]
        %v2909 = vld [vmem:[%s2871 + $0x128] sm:$0xff]
        %v2910 = vld [vmem:[%s2871 + $0x130] sm:$0xff]
        %v2911 = vld [vmem:[%s2871 + $0x138] sm:$0xff]
        %v2912 = vld [vmem:[%s2871 + $0x140] sm:$0xff]
        %v2913 = vld [vmem:[%s2871 + $0x148] sm:$0xff]
        %v2914 = vld [vmem:[%s2871 + $0x150] sm:$0xff]
        %v2915 = vld [vmem:[%s2871 + $0x158] sm:$0xff]
        %v2916 = vld [vmem:[%s2871 + $0x160] sm:$0xff]
        %v2917 = vld [vmem:[%s2871 + $0x168] sm:$0xff]
        %v2918 = vld [vmem:[%s2871 + $0x170] sm:$0xff]
        %v2919 = vld [vmem:[%s2871 + $0x178] sm:$0xff]
        %2920 = vmatpush.msra.mxu0 %v2887
        %2921 = vmatpush.msra.mxu0 %v2886
        %2922 = vmatpush.msra.mxu0 %v2885
        %2923 = vmatpush.msra.mxu0 %v2884
        %2924 = vmatpush.msra.mxu0 %v2883
        %2925 = vmatpush.msra.mxu0 %v2882
        %2926 = vmatpush.msra.mxu0 %v2881
        %2927 = vmatpush.msra.mxu0 %v2880
        %2928 = vmatpush.msra.mxu0 %v2879
        %2929 = vmatpush.msra.mxu0 %v2878
        %2930 = vmatpush.msra.mxu0 %v2877
        %2931 = vmatpush.msra.mxu0 %v2876
        %2932 = vmatpush.msra.mxu0 %v2875
        %2933 = vmatpush.msra.mxu0 %v2874
        %2934 = vmatpush.msra.mxu0 %v2873
        %2935 = vmatpush.msra.mxu0 %v2872
        %2936 = vmatmul.f32.gmra.mxu0 %v1992
        %v2937 = vpop.f32.mrf.mxu0
        %v2938 = vadd.f32 0.0, %v2937
        %2939 = vmatmul.f32.gmra.mxu0 %v1993
        %v2940 = vpop.f32.mrf.mxu0
        %v2941 = vadd.f32 0.0, %v2940
        %2942 = vmatmul.f32.gmra.mxu0 %v1994
        %v2943 = vpop.f32.mrf.mxu0
        %v2944 = vadd.f32 0.0, %v2943
        %2945 = vmatmul.f32.gmra.mxu0 %v1995
        %v2946 = vpop.f32.mrf.mxu0
        %v2947 = vadd.f32 0.0, %v2946
        %2948 = vmatmul.f32.gmra.mxu0 %v1996
        %v2949 = vpop.f32.mrf.mxu0
        %v2950 = vadd.f32 0.0, %v2949
        %2951 = vmatmul.f32.gmra.mxu0 %v1997
        %v2952 = vpop.f32.mrf.mxu0
        %v2953 = vadd.f32 0.0, %v2952
        %2954 = vmatmul.f32.gmra.mxu0 %v1998
        %v2955 = vpop.f32.mrf.mxu0
        %v2956 = vadd.f32 0.0, %v2955
        %2957 = vmatmul.f32.gmra.mxu0 %v1999
        %v2958 = vpop.f32.mrf.mxu0
        %v2959 = vadd.f32 0.0, %v2958
        %2960 = vmatmul.f32.gmra.mxu0 %v2000
        %v2961 = vpop.f32.mrf.mxu0
        %v2962 = vadd.f32 0.0, %v2961
        %2963 = vmatmul.f32.gmra.mxu0 %v2001
        %v2964 = vpop.f32.mrf.mxu0
        %v2965 = vadd.f32 0.0, %v2964
        %2966 = vmatmul.f32.gmra.mxu0 %v2002
        %v2967 = vpop.f32.mrf.mxu0
        %v2968 = vadd.f32 0.0, %v2967
        %2969 = vmatmul.f32.gmra.mxu0 %v2003
        %v2970 = vpop.f32.mrf.mxu0
        %v2971 = vadd.f32 0.0, %v2970
        %2972 = vmatmul.f32.gmra.mxu0 %v2004
        %v2973 = vpop.f32.mrf.mxu0
        %v2974 = vadd.f32 0.0, %v2973
        %2975 = vmatmul.f32.gmra.mxu0 %v2005
        %v2976 = vpop.f32.mrf.mxu0
        %v2977 = vadd.f32 0.0, %v2976
        %2978 = vmatmul.f32.gmra.mxu0 %v2006
        %v2979 = vpop.f32.mrf.mxu0
        %v2980 = vadd.f32 0.0, %v2979
        %2981 = vmatmul.f32.gmra.mxu0 %v2007
        %v2982 = vpop.f32.mrf.mxu0
        %v2983 = vadd.f32 0.0, %v2982
        %2984 = vmatmul.f32.gmra.mxu0 %v2008
        %v2985 = vpop.f32.mrf.mxu0
        %v2986 = vadd.f32 0.0, %v2985
        %2987 = vmatmul.f32.gmra.mxu0 %v2009
        %v2988 = vpop.f32.mrf.mxu0
        %v2989 = vadd.f32 0.0, %v2988
        %2990 = vmatmul.f32.gmra.mxu0 %v2010
        %v2991 = vpop.f32.mrf.mxu0
        %v2992 = vadd.f32 0.0, %v2991
        %2993 = vmatmul.f32.gmra.mxu0 %v2011
        %v2994 = vpop.f32.mrf.mxu0
        %v2995 = vadd.f32 0.0, %v2994
        %2996 = vmatmul.f32.gmra.mxu0 %v2012
        %v2997 = vpop.f32.mrf.mxu0
        %v2998 = vadd.f32 0.0, %v2997
        %2999 = vmatmul.f32.gmra.mxu0 %v2013
        %v3000 = vpop.f32.mrf.mxu0
        %v3001 = vadd.f32 0.0, %v3000
        %3002 = vmatmul.f32.gmra.mxu0 %v2014
        %v3003 = vpop.f32.mrf.mxu0
        %v3004 = vadd.f32 0.0, %v3003
        %3005 = vmatmul.f32.gmra.mxu0 %v2015
        %v3006 = vpop.f32.mrf.mxu0
        %v3007 = vadd.f32 0.0, %v3006
        %3008 = vmatmul.f32.gmra.mxu0 %v2016
        %v3009 = vpop.f32.mrf.mxu0
        %v3010 = vadd.f32 0.0, %v3009
        %3011 = vmatmul.f32.gmra.mxu0 %v2017
        %v3012 = vpop.f32.mrf.mxu0
        %v3013 = vadd.f32 0.0, %v3012
        %3014 = vmatmul.f32.gmra.mxu0 %v2018
        %v3015 = vpop.f32.mrf.mxu0
        %v3016 = vadd.f32 0.0, %v3015
        %3017 = vmatmul.f32.gmra.mxu0 %v2019
        %v3018 = vpop.f32.mrf.mxu0
        %v3019 = vadd.f32 0.0, %v3018
        %3020 = vmatmul.f32.gmra.mxu0 %v2020
        %v3021 = vpop.f32.mrf.mxu0
        %v3022 = vadd.f32 0.0, %v3021
        %3023 = vmatmul.f32.gmra.mxu0 %v2021
        %v3024 = vpop.f32.mrf.mxu0
        %v3025 = vadd.f32 0.0, %v3024
        %3026 = vmatmul.f32.gmra.mxu0 %v2022
        %v3027 = vpop.f32.mrf.mxu0
        %v3028 = vadd.f32 0.0, %v3027
        %3029 = vmatmul.f32.gmra.mxu0 %v2023
        %v3030 = vpop.f32.mrf.mxu0
        %v3031 = vadd.f32 0.0, %v3030
        %3032 = vdwg.mxu0
        %3033 = vmatpush.msra.mxu0 %v2903
        %3034 = vmatpush.msra.mxu0 %v2902
        %3035 = vmatpush.msra.mxu0 %v2901
        %3036 = vmatpush.msra.mxu0 %v2900
        %3037 = vmatpush.msra.mxu0 %v2899
        %3038 = vmatpush.msra.mxu0 %v2898
        %3039 = vmatpush.msra.mxu0 %v2897
        %3040 = vmatpush.msra.mxu0 %v2896
        %3041 = vmatpush.msra.mxu0 %v2895
        %3042 = vmatpush.msra.mxu0 %v2894
        %3043 = vmatpush.msra.mxu0 %v2893
        %3044 = vmatpush.msra.mxu0 %v2892
        %3045 = vmatpush.msra.mxu0 %v2891
        %3046 = vmatpush.msra.mxu0 %v2890
        %3047 = vmatpush.msra.mxu0 %v2889
        %3048 = vmatpush.msra.mxu0 %v2888
        %3049 = vmatmul.f32.gmra.mxu0 %v2028
        %v3050 = vpop.f32.mrf.mxu0
        %v3051 = vadd.f32 %v2938, %v3050
        %3052 = vmatmul.f32.gmra.mxu0 %v2029
        %v3053 = vpop.f32.mrf.mxu0
        %v3054 = vadd.f32 %v2941, %v3053
        %3055 = vmatmul.f32.gmra.mxu0 %v2030
        %v3056 = vpop.f32.mrf.mxu0
        %v3057 = vadd.f32 %v2944, %v3056
        %3058 = vmatmul.f32.gmra.mxu0 %v2031
        %v3059 = vpop.f32.mrf.mxu0
        %v3060 = vadd.f32 %v2947, %v3059
        %3061 = vmatmul.f32.gmra.mxu0 %v2032
        %v3062 = vpop.f32.mrf.mxu0
        %v3063 = vadd.f32 %v2950, %v3062
        %3064 = vmatmul.f32.gmra.mxu0 %v2033
        %v3065 = vpop.f32.mrf.mxu0
        %v3066 = vadd.f32 %v2953, %v3065
        %3067 = vmatmul.f32.gmra.mxu0 %v2034
        %v3068 = vpop.f32.mrf.mxu0
        %v3069 = vadd.f32 %v2956, %v3068
        %3070 = vmatmul.f32.gmra.mxu0 %v2035
        %v3071 = vpop.f32.mrf.mxu0
        %v3072 = vadd.f32 %v2959, %v3071
        %3073 = vmatmul.f32.gmra.mxu0 %v2036
        %v3074 = vpop.f32.mrf.mxu0
        %v3075 = vadd.f32 %v2962, %v3074
        %3076 = vmatmul.f32.gmra.mxu0 %v2037
        %v3077 = vpop.f32.mrf.mxu0
        %v3078 = vadd.f32 %v2965, %v3077
        %3079 = vmatmul.f32.gmra.mxu0 %v2038
        %v3080 = vpop.f32.mrf.mxu0
        %v3081 = vadd.f32 %v2968, %v3080
        %3082 = vmatmul.f32.gmra.mxu0 %v2039
        %v3083 = vpop.f32.mrf.mxu0
        %v3084 = vadd.f32 %v2971, %v3083
        %3085 = vmatmul.f32.gmra.mxu0 %v2040
        %v3086 = vpop.f32.mrf.mxu0
        %v3087 = vadd.f32 %v2974, %v3086
        %3088 = vmatmul.f32.gmra.mxu0 %v2041
        %v3089 = vpop.f32.mrf.mxu0
        %v3090 = vadd.f32 %v2977, %v3089
        %3091 = vmatmul.f32.gmra.mxu0 %v2042
        %v3092 = vpop.f32.mrf.mxu0
        %v3093 = vadd.f32 %v2980, %v3092
        %3094 = vmatmul.f32.gmra.mxu0 %v2043
        %v3095 = vpop.f32.mrf.mxu0
        %v3096 = vadd.f32 %v2983, %v3095
        %3097 = vmatmul.f32.gmra.mxu0 %v2044
        %v3098 = vpop.f32.mrf.mxu0
        %v3099 = vadd.f32 %v2986, %v3098
        %3100 = vmatmul.f32.gmra.mxu0 %v2045
        %v3101 = vpop.f32.mrf.mxu0
        %v3102 = vadd.f32 %v2989, %v3101
        %3103 = vmatmul.f32.gmra.mxu0 %v2046
        %v3104 = vpop.f32.mrf.mxu0
        %v3105 = vadd.f32 %v2992, %v3104
        %3106 = vmatmul.f32.gmra.mxu0 %v2047
        %v3107 = vpop.f32.mrf.mxu0
        %v3108 = vadd.f32 %v2995, %v3107
        %3109 = vmatmul.f32.gmra.mxu0 %v2048
        %v3110 = vpop.f32.mrf.mxu0
        %v3111 = vadd.f32 %v2998, %v3110
        %3112 = vmatmul.f32.gmra.mxu0 %v2049
        %v3113 = vpop.f32.mrf.mxu0
        %v3114 = vadd.f32 %v3001, %v3113
        %3115 = vmatmul.f32.gmra.mxu0 %v2050
        %v3116 = vpop.f32.mrf.mxu0
        %v3117 = vadd.f32 %v3004, %v3116
        %3118 = vmatmul.f32.gmra.mxu0 %v2051
        %v3119 = vpop.f32.mrf.mxu0
        %v3120 = vadd.f32 %v3007, %v3119
        %3121 = vmatmul.f32.gmra.mxu0 %v2052
        %v3122 = vpop.f32.mrf.mxu0
        %v3123 = vadd.f32 %v3010, %v3122
        %3124 = vmatmul.f32.gmra.mxu0 %v2053
        %v3125 = vpop.f32.mrf.mxu0
        %v3126 = vadd.f32 %v3013, %v3125
        %3127 = vmatmul.f32.gmra.mxu0 %v2054
        %v3128 = vpop.f32.mrf.mxu0
        %v3129 = vadd.f32 %v3016, %v3128
        %3130 = vmatmul.f32.gmra.mxu0 %v2055
        %v3131 = vpop.f32.mrf.mxu0
        %v3132 = vadd.f32 %v3019, %v3131
        %3133 = vmatmul.f32.gmra.mxu0 %v2056
        %v3134 = vpop.f32.mrf.mxu0
        %v3135 = vadd.f32 %v3022, %v3134
        %3136 = vmatmul.f32.gmra.mxu0 %v2057
        %v3137 = vpop.f32.mrf.mxu0
        %v3138 = vadd.f32 %v3025, %v3137
        %3139 = vmatmul.f32.gmra.mxu0 %v2058
        %v3140 = vpop.f32.mrf.mxu0
        %v3141 = vadd.f32 %v3028, %v3140
        %3142 = vmatmul.f32.gmra.mxu0 %v2059
        %v3143 = vpop.f32.mrf.mxu0
        %v3144 = vadd.f32 %v3031, %v3143
        %3145 = vdwg.mxu0
        %3146 = vmatpush.msra.mxu0 %v2919
        %3147 = vmatpush.msra.mxu0 %v2918
        %3148 = vmatpush.msra.mxu0 %v2917
        %3149 = vmatpush.msra.mxu0 %v2916
        %3150 = vmatpush.msra.mxu0 %v2915
        %3151 = vmatpush.msra.mxu0 %v2914
        %3152 = vmatpush.msra.mxu0 %v2913
        %3153 = vmatpush.msra.mxu0 %v2912
        %3154 = vmatpush.msra.mxu0 %v2911
        %3155 = vmatpush.msra.mxu0 %v2910
        %3156 = vmatpush.msra.mxu0 %v2909
        %3157 = vmatpush.msra.mxu0 %v2908
        %3158 = vmatpush.msra.mxu0 %v2907
        %3159 = vmatpush.msra.mxu0 %v2906
        %3160 = vmatpush.msra.mxu0 %v2905
        %3161 = vmatpush.msra.mxu0 %v2904
        %3162 = vmatmul.f32.gmra.mxu0 %v2064
        %v3163 = vpop.f32.mrf.mxu0
        %v3164 = vadd.f32 %v3051, %v3163
        %3165 = vmatmul.f32.gmra.mxu0 %v2065
        %v3166 = vpop.f32.mrf.mxu0
        %v3167 = vadd.f32 %v3054, %v3166
        %3168 = vmatmul.f32.gmra.mxu0 %v2066
        %v3169 = vpop.f32.mrf.mxu0
        %v3170 = vadd.f32 %v3057, %v3169
        %3171 = vmatmul.f32.gmra.mxu0 %v2067
        %v3172 = vpop.f32.mrf.mxu0
        %v3173 = vadd.f32 %v3060, %v3172
        %3174 = vmatmul.f32.gmra.mxu0 %v2068
        %v3175 = vpop.f32.mrf.mxu0
        %v3176 = vadd.f32 %v3063, %v3175
        %3177 = vmatmul.f32.gmra.mxu0 %v2069
        %v3178 = vpop.f32.mrf.mxu0
        %v3179 = vadd.f32 %v3066, %v3178
        %3180 = vmatmul.f32.gmra.mxu0 %v2070
        %v3181 = vpop.f32.mrf.mxu0
        %v3182 = vadd.f32 %v3069, %v3181
        %3183 = vmatmul.f32.gmra.mxu0 %v2071
        %v3184 = vpop.f32.mrf.mxu0
        %v3185 = vadd.f32 %v3072, %v3184
        %3186 = vmatmul.f32.gmra.mxu0 %v2072
        %v3187 = vpop.f32.mrf.mxu0
        %v3188 = vadd.f32 %v3075, %v3187
        %3189 = vmatmul.f32.gmra.mxu0 %v2073
        %v3190 = vpop.f32.mrf.mxu0
        %v3191 = vadd.f32 %v3078, %v3190
        %3192 = vmatmul.f32.gmra.mxu0 %v2074
        %v3193 = vpop.f32.mrf.mxu0
        %v3194 = vadd.f32 %v3081, %v3193
        %3195 = vmatmul.f32.gmra.mxu0 %v2075
        %v3196 = vpop.f32.mrf.mxu0
        %v3197 = vadd.f32 %v3084, %v3196
        %3198 = vmatmul.f32.gmra.mxu0 %v2076
        %v3199 = vpop.f32.mrf.mxu0
        %v3200 = vadd.f32 %v3087, %v3199
        %3201 = vmatmul.f32.gmra.mxu0 %v2077
        %v3202 = vpop.f32.mrf.mxu0
        %v3203 = vadd.f32 %v3090, %v3202
        %3204 = vmatmul.f32.gmra.mxu0 %v2078
        %v3205 = vpop.f32.mrf.mxu0
        %v3206 = vadd.f32 %v3093, %v3205
        %3207 = vmatmul.f32.gmra.mxu0 %v2079
        %v3208 = vpop.f32.mrf.mxu0
        %v3209 = vadd.f32 %v3096, %v3208
        %3210 = vmatmul.f32.gmra.mxu0 %v2080
        %v3211 = vpop.f32.mrf.mxu0
        %v3212 = vadd.f32 %v3099, %v3211
        %3213 = vmatmul.f32.gmra.mxu0 %v2081
        %v3214 = vpop.f32.mrf.mxu0
        %v3215 = vadd.f32 %v3102, %v3214
        %3216 = vmatmul.f32.gmra.mxu0 %v2082
        %v3217 = vpop.f32.mrf.mxu0
        %v3218 = vadd.f32 %v3105, %v3217
        %3219 = vmatmul.f32.gmra.mxu0 %v2083
        %v3220 = vpop.f32.mrf.mxu0
        %v3221 = vadd.f32 %v3108, %v3220
        %3222 = vmatmul.f32.gmra.mxu0 %v2084
        %v3223 = vpop.f32.mrf.mxu0
        %v3224 = vadd.f32 %v3111, %v3223
        %3225 = vmatmul.f32.gmra.mxu0 %v2085
        %v3226 = vpop.f32.mrf.mxu0
        %v3227 = vadd.f32 %v3114, %v3226
        %3228 = vmatmul.f32.gmra.mxu0 %v2086
        %v3229 = vpop.f32.mrf.mxu0
        %v3230 = vadd.f32 %v3117, %v3229
        %3231 = vmatmul.f32.gmra.mxu0 %v2087
        %v3232 = vpop.f32.mrf.mxu0
        %v3233 = vadd.f32 %v3120, %v3232
        %3234 = vmatmul.f32.gmra.mxu0 %v2088
        %v3235 = vpop.f32.mrf.mxu0
        %v3236 = vadd.f32 %v3123, %v3235
        %3237 = vmatmul.f32.gmra.mxu0 %v2089
        %v3238 = vpop.f32.mrf.mxu0
        %v3239 = vadd.f32 %v3126, %v3238
        %3240 = vmatmul.f32.gmra.mxu0 %v2090
        %v3241 = vpop.f32.mrf.mxu0
        %v3242 = vadd.f32 %v3129, %v3241
        %3243 = vmatmul.f32.gmra.mxu0 %v2091
        %v3244 = vpop.f32.mrf.mxu0
        %v3245 = vadd.f32 %v3132, %v3244
        %3246 = vmatmul.f32.gmra.mxu0 %v2092
        %v3247 = vpop.f32.mrf.mxu0
        %v3248 = vadd.f32 %v3135, %v3247
        %3249 = vmatmul.f32.gmra.mxu0 %v2093
        %v3250 = vpop.f32.mrf.mxu0
        %v3251 = vadd.f32 %v3138, %v3250
        %3252 = vmatmul.f32.gmra.mxu0 %v2094
        %v3253 = vpop.f32.mrf.mxu0
        %v3254 = vadd.f32 %v3141, %v3253
        %3255 = vmatmul.f32.gmra.mxu0 %v2095
        %v3256 = vpop.f32.mrf.mxu0
        %v3257 = vadd.f32 %v3144, %v3256
        %3258 = vdwg.mxu0
        %v3259 = vadd.f32 %v2776, %v3164
        %v3260 = vadd.f32 %v2779, %v3167
        %v3261 = vadd.f32 %v2782, %v3170
        %v3262 = vadd.f32 %v2785, %v3173
        %v3263 = vadd.f32 %v2788, %v3176
        %v3264 = vadd.f32 %v2791, %v3179
        %v3265 = vadd.f32 %v2794, %v3182
        %v3266 = vadd.f32 %v2797, %v3185
        %v3267 = vadd.f32 %v2800, %v3188
        %v3268 = vadd.f32 %v2803, %v3191
        %v3269 = vadd.f32 %v2806, %v3194
        %v3270 = vadd.f32 %v2809, %v3197
        %v3271 = vadd.f32 %v2812, %v3200
        %v3272 = vadd.f32 %v2815, %v3203
        %v3273 = vadd.f32 %v2818, %v3206
        %v3274 = vadd.f32 %v2821, %v3209
        %v3275 = vadd.f32 %v2824, %v3212
        %v3276 = vadd.f32 %v2827, %v3215
        %v3277 = vadd.f32 %v2830, %v3218
        %v3278 = vadd.f32 %v2833, %v3221
        %v3279 = vadd.f32 %v2836, %v3224
        %v3280 = vadd.f32 %v2839, %v3227
        %v3281 = vadd.f32 %v2842, %v3230
        %v3282 = vadd.f32 %v2845, %v3233
        %v3283 = vadd.f32 %v2848, %v3236
        %v3284 = vadd.f32 %v2851, %v3239
        %v3285 = vadd.f32 %v2854, %v3242
        %v3286 = vadd.f32 %v2857, %v3245
        %v3287 = vadd.f32 %v2860, %v3248
        %v3288 = vadd.f32 %v2863, %v3251
        %v3289 = vadd.f32 %v2866, %v3254
        %v3290 = vadd.f32 %v2869, %v3257
        %v3291 = vld [vmem:[%s4] sm:$0x1]
        %v3293 = vperm.slane %v3291, 0
        %v3295 = vadd.f32 %v3259, %v3293
        %v3296 = vadd.f32 %v3260, %v3293
        %v3297 = vadd.f32 %v3261, %v3293
        %v3298 = vadd.f32 %v3262, %v3293
        %v3299 = vadd.f32 %v3263, %v3293
        %v3300 = vadd.f32 %v3264, %v3293
        %v3301 = vadd.f32 %v3265, %v3293
        %v3302 = vadd.f32 %v3266, %v3293
        %v3303 = vadd.f32 %v3267, %v3293
        %v3304 = vadd.f32 %v3268, %v3293
        %v3305 = vadd.f32 %v3269, %v3293
        %v3306 = vadd.f32 %v3270, %v3293
        %v3307 = vadd.f32 %v3271, %v3293
        %v3308 = vadd.f32 %v3272, %v3293
        %v3309 = vadd.f32 %v3273, %v3293
        %v3310 = vadd.f32 %v3274, %v3293
        %v3311 = vadd.f32 %v3275, %v3293
        %v3312 = vadd.f32 %v3276, %v3293
        %v3313 = vadd.f32 %v3277, %v3293
        %v3314 = vadd.f32 %v3278, %v3293
        %v3315 = vadd.f32 %v3279, %v3293
        %v3316 = vadd.f32 %v3280, %v3293
        %v3317 = vadd.f32 %v3281, %v3293
        %v3318 = vadd.f32 %v3282, %v3293
        %v3319 = vadd.f32 %v3283, %v3293
        %v3320 = vadd.f32 %v3284, %v3293
        %v3321 = vadd.f32 %v3285, %v3293
        %v3322 = vadd.f32 %v3286, %v3293
        %v3323 = vadd.f32 %v3287, %v3293
        %v3324 = vadd.f32 %v3288, %v3293
        %v3325 = vadd.f32 %v3289, %v3293
        %v3326 = vadd.f32 %v3290, %v3293
        %v3327 = vadd.f32 %v3295, %v3296
        %v3328 = vadd.f32 %v3327, %v3297
        %v3329 = vadd.f32 %v3328, %v3298
        %v3330 = vadd.f32 %v3329, %v3299
        %v3331 = vadd.f32 %v3330, %v3300
        %v3332 = vadd.f32 %v3331, %v3301
        %v3333 = vadd.f32 %v3332, %v3302
        %v3334 = vadd.f32 %v3333, %v3303
        %v3335 = vadd.f32 %v3334, %v3304
        %v3336 = vadd.f32 %v3335, %v3305
        %v3337 = vadd.f32 %v3336, %v3306
        %v3338 = vadd.f32 %v3337, %v3307
        %v3339 = vadd.f32 %v3338, %v3308
        %v3340 = vadd.f32 %v3339, %v3309
        %v3341 = vadd.f32 %v3340, %v3310
        %v3342 = vadd.f32 %v3341, %v3311
        %v3343 = vadd.f32 %v3342, %v3312
        %v3344 = vadd.f32 %v3343, %v3313
        %v3345 = vadd.f32 %v3344, %v3314
        %v3346 = vadd.f32 %v3345, %v3315
        %v3347 = vadd.f32 %v3346, %v3316
        %v3348 = vadd.f32 %v3347, %v3317
        %v3349 = vadd.f32 %v3348, %v3318
        %v3350 = vadd.f32 %v3349, %v3319
        %v3351 = vadd.f32 %v3350, %v3320
        %v3352 = vadd.f32 %v3351, %v3321
        %v3353 = vadd.f32 %v3352, %v3322
        %v3354 = vadd.f32 %v3353, %v3323
        %v3355 = vadd.f32 %v3354, %v3324
        %v3356 = vadd.f32 %v3355, %v3325
        %v3357 = vadd.f32 %v3356, %v3326
        %v3358 = vrot.slane %v3357, 4
        %v3359 = vadd.f32 %v3357, %v3358
        %v3360 = vrot.slane %v3359, 2
        %v3361 = vadd.f32 %v3359, %v3360
        %v3362 = vrot.slane %v3361, 1
        %v3363 = vadd.f32 %v3361, %v3362
        %v3364 = vmul.f32 %v3363, 0.00390625
        %v3365 = vsub.f32 %v3295, %v3364
        %v3366 = vsub.f32 %v3296, %v3364
        %v3367 = vsub.f32 %v3297, %v3364
        %v3368 = vsub.f32 %v3298, %v3364
        %v3369 = vsub.f32 %v3299, %v3364
        %v3370 = vsub.f32 %v3300, %v3364
        %v3371 = vsub.f32 %v3301, %v3364
        %v3372 = vsub.f32 %v3302, %v3364
        %v3373 = vsub.f32 %v3303, %v3364
        %v3374 = vsub.f32 %v3304, %v3364
        %v3375 = vsub.f32 %v3305, %v3364
        %v3376 = vsub.f32 %v3306, %v3364
        %v3377 = vsub.f32 %v3307, %v3364
        %v3378 = vsub.f32 %v3308, %v3364
        %v3379 = vsub.f32 %v3309, %v3364
        %v3380 = vsub.f32 %v3310, %v3364
        %v3381 = vsub.f32 %v3311, %v3364
        %v3382 = vsub.f32 %v3312, %v3364
        %v3383 = vsub.f32 %v3313, %v3364
        %v3384 = vsub.f32 %v3314, %v3364
        %v3385 = vsub.f32 %v3315, %v3364
        %v3386 = vsub.f32 %v3316, %v3364
        %v3387 = vsub.f32 %v3317, %v3364
        %v3388 = vsub.f32 %v3318, %v3364
        %v3389 = vsub.f32 %v3319, %v3364
        %v3390 = vsub.f32 %v3320, %v3364
        %v3391 = vsub.f32 %v3321, %v3364
        %v3392 = vsub.f32 %v3322, %v3364
        %v3393 = vsub.f32 %v3323, %v3364
        %v3394 = vsub.f32 %v3324, %v3364
        %v3395 = vsub.f32 %v3325, %v3364
        %v3396 = vsub.f32 %v3326, %v3364
        %v3397 = vmul.f32 %v3365, %v3365
        %v3398 = vmul.f32 %v3366, %v3366
        %v3399 = vmul.f32 %v3367, %v3367
        %v3400 = vmul.f32 %v3368, %v3368
        %v3401 = vmul.f32 %v3369, %v3369
        %v3402 = vmul.f32 %v3370, %v3370
        %v3403 = vmul.f32 %v3371, %v3371
        %v3404 = vmul.f32 %v3372, %v3372
        %v3405 = vmul.f32 %v3373, %v3373
        %v3406 = vmul.f32 %v3374, %v3374
        %v3407 = vmul.f32 %v3375, %v3375
        %v3408 = vmul.f32 %v3376, %v3376
        %v3409 = vmul.f32 %v3377, %v3377
        %v3410 = vmul.f32 %v3378, %v3378
        %v3411 = vmul.f32 %v3379, %v3379
        %v3412 = vmul.f32 %v3380, %v3380
        %v3413 = vmul.f32 %v3381, %v3381
        %v3414 = vmul.f32 %v3382, %v3382
        %v3415 = vmul.f32 %v3383, %v3383
        %v3416 = vmul.f32 %v3384, %v3384
        %v3417 = vmul.f32 %v3385, %v3385
        %v3418 = vmul.f32 %v3386, %v3386
        %v3419 = vmul.f32 %v3387, %v3387
        %v3420 = vmul.f32 %v3388, %v3388
        %v3421 = vmul.f32 %v3389, %v3389
        %v3422 = vmul.f32 %v3390, %v3390
        %v3423 = vmul.f32 %v3391, %v3391
        %v3424 = vmul.f32 %v3392, %v3392
        %v3425 = vmul.f32 %v3393, %v3393
        %v3426 = vmul.f32 %v3394, %v3394
        %v3427 = vmul.f32 %v3395, %v3395
        %v3428 = vmul.f32 %v3396, %v3396
        %v3429 = vadd.f32 %v3397, %v3398
        %v3430 = vadd.f32 %v3429, %v3399
        %v3431 = vadd.f32 %v3430, %v3400
        %v3432 = vadd.f32 %v3431, %v3401
        %v3433 = vadd.f32 %v3432, %v3402
        %v3434 = vadd.f32 %v3433, %v3403
        %v3435 = vadd.f32 %v3434, %v3404
        %v3436 = vadd.f32 %v3435, %v3405
        %v3437 = vadd.f32 %v3436, %v3406
        %v3438 = vadd.f32 %v3437, %v3407
        %v3439 = vadd.f32 %v3438, %v3408
        %v3440 = vadd.f32 %v3439, %v3409
        %v3441 = vadd.f32 %v3440, %v3410
        %v3442 = vadd.f32 %v3441, %v3411
        %v3443 = vadd.f32 %v3442, %v3412
        %v3444 = vadd.f32 %v3443, %v3413
        %v3445 = vadd.f32 %v3444, %v3414
        %v3446 = vadd.f32 %v3445, %v3415
        %v3447 = vadd.f32 %v3446, %v3416
        %v3448 = vadd.f32 %v3447, %v3417
        %v3449 = vadd.f32 %v3448, %v3418
        %v3450 = vadd.f32 %v3449, %v3419
        %v3451 = vadd.f32 %v3450, %v3420
        %v3452 = vadd.f32 %v3451, %v3421
        %v3453 = vadd.f32 %v3452, %v3422
        %v3454 = vadd.f32 %v3453, %v3423
        %v3455 = vadd.f32 %v3454, %v3424
        %v3456 = vadd.f32 %v3455, %v3425
        %v3457 = vadd.f32 %v3456, %v3426
        %v3458 = vadd.f32 %v3457, %v3427
        %v3459 = vadd.f32 %v3458, %v3428
        %v3460 = vrot.slane %v3459, 4
        %v3461 = vadd.f32 %v3459, %v3460
        %v3462 = vrot.slane %v3461, 2
        %v3463 = vadd.f32 %v3461, %v3462
        %v3464 = vrot.slane %v3463, 1
        %v3465 = vadd.f32 %v3463, %v3464
        %v3466 = vmul.f32 %v3465, 0.00390625
        %v3467 = vadd.f32 %v3466, 1e-05
        %v3468 = vrsqrt.pop %v3467
        %v3469 = vmul.f32 %v3468, %v3467
        %v3470 = vmul.f32 %v3469, %v3468
        %v3471 = vmul.f32 0.5, %v3470
        %v3472 = vsub.f32 1.5, %v3471
        %v3473 = vmul.f32 %v3468, %v3472
        %vm3474 = vweird.f32 %v3467
        %vm3475 = vweird.f32 %v3468
        %vm3476 = vmor %vm3474, %vm3475
        %v3477 = vsel %vm3476, %v3468, %v3473
        %v3478 = vmul.f32 %v3365, %v3477
        %v3479 = vmul.f32 %v3366, %v3477
        %v3480 = vmul.f32 %v3367, %v3477
        %v3481 = vmul.f32 %v3368, %v3477
        %v3482 = vmul.f32 %v3369, %v3477
        %v3483 = vmul.f32 %v3370, %v3477
        %v3484 = vmul.f32 %v3371, %v3477
        %v3485 = vmul.f32 %v3372, %v3477
        %v3486 = vmul.f32 %v3373, %v3477
        %v3487 = vmul.f32 %v3374, %v3477
        %v3488 = vmul.f32 %v3375, %v3477
        %v3489 = vmul.f32 %v3376, %v3477
        %v3490 = vmul.f32 %v3377, %v3477
        %v3491 = vmul.f32 %v3378, %v3477
        %v3492 = vmul.f32 %v3379, %v3477
        %v3493 = vmul.f32 %v3380, %v3477
        %v3494 = vmul.f32 %v3381, %v3477
        %v3495 = vmul.f32 %v3382, %v3477
        %v3496 = vmul.f32 %v3383, %v3477
        %v3497 = vmul.f32 %v3384, %v3477
        %v3498 = vmul.f32 %v3385, %v3477
        %v3499 = vmul.f32 %v3386, %v3477
        %v3500 = vmul.f32 %v3387, %v3477
        %v3501 = vmul.f32 %v3388, %v3477
        %v3502 = vmul.f32 %v3389, %v3477
        %v3503 = vmul.f32 %v3390, %v3477
        %v3504 = vmul.f32 %v3391, %v3477
        %v3505 = vmul.f32 %v3392, %v3477
        %v3506 = vmul.f32 %v3393, %v3477
        %v3507 = vmul.f32 %v3394, %v3477
        %v3508 = vmul.f32 %v3395, %v3477
        %v3509 = vmul.f32 %v3396, %v3477
        %v3510 = vmax.f32 %v3478, 0.0
        %v3511 = vmax.f32 %v3479, 0.0
        %v3512 = vmax.f32 %v3480, 0.0
        %v3513 = vmax.f32 %v3481, 0.0
        %v3514 = vmax.f32 %v3482, 0.0
        %v3515 = vmax.f32 %v3483, 0.0
        %v3516 = vmax.f32 %v3484, 0.0
        %v3517 = vmax.f32 %v3485, 0.0
        %v3518 = vmax.f32 %v3486, 0.0
        %v3519 = vmax.f32 %v3487, 0.0
        %v3520 = vmax.f32 %v3488, 0.0
        %v3521 = vmax.f32 %v3489, 0.0
        %v3522 = vmax.f32 %v3490, 0.0
        %v3523 = vmax.f32 %v3491, 0.0
        %v3524 = vmax.f32 %v3492, 0.0
        %v3525 = vmax.f32 %v3493, 0.0
        %v3526 = vmax.f32 %v3494, 0.0
        %v3527 = vmax.f32 %v3495, 0.0
        %v3528 = vmax.f32 %v3496, 0.0
        %v3529 = vmax.f32 %v3497, 0.0
        %v3530 = vmax.f32 %v3498, 0.0
        %v3531 = vmax.f32 %v3499, 0.0
        %v3532 = vmax.f32 %v3500, 0.0
        %v3533 = vmax.f32 %v3501, 0.0
        %v3534 = vmax.f32 %v3502, 0.0
        %v3535 = vmax.f32 %v3503, 0.0
        %v3536 = vmax.f32 %v3504, 0.0
        %v3537 = vmax.f32 %v3505, 0.0
        %v3538 = vmax.f32 %v3506, 0.0
        %v3539 = vmax.f32 %v3507, 0.0
        %v3540 = vmax.f32 %v3508, 0.0
        %v3541 = vmax.f32 %v3509, 0.0
        %v3542 = vld [vmem:[%s253] sm:$0xff]
        %v3543 = vld [vmem:[%s253 + $0x8] sm:$0xff]
        %v3544 = vld [vmem:[%s253 + $0x10] sm:$0xff]
        %v3545 = vld [vmem:[%s253 + $0x18] sm:$0xff]
        %v3546 = vld [vmem:[%s253 + $0x20] sm:$0xff]
        %v3547 = vld [vmem:[%s253 + $0x28] sm:$0xff]
        %v3548 = vld [vmem:[%s253 + $0x30] sm:$0xff]
        %v3549 = vld [vmem:[%s253 + $0x38] sm:$0xff]
        %v3550 = vld [vmem:[%s253 + $0x40] sm:$0xff]
        %v3551 = vld [vmem:[%s253 + $0x48] sm:$0xff]
        %v3552 = vld [vmem:[%s253 + $0x50] sm:$0xff]
        %v3553 = vld [vmem:[%s253 + $0x58] sm:$0xff]
        %v3554 = vld [vmem:[%s253 + $0x60] sm:$0xff]
        %v3555 = vld [vmem:[%s253 + $0x68] sm:$0xff]
        %v3556 = vld [vmem:[%s253 + $0x70] sm:$0xff]
        %v3557 = vld [vmem:[%s253 + $0x78] sm:$0xff]
        %v3558 = vld [vmem:[%s253 + $0x80] sm:$0xff]
        %v3559 = vld [vmem:[%s253 + $0x88] sm:$0xff]
        %v3560 = vld [vmem:[%s253 + $0x90] sm:$0xff]
        %v3561 = vld [vmem:[%s253 + $0x98] sm:$0xff]
        %v3562 = vld [vmem:[%s253 + $0xa0] sm:$0xff]
        %v3563 = vld [vmem:[%s253 + $0xa8] sm:$0xff]
        %v3564 = vld [vmem:[%s253 + $0xb0] sm:$0xff]
        %v3565 = vld [vmem:[%s253 + $0xb8] sm:$0xff]
        %v3566 = vld [vmem:[%s253 + $0xc0] sm:$0xff]
        %v3567 = vld [vmem:[%s253 + $0xc8] sm:$0xff]
        %v3568 = vld [vmem:[%s253 + $0xd0] sm:$0xff]
        %v3569 = vld [vmem:[%s253 + $0xd8] sm:$0xff]
        %v3570 = vld [vmem:[%s253 + $0xe0] sm:$0xff]
        %v3571 = vld [vmem:[%s253 + $0xe8] sm:$0xff]
        %v3572 = vld [vmem:[%s253 + $0xf0] sm:$0xff]
        %v3573 = vld [vmem:[%s253 + $0xf8] sm:$0xff]
        %v3574 = vadd.f32 %v3542, %v3510
        %v3575 = vadd.f32 %v3543, %v3511
        %v3576 = vadd.f32 %v3544, %v3512
        %v3577 = vadd.f32 %v3545, %v3513
        %v3578 = vadd.f32 %v3546, %v3514
        %v3579 = vadd.f32 %v3547, %v3515
        %v3580 = vadd.f32 %v3548, %v3516
        %v3581 = vadd.f32 %v3549, %v3517
        %v3582 = vadd.f32 %v3550, %v3518
        %v3583 = vadd.f32 %v3551, %v3519
        %v3584 = vadd.f32 %v3552, %v3520
        %v3585 = vadd.f32 %v3553, %v3521
        %v3586 = vadd.f32 %v3554, %v3522
        %v3587 = vadd.f32 %v3555, %v3523
        %v3588 = vadd.f32 %v3556, %v3524
        %v3589 = vadd.f32 %v3557, %v3525
        %v3590 = vadd.f32 %v3558, %v3526
        %v3591 = vadd.f32 %v3559, %v3527
        %v3592 = vadd.f32 %v3560, %v3528
        %v3593 = vadd.f32 %v3561, %v3529
        %v3594 = vadd.f32 %v3562, %v3530
        %v3595 = vadd.f32 %v3563, %v3531
        %v3596 = vadd.f32 %v3564, %v3532
        %v3597 = vadd.f32 %v3565, %v3533
        %v3598 = vadd.f32 %v3566, %v3534
        %v3599 = vadd.f32 %v3567, %v3535
        %v3600 = vadd.f32 %v3568, %v3536
        %v3601 = vadd.f32 %v3569, %v3537
        %v3602 = vadd.f32 %v3570, %v3538
        %v3603 = vadd.f32 %v3571, %v3539
        %v3604 = vadd.f32 %v3572, %v3540
        %v3605 = vadd.f32 %v3573, %v3541
        %3606 = vst.msk [vmem:[%s258] sm:$0xff] %vm336, %v3574
        %3607 = vst.msk [vmem:[%s258 + $0x8] sm:$0xff] %vm336, %v3575
        %3608 = vst.msk [vmem:[%s258 + $0x10] sm:$0xff] %vm336, %v3576
        %3609 = vst.msk [vmem:[%s258 + $0x18] sm:$0xff] %vm336, %v3577
        %3610 = vst.msk [vmem:[%s258 + $0x20] sm:$0xff] %vm336, %v3578
        %3611 = vst.msk [vmem:[%s258 + $0x28] sm:$0xff] %vm336, %v3579
        %3612 = vst.msk [vmem:[%s258 + $0x30] sm:$0xff] %vm336, %v3580
        %3613 = vst.msk [vmem:[%s258 + $0x38] sm:$0xff] %vm336, %v3581
        %3614 = vst.msk [vmem:[%s258 + $0x40] sm:$0xff] %vm336, %v3582
        %3615 = vst.msk [vmem:[%s258 + $0x48] sm:$0xff] %vm336, %v3583
        %3616 = vst.msk [vmem:[%s258 + $0x50] sm:$0xff] %vm336, %v3584
        %3617 = vst.msk [vmem:[%s258 + $0x58] sm:$0xff] %vm336, %v3585
        %3618 = vst.msk [vmem:[%s258 + $0x60] sm:$0xff] %vm336, %v3586
        %3619 = vst.msk [vmem:[%s258 + $0x68] sm:$0xff] %vm336, %v3587
        %3620 = vst.msk [vmem:[%s258 + $0x70] sm:$0xff] %vm336, %v3588
        %3621 = vst.msk [vmem:[%s258 + $0x78] sm:$0xff] %vm336, %v3589
        %3622 = vst.msk [vmem:[%s258 + $0x80] sm:$0xff] %vm336, %v3590
        %3623 = vst.msk [vmem:[%s258 + $0x88] sm:$0xff] %vm336, %v3591
        %3624 = vst.msk [vmem:[%s258 + $0x90] sm:$0xff] %vm336, %v3592
        %3625 = vst.msk [vmem:[%s258 + $0x98] sm:$0xff] %vm336, %v3593
        %3626 = vst.msk [vmem:[%s258 + $0xa0] sm:$0xff] %vm336, %v3594
        %3627 = vst.msk [vmem:[%s258 + $0xa8] sm:$0xff] %vm336, %v3595
        %3628 = vst.msk [vmem:[%s258 + $0xb0] sm:$0xff] %vm336, %v3596
        %3629 = vst.msk [vmem:[%s258 + $0xb8] sm:$0xff] %vm336, %v3597
        %3630 = vst.msk [vmem:[%s258 + $0xc0] sm:$0xff] %vm336, %v3598
        %3631 = vst.msk [vmem:[%s258 + $0xc8] sm:$0xff] %vm336, %v3599
        %3632 = vst.msk [vmem:[%s258 + $0xd0] sm:$0xff] %vm336, %v3600
        %3633 = vst.msk [vmem:[%s258 + $0xd8] sm:$0xff] %vm336, %v3601
        %3634 = vst.msk [vmem:[%s258 + $0xe0] sm:$0xff] %vm336, %v3602
        %3635 = vst.msk [vmem:[%s258 + $0xe8] sm:$0xff] %vm336, %v3603
        %3636 = vst.msk [vmem:[%s258 + $0xf0] sm:$0xff] %vm336, %v3604
        %3637 = vst.msk [vmem:[%s258 + $0xf8] sm:$0xff] %vm336, %v3605
        %p3638 = scmp.lt.s32.totalorder %s18, 1
        %s3639 = scalar_select %p3638, %s18, 1
        %s3640 = smul.addr %s3639, 32
        %s3641 = smul.addr %s3640, 8
        %s3642 = scalar_lea.vmem %s5, %s3641
        // Predicated region
        $region49: #{tpu_custom_call.1} parent=39 // pred_check
          %p3643 = pneg %p146
        $region50: #{tpu_custom_call.1} parent=39 // pred_check_branch
          %3645 = sbr.rel (%p3643) target = $region52
        $region51: #{tpu_custom_call.1} parent=39 // pred_region
          _
        $region52: #{tpu_custom_call.1} parent=39 // pred_fallthru
          _
      $region40: #{tpu_custom_call.1} parent=5 // pred_fallthru
        _
      %p3646 = scmp.le.s32.totalorder 2, %s13
      // Predicated region
      $region53: #{tpu_custom_call.1} parent=5 // pred_check
        %p3647 = pneg %p3646
      $region54: #{tpu_custom_call.1} parent=5 // pred_check_branch
        %3649 = sbr.rel (%p3647) target = $region56
      $region55: #{tpu_custom_call.1} parent=5 // pred_region
        %s3650 = ssub.s32 %s13, 2
        // Predicated region
        $region57: #{tpu_custom_call.1} parent=55 // pred_check
          %p3651 = pneg %p152
        $region58: #{tpu_custom_call.1} parent=55 // pred_check_branch
          %3653 = sbr.rel (%p3651) target = $region60
        $region59: #{tpu_custom_call.1} parent=55 // pred_region
          %p3654 = scmp.lt.s32.totalorder %s19, 1
          %s3655 = scalar_select %p3654, %s19, 1
          %s3656 = smul.addr %s3655, 32
          %s3657 = smul.addr %s3656, 8
          %s3658 = scalar_lea.vmem %s5, %s3657
        $region60: #{tpu_custom_call.1} parent=55 // pred_fallthru
          _
      $region56: #{tpu_custom_call.1} parent=5 // pred_fallthru
        _
    $region6: #{tpu_custom_call.1} parent=1 // loop_footer
      %s17 = sadd.s32 1, %s13
    $region7: #{tpu_custom_call.1} parent=1 // loop_footer_branch
      %12 = sbr.rel target = $region3
    $region8: #{tpu_custom_call.1} parent=1 // loop_exit
      _
    %3659 = vsyncpa [#allocation4], 1
    %s3660 = scalar_lea.sflag [#allocation4], 1
    %3661 = vsyncpa %s3660, 1
    %3662 = vsyncpa [#allocation6], 1

</llo_original>
